<compile_context>
chip_gen: v5e
topology: v5e:2x2
jax: 0.10.0
libtpu: 0.0.40
codegen_flags: <defaults>
</compile_context>

<pallas_src>
import math

import jax
import jax.numpy as jnp
from jax import lax
from jax.experimental import pallas as pl
from jax.experimental.pallas import tpu as pltpu

EPS_LN = 1e-6  # LayerNorm eps of the hand-rolled LayerNorm in the module


# ----------------------------- fused kernel --------------------------------

def _make_graphsite_kernel(treedef, *, heads, n_enc, nffn):
    F32, BF16 = jnp.float32, jnp.bfloat16

    def normalize(x):
        # (x - mean) / (std + eps) with unbiased std (N-1), matching the
        # module's hand-rolled LayerNorm; gain/bias are folded into the
        # following linear at prep time.
        mean = jnp.mean(x, axis=-1, keepdims=True)
        xc = x - mean
        var = jnp.sum(xc * xc, axis=-1, keepdims=True) / (x.shape[-1] - 1)
        return xc / (jnp.sqrt(var) + EPS_LN)

    def ln(x, g, b):
        # Full LayerNorm (used where the normed value is also a residual base).
        return g * normalize(x) + b

    def lin(x, w, b):
        # bf16 operands, f32 accumulation on the MXU.
        return jnp.dot(x.astype(BF16), w, preferred_element_type=F32) + b

    def mish(x):
        # x * tanh(softplus(x)) == x * (e^2 + 2e) / (e^2 + 2e + 2), e = exp(x)
        # -> one transcendental (exp) + one EUP reciprocal instead of three.
        xs = jnp.minimum(x, 20.0)                 # overflow guard; mish(x)~x above
        e = jnp.exp(xs)
        n = e * (e + 2.0)
        y = x * n * pl.reciprocal(n + 2.0, approx=True)
        return jnp.where(x > 20.0, x, y)

    def kernel(x_ref, nm_ref, em_ref, *refs):
        out_ref = refs[-1]
        # Keep Refs in the tree; weights are loaded at point of use so only one
        # layer's weights are live at a time (v7x VMEM/vreg hygiene).
        prm = jax.tree_util.tree_unflatten(treedef, list(refs[:-1]))

        x = x_ref[...]                         # (M, Fin)  node features, f32
        negmask = nm_ref[...]                  # (1, M)    additive key-mask bias
        emask = em_ref[...].astype(F32)        # (M, M)    top-k edge mask
        # TODO(synk): keep emask resident in bf16/int8 when M grows (v7x VMEM).

        # ------------------------- Node_Embedding ------------------------
        emb = prm["emb"]
        h = x
        for lyr in emb["layers"]:
            # LN gain/bias folded into the linear weight/bias at prep time.
            h = mish(lin(normalize(h), lyr["w"][...], lyr["b"][...]))
        h = ln(h, emb["final_g"][...], emb["final_b"][...])

        # ----------------------------- Encoder ---------------------------
        enc = prm["enc"]
        ng = enc["ng"][...]
        nb = enc["nb"][...]
        hid = ng.shape[-1]
        D = hid // heads
        for l in range(n_enc):
            # x <- norm(x); x <- x + MHSA(x)   (normed x is the residual base,
            # so the encoder norm is kept un-folded).
            h = ln(h, ng, nb)
            # fused QKV projection (q columns pre-scaled by 1/sqrt(D))
            qkv = lin(h, enc["wqkv"][l], enc["bqkv"][l])        # (M, 3*hid)
            heads_out = []
            for hd in range(heads):
                q = qkv[:, hd * D:(hd + 1) * D]                 # (M, D)
                k = qkv[:, hid + hd * D:hid + (hd + 1) * D]
                v = qkv[:, 2 * hid + hd * D:2 * hid + (hd + 1) * D]
                s = lax.dot_general(q.astype(BF16), k.astype(BF16),
                                    (((1,), (1,)), ((), ())),
                                    preferred_element_type=F32)  # (M, M)
                s = s + negmask                                  # padded keys -> -1e12
                # Fused softmax + top-k renorm (algebraically identical to
                # softmax -> *emask -> /(sum + 1e-5)):
                u = jnp.exp(s - jnp.max(s, axis=-1, keepdims=True))
                z = jnp.sum(u, axis=-1, keepdims=True)
                um = u * emask
                p = um * pl.reciprocal(
                    jnp.sum(um, axis=-1, keepdims=True) + 1e-5 * z, approx=True)
                heads_out.append(jnp.dot(p.astype(BF16), v.astype(BF16),
                                         preferred_element_type=F32))   # (M, D)
            # Single full-contraction output projection (replaces `heads`
            # tiny-D matmuls + accumulate adds).
            o_cat = jnp.concatenate(heads_out, axis=-1)          # (M, hid)
            h = h + mish(lin(o_cat, enc["wo"][l], enc["bo"][l]))

            # x <- norm(x); x <- x + FFN(x)
            h = ln(h, ng, nb)
            f = h
            for j in range(nffn):
                idx = l * nffn + j
                f = mish(lin(f, enc["ffn_w"][idx], enc["ffn_b"][idx]))
            h = h + f

        # --------------------------- Generator ---------------------------
        gen = prm["gen"]
        h = mish(lin(normalize(h), gen["w0"][...], gen["bb0"][...]))
        # final projection is padded to 128 lanes (lane-dense store);
        # the real output columns are sliced outside the kernel.
        out_ref[...] = lin(normalize(h), gen["w1"][...], gen["bb1"][...])

    return kernel


# ------------------------- parameter preparation ----------------------------

def prep_kernel_params(params, heads, out_pad):
    """One-time transform to kernel layout:
      * transpose weights to (Fin, Fout) and cast matmul weights to bf16,
      * fold each Node_Embedding / Generator LayerNorm's gain/bias into the
        following linear (W' = diag(g) @ W, b' = b_ln @ W + b, in f32),
      * fuse QKV with 1/sqrt(D) folded into the q columns,
      * keep the MHSA output projection as one full (hid, hid) matrix,
      * stack encoder layers, pad the generator output to out_pad lanes."""
    f32, bf16 = jnp.float32, jnp.bfloat16

    def row(v):
        return v.reshape(1, -1).astype(f32)

    def fold_ln_linear(g, b_ln, w, b_lin):
        # y = (g*xn + b_ln) @ W^T + b  ==  xn @ (g[:,None]*W^T) + (b_ln@W^T + b)
        wt = w.T.astype(f32)                                  # (Fin, Fout)
        wf = (g[:, None] * wt).astype(bf16)
        bf = (b_ln @ wt + b_lin).reshape(1, -1).astype(f32)
        return wf, bf

    # Node_Embedding (per-layer LN folded into its linear; final LN kept)
    emb_layers = []
    for (g, bt, w, b) in params["emb"]["layers"]:
        wf, bf = fold_ln_linear(g, bt, w, b)
        emb_layers.append({"w": wf, "b": bf})
    fg, fb = params["emb"]["final_ln"]
    emb = {"layers": emb_layers, "final_g": row(fg), "final_b": row(fb)}

    # Encoder (norm shared across all layers, like the module; NOT folded
    # because its output is also the residual base)
    ng, nb = params["enc"]["norm"]
    hidden = ng.shape[0]
    D = hidden // heads
    inv_sqrt_d = 1.0 / math.sqrt(D)
    wqkv_l, bqkv_l, wo_l, bo_l, ffw_l, ffb_l = [], [], [], [], [], []
    for lyr in params["enc"]["layers"]:
        m = lyr["mhsa"]
        wqkv = jnp.concatenate(
            [m["wq"].T * inv_sqrt_d, m["wk"].T, m["wv"].T], axis=1)   # (F, 3F)
        bqkv = jnp.concatenate([m["bq"] * inv_sqrt_d, m["bk"], m["bv"]])
        wqkv_l.append(wqkv.astype(bf16))
        bqkv_l.append(bqkv.reshape(1, -1).astype(f32))
        # full output projection (rows are head-major, matching the in-kernel
        # concatenation order of the per-head outputs)
        wo_l.append(m["wo"].T.astype(bf16))                            # (F, F)
        bo_l.append(row(m["bo"]))
        for (w, b) in lyr["ffn"]:
            ffw_l.append(w.T.astype(bf16))
            ffb_l.append(row(b))
    enc = {"ng": row(ng), "nb": row(nb),
           "wqkv": jnp.stack(wqkv_l), "bqkv": jnp.stack(bqkv_l),
           "wo": jnp.stack(wo_l), "bo": jnp.stack(bo_l)}
    if ffw_l:
        enc["ffn_w"] = jnp.stack(ffw_l)          # (L*nffn, F, F)
        enc["ffn_b"] = jnp.stack(ffb_l)          # (L*nffn, 1, F)

    # Generator (2 layers, both LNs folded); final projection padded to
    # out_pad lanes for a lane-dense store.
    (g0, b0, w0, bb0), (g1, b1, w1, bb1) = params["gen"]
    w0f, bb0f = fold_ln_linear(g0, b0, w0, bb0)
    out_features = w1.shape[0]
    w1t = g1[:, None] * w1.T.astype(f32)                    # (F, out)
    bb1f = b1 @ w1.T.astype(f32) + bb1
    w1p = jnp.pad(w1t, ((0, 0), (0, out_pad - out_features))).astype(bf16)
    bb1p = jnp.pad(bb1f, (0, out_pad - out_features)).reshape(1, -1).astype(f32)
    gen = {"w0": w0f, "bb0": bb0f, "w1": w1p, "bb1": bb1p}
    return {"emb": emb, "enc": enc, "gen": gen}


# ------------------------------ forward pass --------------------------------

def graphsite_forward(params, node_feats, edge_feats, masks, num_neighbors, heads):
    B, M, Fin = node_feats.shape
    out_features = params["gen"][1][2].shape[0]
    out_pad = ((max(out_features, 1) + 127) // 128) * 128     # lane-dense store
    n_enc = len(params["enc"]["layers"])
    nffn = len(params["enc"]["layers"][0]["ffn"]) if n_enc else 0

    kp = prep_kernel_params(params, heads, out_pad)
    leaves, treedef = jax.tree_util.tree_flatten(kp)

    # Top-k edge mask built OUTSIDE the kernel (per-row k-th largest threshold
    # replaces the double argsort; ties at the threshold are all kept —
    # identical for continuous-valued edges).  Streamed as bf16: half the HBM
    # of streaming f32 edge features, and no in-kernel compare.
    # TODO(synk): torch.argsort tie order is unspecified; exact tie behavior
    # may differ for discrete edge weights.
    k = min(num_neighbors, M)
    kth = lax.top_k(edge_feats, k)[0][..., -1:]                      # (B, M, 1)
    emask = (edge_feats >= kth).astype(jnp.bfloat16)                 # (B, M, M)
    # Key mask hoisted to an additive bias (removes heads*n_enc (M,M)
    # compare+select passes inside the kernel).
    negmask = jnp.where(masks == 0, -1e12, 0.0).astype(jnp.float32).reshape(B, 1, M)

    # Pad B to a multiple of 2 so the ("parallel",) batch grid feeds both
    # TensorCores on v7x (padded graphs are dropped by the final mask gather).
    pad = (-B) % 2
    Bp = B + pad
    if pad:
        node_feats_p = jnp.pad(node_feats, ((0, pad), (0, 0), (0, 0)))
        negmask_p = jnp.pad(negmask, ((0, pad), (0, 0), (0, 0)))
        emask_p = jnp.pad(emask, ((0, pad), (0, 0), (0, 0)), constant_values=1)
    else:
        node_feats_p, negmask_p, emask_p = node_feats, negmask, emask

    kernel = _make_graphsite_kernel(treedef, heads=heads, n_enc=n_enc, nffn=nffn)

    data_specs = [
        pl.BlockSpec((None, M, Fin), lambda b: (b, 0, 0)),     # node features
        pl.BlockSpec((None, 1, M), lambda b: (b, 0, 0)),       # additive key mask
        pl.BlockSpec((None, M, M), lambda b: (b, 0, 0)),       # bf16 top-k mask
    ]
    # Weights: full-array blocks with constant index_maps -> DMA'd once and
    # revisited across the batch grid.
    param_specs = [pl.BlockSpec(lf.shape, (lambda b, nd=lf.ndim: (0,) * nd))
                   for lf in leaves]

    # Explicit VMEM budget sized from the actual working set (weights +
    # double-buffered per-step data/output blocks + activation headroom).
    weight_bytes = sum(int(lf.size) * lf.dtype.itemsize for lf in leaves)
    block_bytes = M * Fin * 4 + M * 4 + M * M * 2 + M * out_pad * 4
    vmem_limit = int(min(48 * (1 << 20),
                         max(16 * (1 << 20), 8 * (weight_bytes + block_bytes))))

    out = pl.pallas_call(
        kernel,
        grid=(Bp,),
        out_shape=jax.ShapeDtypeStruct((Bp, M, out_pad), jnp.float32),
        in_specs=data_specs + param_specs,
        out_specs=pl.BlockSpec((None, M, out_pad), lambda b: (b, 0, 0)),
        compiler_params=pltpu.CompilerParams(
            dimension_semantics=("parallel",),                 # v7x: 2 TCs split B
            vmem_limit_bytes=vmem_limit),
    )(node_feats_p, negmask_p, emask_p, *leaves)

    out_all = out[:B].reshape(B * M, out_pad)[:, :out_features]
    # Generator's index_select of valid rows (dynamic output shape) on host.
    # TODO(synk): not jittable (data-dependent shape); fine for this script.
    return out_all[masks.reshape(-1).astype(bool)]


# ----------------------------- parameter init -------------------------------

def init_linear(key, fin, fout):
    k1, k2 = jax.random.split(key)
    bound = 1.0 / math.sqrt(fin)
    w = jax.random.uniform(k1, (fout, fin), minval=-bound, maxval=bound,
                           dtype=jnp.float32)
    b = jax.random.uniform(k2, (fout,), minval=-bound, maxval=bound,
                           dtype=jnp.float32)
    return w, b


def init_layernorm(f):
    return jnp.ones((f,), jnp.float32), jnp.zeros((f,), jnp.float32)


def init_params(key, in_features, hidden, out_features,
                num_emb_layers, num_mhsa_layers, num_ffn_layers):
    keys = iter(jax.random.split(key, 256))
    # Node_Embedding
    emb_layers = []
    f_prev = in_features
    for _ in range(num_emb_layers):
        g, bt = init_layernorm(f_prev)
        w, b = init_linear(next(keys), f_prev, hidden)
        emb_layers.append((g, bt, w, b))
        f_prev = hidden
    emb = {"layers": emb_layers, "final_ln": init_layernorm(hidden)}
    # Encoder (shared LayerNorm across the whole encoder, like the module)
    enc_layers = []
    for _ in range(num_mhsa_layers):
        wq, bq = init_linear(next(keys), hidden, hidden)
        wk, bk = init_linear(next(keys), hidden, hidden)
        wv, bv = init_linear(next(keys), hidden, hidden)
        wo, bo = init_linear(next(keys), hidden, hidden)
        ffn = [init_linear(next(keys), hidden, hidden)
               for _ in range(num_ffn_layers)]
        enc_layers.append({"mhsa": dict(wq=wq, bq=bq, wk=wk, bk=bk,
                                        wv=wv, bv=bv, wo=wo, bo=bo),
                           "ffn": ffn})
    enc = {"norm": init_layernorm(hidden), "layers": enc_layers}
    # Generator (2 layers)
    g0, b0 = init_layernorm(hidden)
    w0, bb0 = init_linear(next(keys), hidden, hidden)
    g1, b1 = init_layernorm(hidden)
    w1, bb1 = init_linear(next(keys), hidden, out_features)
    gen = [(g0, b0, w0, bb0), (g1, b1, w1, bb1)]
    return {"emb": emb, "enc": enc, "gen": gen}


# --------------------------------- main --------------------------------------

if __name__ == "__main__":
    B, M = 2, 8
    IN_FEATURES, HIDDEN, OUT_FEATURES = 16, 32, 2
    HEADS, NUM_NEIGHBORS = 4, 5
    NUM_EMB_LAYERS, NUM_MHSA_LAYERS, NUM_FFN_LAYERS = 2, 3, 2

    root = jax.random.PRNGKey(0)
    k_param, k_node, k_edge = jax.random.split(root, 3)

    params = init_params(k_param, IN_FEATURES, HIDDEN, OUT_FEATURES,
                         NUM_EMB_LAYERS, NUM_MHSA_LAYERS, NUM_FFN_LAYERS)

    node_feats = jax.random.normal(k_node, (B, M, IN_FEATURES), dtype=jnp.float32)
    edge_feats = jax.random.normal(k_edge, (B, M, M), dtype=jnp.float32)
    # last two positions of every graph are padding
    masks = jnp.concatenate(
        [jnp.ones((B, M - 2), jnp.int32), jnp.zeros((B, 2), jnp.int32)], axis=1)

    out = graphsite_forward(params, node_feats, edge_feats, masks,
                            NUM_NEIGHBORS, HEADS)
    out = jax.block_until_ready(out)

    assert out.shape == (int(masks.sum()), OUT_FEATURES)
    assert bool(jnp.all(jnp.isfinite(out)))
    print("KERNEL_OK")
</pallas_src>

<mosaic_0001>
module attributes {stable_mosaic.version = 11 : i64} {
  func.func @kernel(%arg0: i32, %arg1: memref<1x8x16xf32, #tpu.memory_space<vmem>>, %arg2: memref<1x1x8xf32, #tpu.memory_space<vmem>>, %arg3: memref<1x8x8xbf16, #tpu.memory_space<vmem>>, %arg4: memref<1x32xf32, #tpu.memory_space<vmem>>, %arg5: memref<1x32xf32, #tpu.memory_space<vmem>>, %arg6: memref<1x32xf32, #tpu.memory_space<vmem>>, %arg7: memref<16x32xbf16, #tpu.memory_space<vmem>>, %arg8: memref<1x32xf32, #tpu.memory_space<vmem>>, %arg9: memref<32x32xbf16, #tpu.memory_space<vmem>>, %arg10: memref<3x1x32xf32, #tpu.memory_space<vmem>>, %arg11: memref<3x1x96xf32, #tpu.memory_space<vmem>>, %arg12: memref<6x1x32xf32, #tpu.memory_space<vmem>>, %arg13: memref<6x32x32xbf16, #tpu.memory_space<vmem>>, %arg14: memref<1x32xf32, #tpu.memory_space<vmem>>, %arg15: memref<1x32xf32, #tpu.memory_space<vmem>>, %arg16: memref<3x32x32xbf16, #tpu.memory_space<vmem>>, %arg17: memref<3x32x96xbf16, #tpu.memory_space<vmem>>, %arg18: memref<1x32xf32, #tpu.memory_space<vmem>>, %arg19: memref<1x128xf32, #tpu.memory_space<vmem>>, %arg20: memref<32x32xbf16, #tpu.memory_space<vmem>>, %arg21: memref<32x128xbf16, #tpu.memory_space<vmem>>, %arg22: memref<1x8x128xf32, #tpu.memory_space<vmem>>) attributes {dimension_semantics = [#tpu.dimension_semantics<parallel>], iteration_bounds = array<i64: 2>, scalar_prefetch = 0 : i64, scratch_operands = 0 : i64, tpu.core_type = #tpu.core_type<tc>, window_params = [{transform_indices = @transform_0, window_bounds = array<i64: 1, 8, 16>}, {transform_indices = @transform_1, window_bounds = array<i64: 1, 1, 8>}, {transform_indices = @transform_2, window_bounds = array<i64: 1, 8, 8>}, {pipeline_mode = #tpu.pipeline_mode<synchronous>, transform_indices = @transform_3, window_bounds = array<i64: 1, 32>}, {pipeline_mode = #tpu.pipeline_mode<synchronous>, transform_indices = @transform_4, window_bounds = array<i64: 1, 32>}, {pipeline_mode = #tpu.pipeline_mode<synchronous>, transform_indices = @transform_5, window_bounds = array<i64: 1, 32>}, {pipeline_mode = #tpu.pipeline_mode<synchronous>, transform_indices = @transform_6, window_bounds = array<i64: 16, 32>}, {pipeline_mode = #tpu.pipeline_mode<synchronous>, transform_indices = @transform_7, window_bounds = array<i64: 1, 32>}, {pipeline_mode = #tpu.pipeline_mode<synchronous>, transform_indices = @transform_8, window_bounds = array<i64: 32, 32>}, {pipeline_mode = #tpu.pipeline_mode<synchronous>, transform_indices = @transform_9, window_bounds = array<i64: 3, 1, 32>}, {pipeline_mode = #tpu.pipeline_mode<synchronous>, transform_indices = @transform_10, window_bounds = array<i64: 3, 1, 96>}, {pipeline_mode = #tpu.pipeline_mode<synchronous>, transform_indices = @transform_11, window_bounds = array<i64: 6, 1, 32>}, {pipeline_mode = #tpu.pipeline_mode<synchronous>, transform_indices = @transform_12, window_bounds = array<i64: 6, 32, 32>}, {pipeline_mode = #tpu.pipeline_mode<synchronous>, transform_indices = @transform_13, window_bounds = array<i64: 1, 32>}, {pipeline_mode = #tpu.pipeline_mode<synchronous>, transform_indices = @transform_14, window_bounds = array<i64: 1, 32>}, {pipeline_mode = #tpu.pipeline_mode<synchronous>, transform_indices = @transform_15, window_bounds = array<i64: 3, 32, 32>}, {pipeline_mode = #tpu.pipeline_mode<synchronous>, transform_indices = @transform_16, window_bounds = array<i64: 3, 32, 96>}, {pipeline_mode = #tpu.pipeline_mode<synchronous>, transform_indices = @transform_17, window_bounds = array<i64: 1, 32>}, {pipeline_mode = #tpu.pipeline_mode<synchronous>, transform_indices = @transform_18, window_bounds = array<i64: 1, 128>}, {pipeline_mode = #tpu.pipeline_mode<synchronous>, transform_indices = @transform_19, window_bounds = array<i64: 32, 32>}, {pipeline_mode = #tpu.pipeline_mode<synchronous>, transform_indices = @transform_20, window_bounds = array<i64: 32, 128>}, {transform_indices = @transform_21, window_bounds = array<i64: 1, 8, 128>}]} {
    %c0 = arith.constant 0 : index
    %c0_0 = arith.constant 0 : index
    %c0_1 = arith.constant 0 : index
    %0 = vector.load %arg1[%c0, %c0_0, %c0_1] : memref<1x8x16xf32, #tpu.memory_space<vmem>>, vector<1x8x16xf32>
    %1 = vector.shape_cast %0 : vector<1x8x16xf32> to vector<8x16xf32>
    %c0_2 = arith.constant 0 : index
    %c0_3 = arith.constant 0 : index
    %c0_4 = arith.constant 0 : index
    %2 = vector.load %arg2[%c0_2, %c0_3, %c0_4] : memref<1x1x8xf32, #tpu.memory_space<vmem>>, vector<1x1x8xf32>
    %3 = vector.shape_cast %2 : vector<1x1x8xf32> to vector<1x8xf32>
    %c0_5 = arith.constant 0 : index
    %c0_6 = arith.constant 0 : index
    %c0_7 = arith.constant 0 : index
    %4 = vector.load %arg3[%c0_5, %c0_6, %c0_7] : memref<1x8x8xbf16, #tpu.memory_space<vmem>>, vector<1x8x8xbf16>
    %5 = vector.shape_cast %4 : vector<1x8x8xbf16> to vector<8x8xbf16>
    %6 = arith.extf %5 : vector<8x8xbf16> to vector<8x8xf32>
    %cst = arith.constant dense<0.000000e+00> : vector<8xf32>
    %7 = vector.multi_reduction <add>, %1, %cst [1] : vector<8x16xf32> to vector<8xf32>
    %8 = vector.shape_cast %7 : vector<8xf32> to vector<8x1xf32>
    %cst_8 = arith.constant 1.600000e+01 : f32
    %9 = vector.broadcast %cst_8 : f32 to vector<8x1xf32>
    %10 = arith.divf %8, %9 : vector<8x1xf32>
    %11 = vector.broadcast %10 : vector<8x1xf32> to vector<8x16xf32>
    %12 = arith.subf %1, %11 : vector<8x16xf32>
    %13 = arith.mulf %12, %12 : vector<8x16xf32>
    %cst_9 = arith.constant dense<0.000000e+00> : vector<8xf32>
    %14 = vector.multi_reduction <add>, %13, %cst_9 [1] : vector<8x16xf32> to vector<8xf32>
    %15 = vector.shape_cast %14 : vector<8xf32> to vector<8x1xf32>
    %cst_10 = arith.constant 1.500000e+01 : f32
    %16 = vector.broadcast %cst_10 : f32 to vector<8x1xf32>
    %17 = arith.divf %15, %16 : vector<8x1xf32>
    %18 = math.sqrt %17 : vector<8x1xf32>
    %cst_11 = arith.constant 9.99999997E-7 : f32
    %19 = vector.broadcast %cst_11 : f32 to vector<8x1xf32>
    %20 = arith.addf %18, %19 : vector<8x1xf32>
    %21 = vector.broadcast %20 : vector<8x1xf32> to vector<8x16xf32>
    %22 = arith.divf %12, %21 : vector<8x16xf32>
    %c0_12 = arith.constant 0 : index
    %c0_13 = arith.constant 0 : index
    %23 = vector.load %arg7[%c0_12, %c0_13] : memref<16x32xbf16, #tpu.memory_space<vmem>>, vector<16x32xbf16>
    %c0_14 = arith.constant 0 : index
    %c0_15 = arith.constant 0 : index
    %24 = vector.load %arg6[%c0_14, %c0_15] : memref<1x32xf32, #tpu.memory_space<vmem>>, vector<1x32xf32>
    %25 = arith.truncf %22 : vector<8x16xf32> to vector<8x16xbf16>
    %cst_16 = arith.constant dense<0.000000e+00> : vector<8x32xf32>
    %26 = tpu.matmul %25, %23, %cst_16 {dimension_numbers = #tpu.dot_dimension_numbers<[1], [0], [0], [1], [0, 0, 1, 1], [], []>} : vector<8x16xbf16>, vector<16x32xbf16>, vector<8x32xf32> -> vector<8x32xf32>
    %27 = vector.broadcast %24 : vector<1x32xf32> to vector<8x32xf32>
    %28 = arith.addf %26, %27 : vector<8x32xf32>
    %cst_17 = arith.constant 2.000000e+01 : f32
    %29 = vector.broadcast %cst_17 : f32 to vector<8x32xf32>
    %30 = arith.minimumf %28, %29 : vector<8x32xf32>
    %31 = math.exp %30 : vector<8x32xf32>
    %cst_18 = arith.constant 2.000000e+00 : f32
    %32 = vector.broadcast %cst_18 : f32 to vector<8x32xf32>
    %33 = arith.addf %31, %32 : vector<8x32xf32>
    %34 = arith.mulf %31, %33 : vector<8x32xf32>
    %35 = arith.mulf %28, %34 : vector<8x32xf32>
    %cst_19 = arith.constant 2.000000e+00 : f32
    %36 = vector.broadcast %cst_19 : f32 to vector<8x32xf32>
    %37 = arith.addf %34, %36 : vector<8x32xf32>
    %38 = tpu.reciprocal %37 {approx = true} : vector<8x32xf32> -> vector<8x32xf32>
    %39 = arith.mulf %35, %38 : vector<8x32xf32>
    %cst_20 = arith.constant 2.000000e+01 : f32
    %40 = vector.broadcast %cst_20 : f32 to vector<8x32xf32>
    %41 = arith.cmpf ogt, %28, %40 : vector<8x32xf32>
    %42 = arith.select %41, %28, %39 : vector<8x32xi1>, vector<8x32xf32>
    %cst_21 = arith.constant dense<0.000000e+00> : vector<8xf32>
    %43 = vector.multi_reduction <add>, %42, %cst_21 [1] : vector<8x32xf32> to vector<8xf32>
    %44 = vector.shape_cast %43 : vector<8xf32> to vector<8x1xf32>
    %cst_22 = arith.constant 3.200000e+01 : f32
    %45 = vector.broadcast %cst_22 : f32 to vector<8x1xf32>
    %46 = arith.divf %44, %45 : vector<8x1xf32>
    %47 = vector.broadcast %46 : vector<8x1xf32> to vector<8x32xf32>
    %48 = arith.subf %42, %47 : vector<8x32xf32>
    %49 = arith.mulf %48, %48 : vector<8x32xf32>
    %cst_23 = arith.constant dense<0.000000e+00> : vector<8xf32>
    %50 = vector.multi_reduction <add>, %49, %cst_23 [1] : vector<8x32xf32> to vector<8xf32>
    %51 = vector.shape_cast %50 : vector<8xf32> to vector<8x1xf32>
    %cst_24 = arith.constant 3.100000e+01 : f32
    %52 = vector.broadcast %cst_24 : f32 to vector<8x1xf32>
    %53 = arith.divf %51, %52 : vector<8x1xf32>
    %54 = math.sqrt %53 : vector<8x1xf32>
    %cst_25 = arith.constant 9.99999997E-7 : f32
    %55 = vector.broadcast %cst_25 : f32 to vector<8x1xf32>
    %56 = arith.addf %54, %55 : vector<8x1xf32>
    %57 = vector.broadcast %56 : vector<8x1xf32> to vector<8x32xf32>
    %58 = arith.divf %48, %57 : vector<8x32xf32>
    %c0_26 = arith.constant 0 : index
    %c0_27 = arith.constant 0 : index
    %59 = vector.load %arg9[%c0_26, %c0_27] : memref<32x32xbf16, #tpu.memory_space<vmem>>, vector<32x32xbf16>
    %c0_28 = arith.constant 0 : index
    %c0_29 = arith.constant 0 : index
    %60 = vector.load %arg8[%c0_28, %c0_29] : memref<1x32xf32, #tpu.memory_space<vmem>>, vector<1x32xf32>
    %61 = arith.truncf %58 : vector<8x32xf32> to vector<8x32xbf16>
    %cst_30 = arith.constant dense<0.000000e+00> : vector<8x32xf32>
    %62 = tpu.matmul %61, %59, %cst_30 {dimension_numbers = #tpu.dot_dimension_numbers<[1], [0], [0], [1], [0, 0, 1, 1], [], []>} : vector<8x32xbf16>, vector<32x32xbf16>, vector<8x32xf32> -> vector<8x32xf32>
    %63 = vector.broadcast %60 : vector<1x32xf32> to vector<8x32xf32>
    %64 = arith.addf %62, %63 : vector<8x32xf32>
    %cst_31 = arith.constant 2.000000e+01 : f32
    %65 = vector.broadcast %cst_31 : f32 to vector<8x32xf32>
    %66 = arith.minimumf %64, %65 : vector<8x32xf32>
    %67 = math.exp %66 : vector<8x32xf32>
    %cst_32 = arith.constant 2.000000e+00 : f32
    %68 = vector.broadcast %cst_32 : f32 to vector<8x32xf32>
    %69 = arith.addf %67, %68 : vector<8x32xf32>
    %70 = arith.mulf %67, %69 : vector<8x32xf32>
    %71 = arith.mulf %64, %70 : vector<8x32xf32>
    %cst_33 = arith.constant 2.000000e+00 : f32
    %72 = vector.broadcast %cst_33 : f32 to vector<8x32xf32>
    %73 = arith.addf %70, %72 : vector<8x32xf32>
    %74 = tpu.reciprocal %73 {approx = true} : vector<8x32xf32> -> vector<8x32xf32>
    %75 = arith.mulf %71, %74 : vector<8x32xf32>
    %cst_34 = arith.constant 2.000000e+01 : f32
    %76 = vector.broadcast %cst_34 : f32 to vector<8x32xf32>
    %77 = arith.cmpf ogt, %64, %76 : vector<8x32xf32>
    %78 = arith.select %77, %64, %75 : vector<8x32xi1>, vector<8x32xf32>
    %c0_35 = arith.constant 0 : index
    %c0_36 = arith.constant 0 : index
    %79 = vector.load %arg5[%c0_35, %c0_36] : memref<1x32xf32, #tpu.memory_space<vmem>>, vector<1x32xf32>
    %c0_37 = arith.constant 0 : index
    %c0_38 = arith.constant 0 : index
    %80 = vector.load %arg4[%c0_37, %c0_38] : memref<1x32xf32, #tpu.memory_space<vmem>>, vector<1x32xf32>
    %cst_39 = arith.constant dense<0.000000e+00> : vector<8xf32>
    %81 = vector.multi_reduction <add>, %78, %cst_39 [1] : vector<8x32xf32> to vector<8xf32>
    %82 = vector.shape_cast %81 : vector<8xf32> to vector<8x1xf32>
    %cst_40 = arith.constant 3.200000e+01 : f32
    %83 = vector.broadcast %cst_40 : f32 to vector<8x1xf32>
    %84 = arith.divf %82, %83 : vector<8x1xf32>
    %85 = vector.broadcast %84 : vector<8x1xf32> to vector<8x32xf32>
    %86 = arith.subf %78, %85 : vector<8x32xf32>
    %87 = arith.mulf %86, %86 : vector<8x32xf32>
    %cst_41 = arith.constant dense<0.000000e+00> : vector<8xf32>
    %88 = vector.multi_reduction <add>, %87, %cst_41 [1] : vector<8x32xf32> to vector<8xf32>
    %89 = vector.shape_cast %88 : vector<8xf32> to vector<8x1xf32>
    %cst_42 = arith.constant 3.100000e+01 : f32
    %90 = vector.broadcast %cst_42 : f32 to vector<8x1xf32>
    %91 = arith.divf %89, %90 : vector<8x1xf32>
    %92 = math.sqrt %91 : vector<8x1xf32>
    %cst_43 = arith.constant 9.99999997E-7 : f32
    %93 = vector.broadcast %cst_43 : f32 to vector<8x1xf32>
    %94 = arith.addf %92, %93 : vector<8x1xf32>
    %95 = vector.broadcast %94 : vector<8x1xf32> to vector<8x32xf32>
    %96 = arith.divf %86, %95 : vector<8x32xf32>
    %97 = vector.broadcast %79 : vector<1x32xf32> to vector<8x32xf32>
    %98 = arith.mulf %97, %96 : vector<8x32xf32>
    %99 = vector.broadcast %80 : vector<1x32xf32> to vector<8x32xf32>
    %100 = arith.addf %98, %99 : vector<8x32xf32>
    %c0_44 = arith.constant 0 : index
    %c0_45 = arith.constant 0 : index
    %101 = vector.load %arg15[%c0_44, %c0_45] : memref<1x32xf32, #tpu.memory_space<vmem>>, vector<1x32xf32>
    %c0_46 = arith.constant 0 : index
    %c0_47 = arith.constant 0 : index
    %102 = vector.load %arg14[%c0_46, %c0_47] : memref<1x32xf32, #tpu.memory_space<vmem>>, vector<1x32xf32>
    %cst_48 = arith.constant dense<0.000000e+00> : vector<8xf32>
    %103 = vector.multi_reduction <add>, %100, %cst_48 [1] : vector<8x32xf32> to vector<8xf32>
    %104 = vector.shape_cast %103 : vector<8xf32> to vector<8x1xf32>
    %cst_49 = arith.constant 3.200000e+01 : f32
    %105 = vector.broadcast %cst_49 : f32 to vector<8x1xf32>
    %106 = arith.divf %104, %105 : vector<8x1xf32>
    %107 = vector.broadcast %106 : vector<8x1xf32> to vector<8x32xf32>
    %108 = arith.subf %100, %107 : vector<8x32xf32>
    %109 = arith.mulf %108, %108 : vector<8x32xf32>
    %cst_50 = arith.constant dense<0.000000e+00> : vector<8xf32>
    %110 = vector.multi_reduction <add>, %109, %cst_50 [1] : vector<8x32xf32> to vector<8xf32>
    %111 = vector.shape_cast %110 : vector<8xf32> to vector<8x1xf32>
    %cst_51 = arith.constant 3.100000e+01 : f32
    %112 = vector.broadcast %cst_51 : f32 to vector<8x1xf32>
    %113 = arith.divf %111, %112 : vector<8x1xf32>
    %114 = math.sqrt %113 : vector<8x1xf32>
    %cst_52 = arith.constant 9.99999997E-7 : f32
    %115 = vector.broadcast %cst_52 : f32 to vector<8x1xf32>
    %116 = arith.addf %114, %115 : vector<8x1xf32>
    %117 = vector.broadcast %116 : vector<8x1xf32> to vector<8x32xf32>
    %118 = arith.divf %108, %117 : vector<8x32xf32>
    %119 = vector.broadcast %101 : vector<1x32xf32> to vector<8x32xf32>
    %120 = arith.mulf %119, %118 : vector<8x32xf32>
    %121 = vector.broadcast %102 : vector<1x32xf32> to vector<8x32xf32>
    %122 = arith.addf %120, %121 : vector<8x32xf32>
    %c0_53 = arith.constant 0 : index
    %c0_54 = arith.constant 0 : index
    %c0_55 = arith.constant 0 : index
    %123 = vector.load %arg17[%c0_53, %c0_54, %c0_55] : memref<3x32x96xbf16, #tpu.memory_space<vmem>>, vector<1x32x96xbf16>
    %124 = vector.shape_cast %123 : vector<1x32x96xbf16> to vector<32x96xbf16>
    %c0_56 = arith.constant 0 : index
    %c0_57 = arith.constant 0 : index
    %c0_58 = arith.constant 0 : index
    %125 = vector.load %arg11[%c0_56, %c0_57, %c0_58] : memref<3x1x96xf32, #tpu.memory_space<vmem>>, vector<1x1x96xf32>
    %126 = vector.shape_cast %125 : vector<1x1x96xf32> to vector<1x96xf32>
    %127 = arith.truncf %122 : vector<8x32xf32> to vector<8x32xbf16>
    %cst_59 = arith.constant dense<0.000000e+00> : vector<8x96xf32>
    %128 = tpu.matmul %127, %124, %cst_59 {dimension_numbers = #tpu.dot_dimension_numbers<[1], [0], [0], [1], [0, 0, 1, 1], [], []>} : vector<8x32xbf16>, vector<32x96xbf16>, vector<8x96xf32> -> vector<8x96xf32>
    %129 = vector.broadcast %126 : vector<1x96xf32> to vector<8x96xf32>
    %130 = arith.addf %128, %129 : vector<8x96xf32>
    %131 = vector.extract_strided_slice %130 {offsets = [0, 0], sizes = [8, 8], strides = [1, 1]} : vector<8x96xf32> to vector<8x8xf32>
    %132 = vector.extract_strided_slice %130 {offsets = [0, 32], sizes = [8, 8], strides = [1, 1]} : vector<8x96xf32> to vector<8x8xf32>
    %133 = vector.extract_strided_slice %130 {offsets = [0, 64], sizes = [8, 8], strides = [1, 1]} : vector<8x96xf32> to vector<8x8xf32>
    %134 = arith.truncf %131 : vector<8x8xf32> to vector<8x8xbf16>
    %135 = arith.truncf %132 : vector<8x8xf32> to vector<8x8xbf16>
    %cst_60 = arith.constant dense<0.000000e+00> : vector<8x8xf32>
    %136 = tpu.matmul %134, %135, %cst_60 {dimension_numbers = #tpu.dot_dimension_numbers<[1], [1], [0], [0], [0, 0, 1, 0], [], []>} : vector<8x8xbf16>, vector<8x8xbf16>, vector<8x8xf32> -> vector<8x8xf32>
    %137 = vector.broadcast %3 : vector<1x8xf32> to vector<8x8xf32>
    %138 = arith.addf %136, %137 : vector<8x8xf32>
    %cst_61 = arith.constant dense<0xFF800000> : vector<8xf32>
    %139 = vector.multi_reduction <maximumf>, %138, %cst_61 [1] : vector<8x8xf32> to vector<8xf32>
    %140 = vector.shape_cast %139 : vector<8xf32> to vector<8x1xf32>
    %141 = vector.broadcast %140 : vector<8x1xf32> to vector<8x8xf32>
    %142 = arith.subf %138, %141 : vector<8x8xf32>
    %143 = math.exp %142 : vector<8x8xf32>
    %cst_62 = arith.constant dense<0.000000e+00> : vector<8xf32>
    %144 = vector.multi_reduction <add>, %143, %cst_62 [1] : vector<8x8xf32> to vector<8xf32>
    %145 = vector.shape_cast %144 : vector<8xf32> to vector<8x1xf32>
    %146 = arith.mulf %143, %6 : vector<8x8xf32>
    %cst_63 = arith.constant dense<0.000000e+00> : vector<8xf32>
    %147 = vector.multi_reduction <add>, %146, %cst_63 [1] : vector<8x8xf32> to vector<8xf32>
    %148 = vector.shape_cast %147 : vector<8xf32> to vector<8x1xf32>
    %cst_64 = arith.constant 9.99999974E-6 : f32
    %149 = vector.broadcast %cst_64 : f32 to vector<8x1xf32>
    %150 = arith.mulf %149, %145 : vector<8x1xf32>
    %151 = arith.addf %148, %150 : vector<8x1xf32>
    %152 = tpu.reciprocal %151 {approx = true} : vector<8x1xf32> -> vector<8x1xf32>
    %153 = vector.broadcast %152 : vector<8x1xf32> to vector<8x8xf32>
    %154 = arith.mulf %146, %153 : vector<8x8xf32>
    %155 = arith.truncf %154 : vector<8x8xf32> to vector<8x8xbf16>
    %156 = arith.truncf %133 : vector<8x8xf32> to vector<8x8xbf16>
    %cst_65 = arith.constant dense<0.000000e+00> : vector<8x8xf32>
    %157 = tpu.matmul %155, %156, %cst_65 {dimension_numbers = #tpu.dot_dimension_numbers<[1], [0], [0], [1], [0, 0, 1, 1], [], []>} : vector<8x8xbf16>, vector<8x8xbf16>, vector<8x8xf32> -> vector<8x8xf32>
    %158 = vector.extract_strided_slice %130 {offsets = [0, 8], sizes = [8, 8], strides = [1, 1]} : vector<8x96xf32> to vector<8x8xf32>
    %159 = vector.extract_strided_slice %130 {offsets = [0, 40], sizes = [8, 8], strides = [1, 1]} : vector<8x96xf32> to vector<8x8xf32>
    %160 = vector.extract_strided_slice %130 {offsets = [0, 72], sizes = [8, 8], strides = [1, 1]} : vector<8x96xf32> to vector<8x8xf32>
    %161 = arith.truncf %158 : vector<8x8xf32> to vector<8x8xbf16>
    %162 = arith.truncf %159 : vector<8x8xf32> to vector<8x8xbf16>
    %cst_66 = arith.constant dense<0.000000e+00> : vector<8x8xf32>
    %163 = tpu.matmul %161, %162, %cst_66 {dimension_numbers = #tpu.dot_dimension_numbers<[1], [1], [0], [0], [0, 0, 1, 0], [], []>} : vector<8x8xbf16>, vector<8x8xbf16>, vector<8x8xf32> -> vector<8x8xf32>
    %164 = vector.broadcast %3 : vector<1x8xf32> to vector<8x8xf32>
    %165 = arith.addf %163, %164 : vector<8x8xf32>
    %cst_67 = arith.constant dense<0xFF800000> : vector<8xf32>
    %166 = vector.multi_reduction <maximumf>, %165, %cst_67 [1] : vector<8x8xf32> to vector<8xf32>
    %167 = vector.shape_cast %166 : vector<8xf32> to vector<8x1xf32>
    %168 = vector.broadcast %167 : vector<8x1xf32> to vector<8x8xf32>
    %169 = arith.subf %165, %168 : vector<8x8xf32>
    %170 = math.exp %169 : vector<8x8xf32>
    %cst_68 = arith.constant dense<0.000000e+00> : vector<8xf32>
    %171 = vector.multi_reduction <add>, %170, %cst_68 [1] : vector<8x8xf32> to vector<8xf32>
    %172 = vector.shape_cast %171 : vector<8xf32> to vector<8x1xf32>
    %173 = arith.mulf %170, %6 : vector<8x8xf32>
    %cst_69 = arith.constant dense<0.000000e+00> : vector<8xf32>
    %174 = vector.multi_reduction <add>, %173, %cst_69 [1] : vector<8x8xf32> to vector<8xf32>
    %175 = vector.shape_cast %174 : vector<8xf32> to vector<8x1xf32>
    %cst_70 = arith.constant 9.99999974E-6 : f32
    %176 = vector.broadcast %cst_70 : f32 to vector<8x1xf32>
    %177 = arith.mulf %176, %172 : vector<8x1xf32>
    %178 = arith.addf %175, %177 : vector<8x1xf32>
    %179 = tpu.reciprocal %178 {approx = true} : vector<8x1xf32> -> vector<8x1xf32>
    %180 = vector.broadcast %179 : vector<8x1xf32> to vector<8x8xf32>
    %181 = arith.mulf %173, %180 : vector<8x8xf32>
    %182 = arith.truncf %181 : vector<8x8xf32> to vector<8x8xbf16>
    %183 = arith.truncf %160 : vector<8x8xf32> to vector<8x8xbf16>
    %cst_71 = arith.constant dense<0.000000e+00> : vector<8x8xf32>
    %184 = tpu.matmul %182, %183, %cst_71 {dimension_numbers = #tpu.dot_dimension_numbers<[1], [0], [0], [1], [0, 0, 1, 1], [], []>} : vector<8x8xbf16>, vector<8x8xbf16>, vector<8x8xf32> -> vector<8x8xf32>
    %185 = vector.extract_strided_slice %130 {offsets = [0, 16], sizes = [8, 8], strides = [1, 1]} : vector<8x96xf32> to vector<8x8xf32>
    %186 = vector.extract_strided_slice %130 {offsets = [0, 48], sizes = [8, 8], strides = [1, 1]} : vector<8x96xf32> to vector<8x8xf32>
    %187 = vector.extract_strided_slice %130 {offsets = [0, 80], sizes = [8, 8], strides = [1, 1]} : vector<8x96xf32> to vector<8x8xf32>
    %188 = arith.truncf %185 : vector<8x8xf32> to vector<8x8xbf16>
    %189 = arith.truncf %186 : vector<8x8xf32> to vector<8x8xbf16>
    %cst_72 = arith.constant dense<0.000000e+00> : vector<8x8xf32>
    %190 = tpu.matmul %188, %189, %cst_72 {dimension_numbers = #tpu.dot_dimension_numbers<[1], [1], [0], [0], [0, 0, 1, 0], [], []>} : vector<8x8xbf16>, vector<8x8xbf16>, vector<8x8xf32> -> vector<8x8xf32>
    %191 = vector.broadcast %3 : vector<1x8xf32> to vector<8x8xf32>
    %192 = arith.addf %190, %191 : vector<8x8xf32>
    %cst_73 = arith.constant dense<0xFF800000> : vector<8xf32>
    %193 = vector.multi_reduction <maximumf>, %192, %cst_73 [1] : vector<8x8xf32> to vector<8xf32>
    %194 = vector.shape_cast %193 : vector<8xf32> to vector<8x1xf32>
    %195 = vector.broadcast %194 : vector<8x1xf32> to vector<8x8xf32>
    %196 = arith.subf %192, %195 : vector<8x8xf32>
    %197 = math.exp %196 : vector<8x8xf32>
    %cst_74 = arith.constant dense<0.000000e+00> : vector<8xf32>
    %198 = vector.multi_reduction <add>, %197, %cst_74 [1] : vector<8x8xf32> to vector<8xf32>
    %199 = vector.shape_cast %198 : vector<8xf32> to vector<8x1xf32>
    %200 = arith.mulf %197, %6 : vector<8x8xf32>
    %cst_75 = arith.constant dense<0.000000e+00> : vector<8xf32>
    %201 = vector.multi_reduction <add>, %200, %cst_75 [1] : vector<8x8xf32> to vector<8xf32>
    %202 = vector.shape_cast %201 : vector<8xf32> to vector<8x1xf32>
    %cst_76 = arith.constant 9.99999974E-6 : f32
    %203 = vector.broadcast %cst_76 : f32 to vector<8x1xf32>
    %204 = arith.mulf %203, %199 : vector<8x1xf32>
    %205 = arith.addf %202, %204 : vector<8x1xf32>
    %206 = tpu.reciprocal %205 {approx = true} : vector<8x1xf32> -> vector<8x1xf32>
    %207 = vector.broadcast %206 : vector<8x1xf32> to vector<8x8xf32>
    %208 = arith.mulf %200, %207 : vector<8x8xf32>
    %209 = arith.truncf %208 : vector<8x8xf32> to vector<8x8xbf16>
    %210 = arith.truncf %187 : vector<8x8xf32> to vector<8x8xbf16>
    %cst_77 = arith.constant dense<0.000000e+00> : vector<8x8xf32>
    %211 = tpu.matmul %209, %210, %cst_77 {dimension_numbers = #tpu.dot_dimension_numbers<[1], [0], [0], [1], [0, 0, 1, 1], [], []>} : vector<8x8xbf16>, vector<8x8xbf16>, vector<8x8xf32> -> vector<8x8xf32>
    %212 = vector.extract_strided_slice %130 {offsets = [0, 24], sizes = [8, 8], strides = [1, 1]} : vector<8x96xf32> to vector<8x8xf32>
    %213 = vector.extract_strided_slice %130 {offsets = [0, 56], sizes = [8, 8], strides = [1, 1]} : vector<8x96xf32> to vector<8x8xf32>
    %214 = vector.extract_strided_slice %130 {offsets = [0, 88], sizes = [8, 8], strides = [1, 1]} : vector<8x96xf32> to vector<8x8xf32>
    %215 = arith.truncf %212 : vector<8x8xf32> to vector<8x8xbf16>
    %216 = arith.truncf %213 : vector<8x8xf32> to vector<8x8xbf16>
    %cst_78 = arith.constant dense<0.000000e+00> : vector<8x8xf32>
    %217 = tpu.matmul %215, %216, %cst_78 {dimension_numbers = #tpu.dot_dimension_numbers<[1], [1], [0], [0], [0, 0, 1, 0], [], []>} : vector<8x8xbf16>, vector<8x8xbf16>, vector<8x8xf32> -> vector<8x8xf32>
    %218 = vector.broadcast %3 : vector<1x8xf32> to vector<8x8xf32>
    %219 = arith.addf %217, %218 : vector<8x8xf32>
    %cst_79 = arith.constant dense<0xFF800000> : vector<8xf32>
    %220 = vector.multi_reduction <maximumf>, %219, %cst_79 [1] : vector<8x8xf32> to vector<8xf32>
    %221 = vector.shape_cast %220 : vector<8xf32> to vector<8x1xf32>
    %222 = vector.broadcast %221 : vector<8x1xf32> to vector<8x8xf32>
    %223 = arith.subf %219, %222 : vector<8x8xf32>
    %224 = math.exp %223 : vector<8x8xf32>
    %cst_80 = arith.constant dense<0.000000e+00> : vector<8xf32>
    %225 = vector.multi_reduction <add>, %224, %cst_80 [1] : vector<8x8xf32> to vector<8xf32>
    %226 = vector.shape_cast %225 : vector<8xf32> to vector<8x1xf32>
    %227 = arith.mulf %224, %6 : vector<8x8xf32>
    %cst_81 = arith.constant dense<0.000000e+00> : vector<8xf32>
    %228 = vector.multi_reduction <add>, %227, %cst_81 [1] : vector<8x8xf32> to vector<8xf32>
    %229 = vector.shape_cast %228 : vector<8xf32> to vector<8x1xf32>
    %cst_82 = arith.constant 9.99999974E-6 : f32
    %230 = vector.broadcast %cst_82 : f32 to vector<8x1xf32>
    %231 = arith.mulf %230, %226 : vector<8x1xf32>
    %232 = arith.addf %229, %231 : vector<8x1xf32>
    %233 = tpu.reciprocal %232 {approx = true} : vector<8x1xf32> -> vector<8x1xf32>
    %234 = vector.broadcast %233 : vector<8x1xf32> to vector<8x8xf32>
    %235 = arith.mulf %227, %234 : vector<8x8xf32>
    %236 = arith.truncf %235 : vector<8x8xf32> to vector<8x8xbf16>
    %237 = arith.truncf %214 : vector<8x8xf32> to vector<8x8xbf16>
    %cst_83 = arith.constant dense<0.000000e+00> : vector<8x8xf32>
    %238 = tpu.matmul %236, %237, %cst_83 {dimension_numbers = #tpu.dot_dimension_numbers<[1], [0], [0], [1], [0, 0, 1, 1], [], []>} : vector<8x8xbf16>, vector<8x8xbf16>, vector<8x8xf32> -> vector<8x8xf32>
    %239 = tpu.concatenate %157, %184, %211, %238 in 1 : vector<8x8xf32>, vector<8x8xf32>, vector<8x8xf32>, vector<8x8xf32> -> vector<8x32xf32>
    %c0_84 = arith.constant 0 : index
    %c0_85 = arith.constant 0 : index
    %c0_86 = arith.constant 0 : index
    %240 = vector.load %arg16[%c0_84, %c0_85, %c0_86] : memref<3x32x32xbf16, #tpu.memory_space<vmem>>, vector<1x32x32xbf16>
    %241 = vector.shape_cast %240 : vector<1x32x32xbf16> to vector<32x32xbf16>
    %c0_87 = arith.constant 0 : index
    %c0_88 = arith.constant 0 : index
    %c0_89 = arith.constant 0 : index
    %242 = vector.load %arg10[%c0_87, %c0_88, %c0_89] : memref<3x1x32xf32, #tpu.memory_space<vmem>>, vector<1x1x32xf32>
    %243 = vector.shape_cast %242 : vector<1x1x32xf32> to vector<1x32xf32>
    %244 = arith.truncf %239 : vector<8x32xf32> to vector<8x32xbf16>
    %cst_90 = arith.constant dense<0.000000e+00> : vector<8x32xf32>
    %245 = tpu.matmul %244, %241, %cst_90 {dimension_numbers = #tpu.dot_dimension_numbers<[1], [0], [0], [1], [0, 0, 1, 1], [], []>} : vector<8x32xbf16>, vector<32x32xbf16>, vector<8x32xf32> -> vector<8x32xf32>
    %246 = vector.broadcast %243 : vector<1x32xf32> to vector<8x32xf32>
    %247 = arith.addf %245, %246 : vector<8x32xf32>
    %cst_91 = arith.constant 2.000000e+01 : f32
    %248 = vector.broadcast %cst_91 : f32 to vector<8x32xf32>
    %249 = arith.minimumf %247, %248 : vector<8x32xf32>
    %250 = math.exp %249 : vector<8x32xf32>
    %cst_92 = arith.constant 2.000000e+00 : f32
    %251 = vector.broadcast %cst_92 : f32 to vector<8x32xf32>
    %252 = arith.addf %250, %251 : vector<8x32xf32>
    %253 = arith.mulf %250, %252 : vector<8x32xf32>
    %254 = arith.mulf %247, %253 : vector<8x32xf32>
    %cst_93 = arith.constant 2.000000e+00 : f32
    %255 = vector.broadcast %cst_93 : f32 to vector<8x32xf32>
    %256 = arith.addf %253, %255 : vector<8x32xf32>
    %257 = tpu.reciprocal %256 {approx = true} : vector<8x32xf32> -> vector<8x32xf32>
    %258 = arith.mulf %254, %257 : vector<8x32xf32>
    %cst_94 = arith.constant 2.000000e+01 : f32
    %259 = vector.broadcast %cst_94 : f32 to vector<8x32xf32>
    %260 = arith.cmpf ogt, %247, %259 : vector<8x32xf32>
    %261 = arith.select %260, %247, %258 : vector<8x32xi1>, vector<8x32xf32>
    %262 = arith.addf %122, %261 : vector<8x32xf32>
    %cst_95 = arith.constant dense<0.000000e+00> : vector<8xf32>
    %263 = vector.multi_reduction <add>, %262, %cst_95 [1] : vector<8x32xf32> to vector<8xf32>
    %264 = vector.shape_cast %263 : vector<8xf32> to vector<8x1xf32>
    %cst_96 = arith.constant 3.200000e+01 : f32
    %265 = vector.broadcast %cst_96 : f32 to vector<8x1xf32>
    %266 = arith.divf %264, %265 : vector<8x1xf32>
    %267 = vector.broadcast %266 : vector<8x1xf32> to vector<8x32xf32>
    %268 = arith.subf %262, %267 : vector<8x32xf32>
    %269 = arith.mulf %268, %268 : vector<8x32xf32>
    %cst_97 = arith.constant dense<0.000000e+00> : vector<8xf32>
    %270 = vector.multi_reduction <add>, %269, %cst_97 [1] : vector<8x32xf32> to vector<8xf32>
    %271 = vector.shape_cast %270 : vector<8xf32> to vector<8x1xf32>
    %cst_98 = arith.constant 3.100000e+01 : f32
    %272 = vector.broadcast %cst_98 : f32 to vector<8x1xf32>
    %273 = arith.divf %271, %272 : vector<8x1xf32>
    %274 = math.sqrt %273 : vector<8x1xf32>
    %cst_99 = arith.constant 9.99999997E-7 : f32
    %275 = vector.broadcast %cst_99 : f32 to vector<8x1xf32>
    %276 = arith.addf %274, %275 : vector<8x1xf32>
    %277 = vector.broadcast %276 : vector<8x1xf32> to vector<8x32xf32>
    %278 = arith.divf %268, %277 : vector<8x32xf32>
    %279 = vector.broadcast %101 : vector<1x32xf32> to vector<8x32xf32>
    %280 = arith.mulf %279, %278 : vector<8x32xf32>
    %281 = vector.broadcast %102 : vector<1x32xf32> to vector<8x32xf32>
    %282 = arith.addf %280, %281 : vector<8x32xf32>
    %c0_100 = arith.constant 0 : index
    %c0_101 = arith.constant 0 : index
    %c0_102 = arith.constant 0 : index
    %283 = vector.load %arg13[%c0_100, %c0_101, %c0_102] : memref<6x32x32xbf16, #tpu.memory_space<vmem>>, vector<1x32x32xbf16>
    %284 = vector.shape_cast %283 : vector<1x32x32xbf16> to vector<32x32xbf16>
    %c0_103 = arith.constant 0 : index
    %c0_104 = arith.constant 0 : index
    %c0_105 = arith.constant 0 : index
    %285 = vector.load %arg12[%c0_103, %c0_104, %c0_105] : memref<6x1x32xf32, #tpu.memory_space<vmem>>, vector<1x1x32xf32>
    %286 = vector.shape_cast %285 : vector<1x1x32xf32> to vector<1x32xf32>
    %287 = arith.truncf %282 : vector<8x32xf32> to vector<8x32xbf16>
    %cst_106 = arith.constant dense<0.000000e+00> : vector<8x32xf32>
    %288 = tpu.matmul %287, %284, %cst_106 {dimension_numbers = #tpu.dot_dimension_numbers<[1], [0], [0], [1], [0, 0, 1, 1], [], []>} : vector<8x32xbf16>, vector<32x32xbf16>, vector<8x32xf32> -> vector<8x32xf32>
    %289 = vector.broadcast %286 : vector<1x32xf32> to vector<8x32xf32>
    %290 = arith.addf %288, %289 : vector<8x32xf32>
    %cst_107 = arith.constant 2.000000e+01 : f32
    %291 = vector.broadcast %cst_107 : f32 to vector<8x32xf32>
    %292 = arith.minimumf %290, %291 : vector<8x32xf32>
    %293 = math.exp %292 : vector<8x32xf32>
    %cst_108 = arith.constant 2.000000e+00 : f32
    %294 = vector.broadcast %cst_108 : f32 to vector<8x32xf32>
    %295 = arith.addf %293, %294 : vector<8x32xf32>
    %296 = arith.mulf %293, %295 : vector<8x32xf32>
    %297 = arith.mulf %290, %296 : vector<8x32xf32>
    %cst_109 = arith.constant 2.000000e+00 : f32
    %298 = vector.broadcast %cst_109 : f32 to vector<8x32xf32>
    %299 = arith.addf %296, %298 : vector<8x32xf32>
    %300 = tpu.reciprocal %299 {approx = true} : vector<8x32xf32> -> vector<8x32xf32>
    %301 = arith.mulf %297, %300 : vector<8x32xf32>
    %cst_110 = arith.constant 2.000000e+01 : f32
    %302 = vector.broadcast %cst_110 : f32 to vector<8x32xf32>
    %303 = arith.cmpf ogt, %290, %302 : vector<8x32xf32>
    %304 = arith.select %303, %290, %301 : vector<8x32xi1>, vector<8x32xf32>
    %c1 = arith.constant 1 : index
    %c0_111 = arith.constant 0 : index
    %c0_112 = arith.constant 0 : index
    %305 = vector.load %arg13[%c1, %c0_111, %c0_112] : memref<6x32x32xbf16, #tpu.memory_space<vmem>>, vector<1x32x32xbf16>
    %306 = vector.shape_cast %305 : vector<1x32x32xbf16> to vector<32x32xbf16>
    %c1_113 = arith.constant 1 : index
    %c0_114 = arith.constant 0 : index
    %c0_115 = arith.constant 0 : index
    %307 = vector.load %arg12[%c1_113, %c0_114, %c0_115] : memref<6x1x32xf32, #tpu.memory_space<vmem>>, vector<1x1x32xf32>
    %308 = vector.shape_cast %307 : vector<1x1x32xf32> to vector<1x32xf32>
    %309 = arith.truncf %304 : vector<8x32xf32> to vector<8x32xbf16>
    %cst_116 = arith.constant dense<0.000000e+00> : vector<8x32xf32>
    %310 = tpu.matmul %309, %306, %cst_116 {dimension_numbers = #tpu.dot_dimension_numbers<[1], [0], [0], [1], [0, 0, 1, 1], [], []>} : vector<8x32xbf16>, vector<32x32xbf16>, vector<8x32xf32> -> vector<8x32xf32>
    %311 = vector.broadcast %308 : vector<1x32xf32> to vector<8x32xf32>
    %312 = arith.addf %310, %311 : vector<8x32xf32>
    %cst_117 = arith.constant 2.000000e+01 : f32
    %313 = vector.broadcast %cst_117 : f32 to vector<8x32xf32>
    %314 = arith.minimumf %312, %313 : vector<8x32xf32>
    %315 = math.exp %314 : vector<8x32xf32>
    %cst_118 = arith.constant 2.000000e+00 : f32
    %316 = vector.broadcast %cst_118 : f32 to vector<8x32xf32>
    %317 = arith.addf %315, %316 : vector<8x32xf32>
    %318 = arith.mulf %315, %317 : vector<8x32xf32>
    %319 = arith.mulf %312, %318 : vector<8x32xf32>
    %cst_119 = arith.constant 2.000000e+00 : f32
    %320 = vector.broadcast %cst_119 : f32 to vector<8x32xf32>
    %321 = arith.addf %318, %320 : vector<8x32xf32>
    %322 = tpu.reciprocal %321 {approx = true} : vector<8x32xf32> -> vector<8x32xf32>
    %323 = arith.mulf %319, %322 : vector<8x32xf32>
    %cst_120 = arith.constant 2.000000e+01 : f32
    %324 = vector.broadcast %cst_120 : f32 to vector<8x32xf32>
    %325 = arith.cmpf ogt, %312, %324 : vector<8x32xf32>
    %326 = arith.select %325, %312, %323 : vector<8x32xi1>, vector<8x32xf32>
    %327 = arith.addf %282, %326 : vector<8x32xf32>
    %cst_121 = arith.constant dense<0.000000e+00> : vector<8xf32>
    %328 = vector.multi_reduction <add>, %327, %cst_121 [1] : vector<8x32xf32> to vector<8xf32>
    %329 = vector.shape_cast %328 : vector<8xf32> to vector<8x1xf32>
    %cst_122 = arith.constant 3.200000e+01 : f32
    %330 = vector.broadcast %cst_122 : f32 to vector<8x1xf32>
    %331 = arith.divf %329, %330 : vector<8x1xf32>
    %332 = vector.broadcast %331 : vector<8x1xf32> to vector<8x32xf32>
    %333 = arith.subf %327, %332 : vector<8x32xf32>
    %334 = arith.mulf %333, %333 : vector<8x32xf32>
    %cst_123 = arith.constant dense<0.000000e+00> : vector<8xf32>
    %335 = vector.multi_reduction <add>, %334, %cst_123 [1] : vector<8x32xf32> to vector<8xf32>
    %336 = vector.shape_cast %335 : vector<8xf32> to vector<8x1xf32>
    %cst_124 = arith.constant 3.100000e+01 : f32
    %337 = vector.broadcast %cst_124 : f32 to vector<8x1xf32>
    %338 = arith.divf %336, %337 : vector<8x1xf32>
    %339 = math.sqrt %338 : vector<8x1xf32>
    %cst_125 = arith.constant 9.99999997E-7 : f32
    %340 = vector.broadcast %cst_125 : f32 to vector<8x1xf32>
    %341 = arith.addf %339, %340 : vector<8x1xf32>
    %342 = vector.broadcast %341 : vector<8x1xf32> to vector<8x32xf32>
    %343 = arith.divf %333, %342 : vector<8x32xf32>
    %344 = vector.broadcast %101 : vector<1x32xf32> to vector<8x32xf32>
    %345 = arith.mulf %344, %343 : vector<8x32xf32>
    %346 = vector.broadcast %102 : vector<1x32xf32> to vector<8x32xf32>
    %347 = arith.addf %345, %346 : vector<8x32xf32>
    %c1_126 = arith.constant 1 : index
    %c0_127 = arith.constant 0 : index
    %c0_128 = arith.constant 0 : index
    %348 = vector.load %arg17[%c1_126, %c0_127, %c0_128] : memref<3x32x96xbf16, #tpu.memory_space<vmem>>, vector<1x32x96xbf16>
    %349 = vector.shape_cast %348 : vector<1x32x96xbf16> to vector<32x96xbf16>
    %c1_129 = arith.constant 1 : index
    %c0_130 = arith.constant 0 : index
    %c0_131 = arith.constant 0 : index
    %350 = vector.load %arg11[%c1_129, %c0_130, %c0_131] : memref<3x1x96xf32, #tpu.memory_space<vmem>>, vector<1x1x96xf32>
    %351 = vector.shape_cast %350 : vector<1x1x96xf32> to vector<1x96xf32>
    %352 = arith.truncf %347 : vector<8x32xf32> to vector<8x32xbf16>
    %cst_132 = arith.constant dense<0.000000e+00> : vector<8x96xf32>
    %353 = tpu.matmul %352, %349, %cst_132 {dimension_numbers = #tpu.dot_dimension_numbers<[1], [0], [0], [1], [0, 0, 1, 1], [], []>} : vector<8x32xbf16>, vector<32x96xbf16>, vector<8x96xf32> -> vector<8x96xf32>
    %354 = vector.broadcast %351 : vector<1x96xf32> to vector<8x96xf32>
    %355 = arith.addf %353, %354 : vector<8x96xf32>
    %356 = vector.extract_strided_slice %355 {offsets = [0, 0], sizes = [8, 8], strides = [1, 1]} : vector<8x96xf32> to vector<8x8xf32>
    %357 = vector.extract_strided_slice %355 {offsets = [0, 32], sizes = [8, 8], strides = [1, 1]} : vector<8x96xf32> to vector<8x8xf32>
    %358 = vector.extract_strided_slice %355 {offsets = [0, 64], sizes = [8, 8], strides = [1, 1]} : vector<8x96xf32> to vector<8x8xf32>
    %359 = arith.truncf %356 : vector<8x8xf32> to vector<8x8xbf16>
    %360 = arith.truncf %357 : vector<8x8xf32> to vector<8x8xbf16>
    %cst_133 = arith.constant dense<0.000000e+00> : vector<8x8xf32>
    %361 = tpu.matmul %359, %360, %cst_133 {dimension_numbers = #tpu.dot_dimension_numbers<[1], [1], [0], [0], [0, 0, 1, 0], [], []>} : vector<8x8xbf16>, vector<8x8xbf16>, vector<8x8xf32> -> vector<8x8xf32>
    %362 = vector.broadcast %3 : vector<1x8xf32> to vector<8x8xf32>
    %363 = arith.addf %361, %362 : vector<8x8xf32>
    %cst_134 = arith.constant dense<0xFF800000> : vector<8xf32>
    %364 = vector.multi_reduction <maximumf>, %363, %cst_134 [1] : vector<8x8xf32> to vector<8xf32>
    %365 = vector.shape_cast %364 : vector<8xf32> to vector<8x1xf32>
    %366 = vector.broadcast %365 : vector<8x1xf32> to vector<8x8xf32>
    %367 = arith.subf %363, %366 : vector<8x8xf32>
    %368 = math.exp %367 : vector<8x8xf32>
    %cst_135 = arith.constant dense<0.000000e+00> : vector<8xf32>
    %369 = vector.multi_reduction <add>, %368, %cst_135 [1] : vector<8x8xf32> to vector<8xf32>
    %370 = vector.shape_cast %369 : vector<8xf32> to vector<8x1xf32>
    %371 = arith.mulf %368, %6 : vector<8x8xf32>
    %cst_136 = arith.constant dense<0.000000e+00> : vector<8xf32>
    %372 = vector.multi_reduction <add>, %371, %cst_136 [1] : vector<8x8xf32> to vector<8xf32>
    %373 = vector.shape_cast %372 : vector<8xf32> to vector<8x1xf32>
    %cst_137 = arith.constant 9.99999974E-6 : f32
    %374 = vector.broadcast %cst_137 : f32 to vector<8x1xf32>
    %375 = arith.mulf %374, %370 : vector<8x1xf32>
    %376 = arith.addf %373, %375 : vector<8x1xf32>
    %377 = tpu.reciprocal %376 {approx = true} : vector<8x1xf32> -> vector<8x1xf32>
    %378 = vector.broadcast %377 : vector<8x1xf32> to vector<8x8xf32>
    %379 = arith.mulf %371, %378 : vector<8x8xf32>
    %380 = arith.truncf %379 : vector<8x8xf32> to vector<8x8xbf16>
    %381 = arith.truncf %358 : vector<8x8xf32> to vector<8x8xbf16>
    %cst_138 = arith.constant dense<0.000000e+00> : vector<8x8xf32>
    %382 = tpu.matmul %380, %381, %cst_138 {dimension_numbers = #tpu.dot_dimension_numbers<[1], [0], [0], [1], [0, 0, 1, 1], [], []>} : vector<8x8xbf16>, vector<8x8xbf16>, vector<8x8xf32> -> vector<8x8xf32>
    %383 = vector.extract_strided_slice %355 {offsets = [0, 8], sizes = [8, 8], strides = [1, 1]} : vector<8x96xf32> to vector<8x8xf32>
    %384 = vector.extract_strided_slice %355 {offsets = [0, 40], sizes = [8, 8], strides = [1, 1]} : vector<8x96xf32> to vector<8x8xf32>
    %385 = vector.extract_strided_slice %355 {offsets = [0, 72], sizes = [8, 8], strides = [1, 1]} : vector<8x96xf32> to vector<8x8xf32>
    %386 = arith.truncf %383 : vector<8x8xf32> to vector<8x8xbf16>
    %387 = arith.truncf %384 : vector<8x8xf32> to vector<8x8xbf16>
    %cst_139 = arith.constant dense<0.000000e+00> : vector<8x8xf32>
    %388 = tpu.matmul %386, %387, %cst_139 {dimension_numbers = #tpu.dot_dimension_numbers<[1], [1], [0], [0], [0, 0, 1, 0], [], []>} : vector<8x8xbf16>, vector<8x8xbf16>, vector<8x8xf32> -> vector<8x8xf32>
    %389 = vector.broadcast %3 : vector<1x8xf32> to vector<8x8xf32>
    %390 = arith.addf %388, %389 : vector<8x8xf32>
    %cst_140 = arith.constant dense<0xFF800000> : vector<8xf32>
    %391 = vector.multi_reduction <maximumf>, %390, %cst_140 [1] : vector<8x8xf32> to vector<8xf32>
    %392 = vector.shape_cast %391 : vector<8xf32> to vector<8x1xf32>
    %393 = vector.broadcast %392 : vector<8x1xf32> to vector<8x8xf32>
    %394 = arith.subf %390, %393 : vector<8x8xf32>
    %395 = math.exp %394 : vector<8x8xf32>
    %cst_141 = arith.constant dense<0.000000e+00> : vector<8xf32>
    %396 = vector.multi_reduction <add>, %395, %cst_141 [1] : vector<8x8xf32> to vector<8xf32>
    %397 = vector.shape_cast %396 : vector<8xf32> to vector<8x1xf32>
    %398 = arith.mulf %395, %6 : vector<8x8xf32>
    %cst_142 = arith.constant dense<0.000000e+00> : vector<8xf32>
    %399 = vector.multi_reduction <add>, %398, %cst_142 [1] : vector<8x8xf32> to vector<8xf32>
    %400 = vector.shape_cast %399 : vector<8xf32> to vector<8x1xf32>
    %cst_143 = arith.constant 9.99999974E-6 : f32
    %401 = vector.broadcast %cst_143 : f32 to vector<8x1xf32>
    %402 = arith.mulf %401, %397 : vector<8x1xf32>
    %403 = arith.addf %400, %402 : vector<8x1xf32>
    %404 = tpu.reciprocal %403 {approx = true} : vector<8x1xf32> -> vector<8x1xf32>
    %405 = vector.broadcast %404 : vector<8x1xf32> to vector<8x8xf32>
    %406 = arith.mulf %398, %405 : vector<8x8xf32>
    %407 = arith.truncf %406 : vector<8x8xf32> to vector<8x8xbf16>
    %408 = arith.truncf %385 : vector<8x8xf32> to vector<8x8xbf16>
    %cst_144 = arith.constant dense<0.000000e+00> : vector<8x8xf32>
    %409 = tpu.matmul %407, %408, %cst_144 {dimension_numbers = #tpu.dot_dimension_numbers<[1], [0], [0], [1], [0, 0, 1, 1], [], []>} : vector<8x8xbf16>, vector<8x8xbf16>, vector<8x8xf32> -> vector<8x8xf32>
    %410 = vector.extract_strided_slice %355 {offsets = [0, 16], sizes = [8, 8], strides = [1, 1]} : vector<8x96xf32> to vector<8x8xf32>
    %411 = vector.extract_strided_slice %355 {offsets = [0, 48], sizes = [8, 8], strides = [1, 1]} : vector<8x96xf32> to vector<8x8xf32>
    %412 = vector.extract_strided_slice %355 {offsets = [0, 80], sizes = [8, 8], strides = [1, 1]} : vector<8x96xf32> to vector<8x8xf32>
    %413 = arith.truncf %410 : vector<8x8xf32> to vector<8x8xbf16>
    %414 = arith.truncf %411 : vector<8x8xf32> to vector<8x8xbf16>
    %cst_145 = arith.constant dense<0.000000e+00> : vector<8x8xf32>
    %415 = tpu.matmul %413, %414, %cst_145 {dimension_numbers = #tpu.dot_dimension_numbers<[1], [1], [0], [0], [0, 0, 1, 0], [], []>} : vector<8x8xbf16>, vector<8x8xbf16>, vector<8x8xf32> -> vector<8x8xf32>
    %416 = vector.broadcast %3 : vector<1x8xf32> to vector<8x8xf32>
    %417 = arith.addf %415, %416 : vector<8x8xf32>
    %cst_146 = arith.constant dense<0xFF800000> : vector<8xf32>
    %418 = vector.multi_reduction <maximumf>, %417, %cst_146 [1] : vector<8x8xf32> to vector<8xf32>
    %419 = vector.shape_cast %418 : vector<8xf32> to vector<8x1xf32>
    %420 = vector.broadcast %419 : vector<8x1xf32> to vector<8x8xf32>
    %421 = arith.subf %417, %420 : vector<8x8xf32>
    %422 = math.exp %421 : vector<8x8xf32>
    %cst_147 = arith.constant dense<0.000000e+00> : vector<8xf32>
    %423 = vector.multi_reduction <add>, %422, %cst_147 [1] : vector<8x8xf32> to vector<8xf32>
    %424 = vector.shape_cast %423 : vector<8xf32> to vector<8x1xf32>
    %425 = arith.mulf %422, %6 : vector<8x8xf32>
    %cst_148 = arith.constant dense<0.000000e+00> : vector<8xf32>
    %426 = vector.multi_reduction <add>, %425, %cst_148 [1] : vector<8x8xf32> to vector<8xf32>
    %427 = vector.shape_cast %426 : vector<8xf32> to vector<8x1xf32>
    %cst_149 = arith.constant 9.99999974E-6 : f32
    %428 = vector.broadcast %cst_149 : f32 to vector<8x1xf32>
    %429 = arith.mulf %428, %424 : vector<8x1xf32>
    %430 = arith.addf %427, %429 : vector<8x1xf32>
    %431 = tpu.reciprocal %430 {approx = true} : vector<8x1xf32> -> vector<8x1xf32>
    %432 = vector.broadcast %431 : vector<8x1xf32> to vector<8x8xf32>
    %433 = arith.mulf %425, %432 : vector<8x8xf32>
    %434 = arith.truncf %433 : vector<8x8xf32> to vector<8x8xbf16>
    %435 = arith.truncf %412 : vector<8x8xf32> to vector<8x8xbf16>
    %cst_150 = arith.constant dense<0.000000e+00> : vector<8x8xf32>
    %436 = tpu.matmul %434, %435, %cst_150 {dimension_numbers = #tpu.dot_dimension_numbers<[1], [0], [0], [1], [0, 0, 1, 1], [], []>} : vector<8x8xbf16>, vector<8x8xbf16>, vector<8x8xf32> -> vector<8x8xf32>
    %437 = vector.extract_strided_slice %355 {offsets = [0, 24], sizes = [8, 8], strides = [1, 1]} : vector<8x96xf32> to vector<8x8xf32>
    %438 = vector.extract_strided_slice %355 {offsets = [0, 56], sizes = [8, 8], strides = [1, 1]} : vector<8x96xf32> to vector<8x8xf32>
    %439 = vector.extract_strided_slice %355 {offsets = [0, 88], sizes = [8, 8], strides = [1, 1]} : vector<8x96xf32> to vector<8x8xf32>
    %440 = arith.truncf %437 : vector<8x8xf32> to vector<8x8xbf16>
    %441 = arith.truncf %438 : vector<8x8xf32> to vector<8x8xbf16>
    %cst_151 = arith.constant dense<0.000000e+00> : vector<8x8xf32>
    %442 = tpu.matmul %440, %441, %cst_151 {dimension_numbers = #tpu.dot_dimension_numbers<[1], [1], [0], [0], [0, 0, 1, 0], [], []>} : vector<8x8xbf16>, vector<8x8xbf16>, vector<8x8xf32> -> vector<8x8xf32>
    %443 = vector.broadcast %3 : vector<1x8xf32> to vector<8x8xf32>
    %444 = arith.addf %442, %443 : vector<8x8xf32>
    %cst_152 = arith.constant dense<0xFF800000> : vector<8xf32>
    %445 = vector.multi_reduction <maximumf>, %444, %cst_152 [1] : vector<8x8xf32> to vector<8xf32>
    %446 = vector.shape_cast %445 : vector<8xf32> to vector<8x1xf32>
    %447 = vector.broadcast %446 : vector<8x1xf32> to vector<8x8xf32>
    %448 = arith.subf %444, %447 : vector<8x8xf32>
    %449 = math.exp %448 : vector<8x8xf32>
    %cst_153 = arith.constant dense<0.000000e+00> : vector<8xf32>
    %450 = vector.multi_reduction <add>, %449, %cst_153 [1] : vector<8x8xf32> to vector<8xf32>
    %451 = vector.shape_cast %450 : vector<8xf32> to vector<8x1xf32>
    %452 = arith.mulf %449, %6 : vector<8x8xf32>
    %cst_154 = arith.constant dense<0.000000e+00> : vector<8xf32>
    %453 = vector.multi_reduction <add>, %452, %cst_154 [1] : vector<8x8xf32> to vector<8xf32>
    %454 = vector.shape_cast %453 : vector<8xf32> to vector<8x1xf32>
    %cst_155 = arith.constant 9.99999974E-6 : f32
    %455 = vector.broadcast %cst_155 : f32 to vector<8x1xf32>
    %456 = arith.mulf %455, %451 : vector<8x1xf32>
    %457 = arith.addf %454, %456 : vector<8x1xf32>
    %458 = tpu.reciprocal %457 {approx = true} : vector<8x1xf32> -> vector<8x1xf32>
    %459 = vector.broadcast %458 : vector<8x1xf32> to vector<8x8xf32>
    %460 = arith.mulf %452, %459 : vector<8x8xf32>
    %461 = arith.truncf %460 : vector<8x8xf32> to vector<8x8xbf16>
    %462 = arith.truncf %439 : vector<8x8xf32> to vector<8x8xbf16>
    %cst_156 = arith.constant dense<0.000000e+00> : vector<8x8xf32>
    %463 = tpu.matmul %461, %462, %cst_156 {dimension_numbers = #tpu.dot_dimension_numbers<[1], [0], [0], [1], [0, 0, 1, 1], [], []>} : vector<8x8xbf16>, vector<8x8xbf16>, vector<8x8xf32> -> vector<8x8xf32>
    %464 = tpu.concatenate %382, %409, %436, %463 in 1 : vector<8x8xf32>, vector<8x8xf32>, vector<8x8xf32>, vector<8x8xf32> -> vector<8x32xf32>
    %c1_157 = arith.constant 1 : index
    %c0_158 = arith.constant 0 : index
    %c0_159 = arith.constant 0 : index
    %465 = vector.load %arg16[%c1_157, %c0_158, %c0_159] : memref<3x32x32xbf16, #tpu.memory_space<vmem>>, vector<1x32x32xbf16>
    %466 = vector.shape_cast %465 : vector<1x32x32xbf16> to vector<32x32xbf16>
    %c1_160 = arith.constant 1 : index
    %c0_161 = arith.constant 0 : index
    %c0_162 = arith.constant 0 : index
    %467 = vector.load %arg10[%c1_160, %c0_161, %c0_162] : memref<3x1x32xf32, #tpu.memory_space<vmem>>, vector<1x1x32xf32>
    %468 = vector.shape_cast %467 : vector<1x1x32xf32> to vector<1x32xf32>
    %469 = arith.truncf %464 : vector<8x32xf32> to vector<8x32xbf16>
    %cst_163 = arith.constant dense<0.000000e+00> : vector<8x32xf32>
    %470 = tpu.matmul %469, %466, %cst_163 {dimension_numbers = #tpu.dot_dimension_numbers<[1], [0], [0], [1], [0, 0, 1, 1], [], []>} : vector<8x32xbf16>, vector<32x32xbf16>, vector<8x32xf32> -> vector<8x32xf32>
    %471 = vector.broadcast %468 : vector<1x32xf32> to vector<8x32xf32>
    %472 = arith.addf %470, %471 : vector<8x32xf32>
    %cst_164 = arith.constant 2.000000e+01 : f32
    %473 = vector.broadcast %cst_164 : f32 to vector<8x32xf32>
    %474 = arith.minimumf %472, %473 : vector<8x32xf32>
    %475 = math.exp %474 : vector<8x32xf32>
    %cst_165 = arith.constant 2.000000e+00 : f32
    %476 = vector.broadcast %cst_165 : f32 to vector<8x32xf32>
    %477 = arith.addf %475, %476 : vector<8x32xf32>
    %478 = arith.mulf %475, %477 : vector<8x32xf32>
    %479 = arith.mulf %472, %478 : vector<8x32xf32>
    %cst_166 = arith.constant 2.000000e+00 : f32
    %480 = vector.broadcast %cst_166 : f32 to vector<8x32xf32>
    %481 = arith.addf %478, %480 : vector<8x32xf32>
    %482 = tpu.reciprocal %481 {approx = true} : vector<8x32xf32> -> vector<8x32xf32>
    %483 = arith.mulf %479, %482 : vector<8x32xf32>
    %cst_167 = arith.constant 2.000000e+01 : f32
    %484 = vector.broadcast %cst_167 : f32 to vector<8x32xf32>
    %485 = arith.cmpf ogt, %472, %484 : vector<8x32xf32>
    %486 = arith.select %485, %472, %483 : vector<8x32xi1>, vector<8x32xf32>
    %487 = arith.addf %347, %486 : vector<8x32xf32>
    %cst_168 = arith.constant dense<0.000000e+00> : vector<8xf32>
    %488 = vector.multi_reduction <add>, %487, %cst_168 [1] : vector<8x32xf32> to vector<8xf32>
    %489 = vector.shape_cast %488 : vector<8xf32> to vector<8x1xf32>
    %cst_169 = arith.constant 3.200000e+01 : f32
    %490 = vector.broadcast %cst_169 : f32 to vector<8x1xf32>
    %491 = arith.divf %489, %490 : vector<8x1xf32>
    %492 = vector.broadcast %491 : vector<8x1xf32> to vector<8x32xf32>
    %493 = arith.subf %487, %492 : vector<8x32xf32>
    %494 = arith.mulf %493, %493 : vector<8x32xf32>
    %cst_170 = arith.constant dense<0.000000e+00> : vector<8xf32>
    %495 = vector.multi_reduction <add>, %494, %cst_170 [1] : vector<8x32xf32> to vector<8xf32>
    %496 = vector.shape_cast %495 : vector<8xf32> to vector<8x1xf32>
    %cst_171 = arith.constant 3.100000e+01 : f32
    %497 = vector.broadcast %cst_171 : f32 to vector<8x1xf32>
    %498 = arith.divf %496, %497 : vector<8x1xf32>
    %499 = math.sqrt %498 : vector<8x1xf32>
    %cst_172 = arith.constant 9.99999997E-7 : f32
    %500 = vector.broadcast %cst_172 : f32 to vector<8x1xf32>
    %501 = arith.addf %499, %500 : vector<8x1xf32>
    %502 = vector.broadcast %501 : vector<8x1xf32> to vector<8x32xf32>
    %503 = arith.divf %493, %502 : vector<8x32xf32>
    %504 = vector.broadcast %101 : vector<1x32xf32> to vector<8x32xf32>
    %505 = arith.mulf %504, %503 : vector<8x32xf32>
    %506 = vector.broadcast %102 : vector<1x32xf32> to vector<8x32xf32>
    %507 = arith.addf %505, %506 : vector<8x32xf32>
    %c2 = arith.constant 2 : index
    %c0_173 = arith.constant 0 : index
    %c0_174 = arith.constant 0 : index
    %508 = vector.load %arg13[%c2, %c0_173, %c0_174] : memref<6x32x32xbf16, #tpu.memory_space<vmem>>, vector<1x32x32xbf16>
    %509 = vector.shape_cast %508 : vector<1x32x32xbf16> to vector<32x32xbf16>
    %c2_175 = arith.constant 2 : index
    %c0_176 = arith.constant 0 : index
    %c0_177 = arith.constant 0 : index
    %510 = vector.load %arg12[%c2_175, %c0_176, %c0_177] : memref<6x1x32xf32, #tpu.memory_space<vmem>>, vector<1x1x32xf32>
    %511 = vector.shape_cast %510 : vector<1x1x32xf32> to vector<1x32xf32>
    %512 = arith.truncf %507 : vector<8x32xf32> to vector<8x32xbf16>
    %cst_178 = arith.constant dense<0.000000e+00> : vector<8x32xf32>
    %513 = tpu.matmul %512, %509, %cst_178 {dimension_numbers = #tpu.dot_dimension_numbers<[1], [0], [0], [1], [0, 0, 1, 1], [], []>} : vector<8x32xbf16>, vector<32x32xbf16>, vector<8x32xf32> -> vector<8x32xf32>
    %514 = vector.broadcast %511 : vector<1x32xf32> to vector<8x32xf32>
    %515 = arith.addf %513, %514 : vector<8x32xf32>
    %cst_179 = arith.constant 2.000000e+01 : f32
    %516 = vector.broadcast %cst_179 : f32 to vector<8x32xf32>
    %517 = arith.minimumf %515, %516 : vector<8x32xf32>
    %518 = math.exp %517 : vector<8x32xf32>
    %cst_180 = arith.constant 2.000000e+00 : f32
    %519 = vector.broadcast %cst_180 : f32 to vector<8x32xf32>
    %520 = arith.addf %518, %519 : vector<8x32xf32>
    %521 = arith.mulf %518, %520 : vector<8x32xf32>
    %522 = arith.mulf %515, %521 : vector<8x32xf32>
    %cst_181 = arith.constant 2.000000e+00 : f32
    %523 = vector.broadcast %cst_181 : f32 to vector<8x32xf32>
    %524 = arith.addf %521, %523 : vector<8x32xf32>
    %525 = tpu.reciprocal %524 {approx = true} : vector<8x32xf32> -> vector<8x32xf32>
    %526 = arith.mulf %522, %525 : vector<8x32xf32>
    %cst_182 = arith.constant 2.000000e+01 : f32
    %527 = vector.broadcast %cst_182 : f32 to vector<8x32xf32>
    %528 = arith.cmpf ogt, %515, %527 : vector<8x32xf32>
    %529 = arith.select %528, %515, %526 : vector<8x32xi1>, vector<8x32xf32>
    %c3 = arith.constant 3 : index
    %c0_183 = arith.constant 0 : index
    %c0_184 = arith.constant 0 : index
    %530 = vector.load %arg13[%c3, %c0_183, %c0_184] : memref<6x32x32xbf16, #tpu.memory_space<vmem>>, vector<1x32x32xbf16>
    %531 = vector.shape_cast %530 : vector<1x32x32xbf16> to vector<32x32xbf16>
    %c3_185 = arith.constant 3 : index
    %c0_186 = arith.constant 0 : index
    %c0_187 = arith.constant 0 : index
    %532 = vector.load %arg12[%c3_185, %c0_186, %c0_187] : memref<6x1x32xf32, #tpu.memory_space<vmem>>, vector<1x1x32xf32>
    %533 = vector.shape_cast %532 : vector<1x1x32xf32> to vector<1x32xf32>
    %534 = arith.truncf %529 : vector<8x32xf32> to vector<8x32xbf16>
    %cst_188 = arith.constant dense<0.000000e+00> : vector<8x32xf32>
    %535 = tpu.matmul %534, %531, %cst_188 {dimension_numbers = #tpu.dot_dimension_numbers<[1], [0], [0], [1], [0, 0, 1, 1], [], []>} : vector<8x32xbf16>, vector<32x32xbf16>, vector<8x32xf32> -> vector<8x32xf32>
    %536 = vector.broadcast %533 : vector<1x32xf32> to vector<8x32xf32>
    %537 = arith.addf %535, %536 : vector<8x32xf32>
    %cst_189 = arith.constant 2.000000e+01 : f32
    %538 = vector.broadcast %cst_189 : f32 to vector<8x32xf32>
    %539 = arith.minimumf %537, %538 : vector<8x32xf32>
    %540 = math.exp %539 : vector<8x32xf32>
    %cst_190 = arith.constant 2.000000e+00 : f32
    %541 = vector.broadcast %cst_190 : f32 to vector<8x32xf32>
    %542 = arith.addf %540, %541 : vector<8x32xf32>
    %543 = arith.mulf %540, %542 : vector<8x32xf32>
    %544 = arith.mulf %537, %543 : vector<8x32xf32>
    %cst_191 = arith.constant 2.000000e+00 : f32
    %545 = vector.broadcast %cst_191 : f32 to vector<8x32xf32>
    %546 = arith.addf %543, %545 : vector<8x32xf32>
    %547 = tpu.reciprocal %546 {approx = true} : vector<8x32xf32> -> vector<8x32xf32>
    %548 = arith.mulf %544, %547 : vector<8x32xf32>
    %cst_192 = arith.constant 2.000000e+01 : f32
    %549 = vector.broadcast %cst_192 : f32 to vector<8x32xf32>
    %550 = arith.cmpf ogt, %537, %549 : vector<8x32xf32>
    %551 = arith.select %550, %537, %548 : vector<8x32xi1>, vector<8x32xf32>
    %552 = arith.addf %507, %551 : vector<8x32xf32>
    %cst_193 = arith.constant dense<0.000000e+00> : vector<8xf32>
    %553 = vector.multi_reduction <add>, %552, %cst_193 [1] : vector<8x32xf32> to vector<8xf32>
    %554 = vector.shape_cast %553 : vector<8xf32> to vector<8x1xf32>
    %cst_194 = arith.constant 3.200000e+01 : f32
    %555 = vector.broadcast %cst_194 : f32 to vector<8x1xf32>
    %556 = arith.divf %554, %555 : vector<8x1xf32>
    %557 = vector.broadcast %556 : vector<8x1xf32> to vector<8x32xf32>
    %558 = arith.subf %552, %557 : vector<8x32xf32>
    %559 = arith.mulf %558, %558 : vector<8x32xf32>
    %cst_195 = arith.constant dense<0.000000e+00> : vector<8xf32>
    %560 = vector.multi_reduction <add>, %559, %cst_195 [1] : vector<8x32xf32> to vector<8xf32>
    %561 = vector.shape_cast %560 : vector<8xf32> to vector<8x1xf32>
    %cst_196 = arith.constant 3.100000e+01 : f32
    %562 = vector.broadcast %cst_196 : f32 to vector<8x1xf32>
    %563 = arith.divf %561, %562 : vector<8x1xf32>
    %564 = math.sqrt %563 : vector<8x1xf32>
    %cst_197 = arith.constant 9.99999997E-7 : f32
    %565 = vector.broadcast %cst_197 : f32 to vector<8x1xf32>
    %566 = arith.addf %564, %565 : vector<8x1xf32>
    %567 = vector.broadcast %566 : vector<8x1xf32> to vector<8x32xf32>
    %568 = arith.divf %558, %567 : vector<8x32xf32>
    %569 = vector.broadcast %101 : vector<1x32xf32> to vector<8x32xf32>
    %570 = arith.mulf %569, %568 : vector<8x32xf32>
    %571 = vector.broadcast %102 : vector<1x32xf32> to vector<8x32xf32>
    %572 = arith.addf %570, %571 : vector<8x32xf32>
    %c2_198 = arith.constant 2 : index
    %c0_199 = arith.constant 0 : index
    %c0_200 = arith.constant 0 : index
    %573 = vector.load %arg17[%c2_198, %c0_199, %c0_200] : memref<3x32x96xbf16, #tpu.memory_space<vmem>>, vector<1x32x96xbf16>
    %574 = vector.shape_cast %573 : vector<1x32x96xbf16> to vector<32x96xbf16>
    %c2_201 = arith.constant 2 : index
    %c0_202 = arith.constant 0 : index
    %c0_203 = arith.constant 0 : index
    %575 = vector.load %arg11[%c2_201, %c0_202, %c0_203] : memref<3x1x96xf32, #tpu.memory_space<vmem>>, vector<1x1x96xf32>
    %576 = vector.shape_cast %575 : vector<1x1x96xf32> to vector<1x96xf32>
    %577 = arith.truncf %572 : vector<8x32xf32> to vector<8x32xbf16>
    %cst_204 = arith.constant dense<0.000000e+00> : vector<8x96xf32>
    %578 = tpu.matmul %577, %574, %cst_204 {dimension_numbers = #tpu.dot_dimension_numbers<[1], [0], [0], [1], [0, 0, 1, 1], [], []>} : vector<8x32xbf16>, vector<32x96xbf16>, vector<8x96xf32> -> vector<8x96xf32>
    %579 = vector.broadcast %576 : vector<1x96xf32> to vector<8x96xf32>
    %580 = arith.addf %578, %579 : vector<8x96xf32>
    %581 = vector.extract_strided_slice %580 {offsets = [0, 0], sizes = [8, 8], strides = [1, 1]} : vector<8x96xf32> to vector<8x8xf32>
    %582 = vector.extract_strided_slice %580 {offsets = [0, 32], sizes = [8, 8], strides = [1, 1]} : vector<8x96xf32> to vector<8x8xf32>
    %583 = vector.extract_strided_slice %580 {offsets = [0, 64], sizes = [8, 8], strides = [1, 1]} : vector<8x96xf32> to vector<8x8xf32>
    %584 = arith.truncf %581 : vector<8x8xf32> to vector<8x8xbf16>
    %585 = arith.truncf %582 : vector<8x8xf32> to vector<8x8xbf16>
    %cst_205 = arith.constant dense<0.000000e+00> : vector<8x8xf32>
    %586 = tpu.matmul %584, %585, %cst_205 {dimension_numbers = #tpu.dot_dimension_numbers<[1], [1], [0], [0], [0, 0, 1, 0], [], []>} : vector<8x8xbf16>, vector<8x8xbf16>, vector<8x8xf32> -> vector<8x8xf32>
    %587 = vector.broadcast %3 : vector<1x8xf32> to vector<8x8xf32>
    %588 = arith.addf %586, %587 : vector<8x8xf32>
    %cst_206 = arith.constant dense<0xFF800000> : vector<8xf32>
    %589 = vector.multi_reduction <maximumf>, %588, %cst_206 [1] : vector<8x8xf32> to vector<8xf32>
    %590 = vector.shape_cast %589 : vector<8xf32> to vector<8x1xf32>
    %591 = vector.broadcast %590 : vector<8x1xf32> to vector<8x8xf32>
    %592 = arith.subf %588, %591 : vector<8x8xf32>
    %593 = math.exp %592 : vector<8x8xf32>
    %cst_207 = arith.constant dense<0.000000e+00> : vector<8xf32>
    %594 = vector.multi_reduction <add>, %593, %cst_207 [1] : vector<8x8xf32> to vector<8xf32>
    %595 = vector.shape_cast %594 : vector<8xf32> to vector<8x1xf32>
    %596 = arith.mulf %593, %6 : vector<8x8xf32>
    %cst_208 = arith.constant dense<0.000000e+00> : vector<8xf32>
    %597 = vector.multi_reduction <add>, %596, %cst_208 [1] : vector<8x8xf32> to vector<8xf32>
    %598 = vector.shape_cast %597 : vector<8xf32> to vector<8x1xf32>
    %cst_209 = arith.constant 9.99999974E-6 : f32
    %599 = vector.broadcast %cst_209 : f32 to vector<8x1xf32>
    %600 = arith.mulf %599, %595 : vector<8x1xf32>
    %601 = arith.addf %598, %600 : vector<8x1xf32>
    %602 = tpu.reciprocal %601 {approx = true} : vector<8x1xf32> -> vector<8x1xf32>
    %603 = vector.broadcast %602 : vector<8x1xf32> to vector<8x8xf32>
    %604 = arith.mulf %596, %603 : vector<8x8xf32>
    %605 = arith.truncf %604 : vector<8x8xf32> to vector<8x8xbf16>
    %606 = arith.truncf %583 : vector<8x8xf32> to vector<8x8xbf16>
    %cst_210 = arith.constant dense<0.000000e+00> : vector<8x8xf32>
    %607 = tpu.matmul %605, %606, %cst_210 {dimension_numbers = #tpu.dot_dimension_numbers<[1], [0], [0], [1], [0, 0, 1, 1], [], []>} : vector<8x8xbf16>, vector<8x8xbf16>, vector<8x8xf32> -> vector<8x8xf32>
    %608 = vector.extract_strided_slice %580 {offsets = [0, 8], sizes = [8, 8], strides = [1, 1]} : vector<8x96xf32> to vector<8x8xf32>
    %609 = vector.extract_strided_slice %580 {offsets = [0, 40], sizes = [8, 8], strides = [1, 1]} : vector<8x96xf32> to vector<8x8xf32>
    %610 = vector.extract_strided_slice %580 {offsets = [0, 72], sizes = [8, 8], strides = [1, 1]} : vector<8x96xf32> to vector<8x8xf32>
    %611 = arith.truncf %608 : vector<8x8xf32> to vector<8x8xbf16>
    %612 = arith.truncf %609 : vector<8x8xf32> to vector<8x8xbf16>
    %cst_211 = arith.constant dense<0.000000e+00> : vector<8x8xf32>
    %613 = tpu.matmul %611, %612, %cst_211 {dimension_numbers = #tpu.dot_dimension_numbers<[1], [1], [0], [0], [0, 0, 1, 0], [], []>} : vector<8x8xbf16>, vector<8x8xbf16>, vector<8x8xf32> -> vector<8x8xf32>
    %614 = vector.broadcast %3 : vector<1x8xf32> to vector<8x8xf32>
    %615 = arith.addf %613, %614 : vector<8x8xf32>
    %cst_212 = arith.constant dense<0xFF800000> : vector<8xf32>
    %616 = vector.multi_reduction <maximumf>, %615, %cst_212 [1] : vector<8x8xf32> to vector<8xf32>
    %617 = vector.shape_cast %616 : vector<8xf32> to vector<8x1xf32>
    %618 = vector.broadcast %617 : vector<8x1xf32> to vector<8x8xf32>
    %619 = arith.subf %615, %618 : vector<8x8xf32>
    %620 = math.exp %619 : vector<8x8xf32>
    %cst_213 = arith.constant dense<0.000000e+00> : vector<8xf32>
    %621 = vector.multi_reduction <add>, %620, %cst_213 [1] : vector<8x8xf32> to vector<8xf32>
    %622 = vector.shape_cast %621 : vector<8xf32> to vector<8x1xf32>
    %623 = arith.mulf %620, %6 : vector<8x8xf32>
    %cst_214 = arith.constant dense<0.000000e+00> : vector<8xf32>
    %624 = vector.multi_reduction <add>, %623, %cst_214 [1] : vector<8x8xf32> to vector<8xf32>
    %625 = vector.shape_cast %624 : vector<8xf32> to vector<8x1xf32>
    %cst_215 = arith.constant 9.99999974E-6 : f32
    %626 = vector.broadcast %cst_215 : f32 to vector<8x1xf32>
    %627 = arith.mulf %626, %622 : vector<8x1xf32>
    %628 = arith.addf %625, %627 : vector<8x1xf32>
    %629 = tpu.reciprocal %628 {approx = true} : vector<8x1xf32> -> vector<8x1xf32>
    %630 = vector.broadcast %629 : vector<8x1xf32> to vector<8x8xf32>
    %631 = arith.mulf %623, %630 : vector<8x8xf32>
    %632 = arith.truncf %631 : vector<8x8xf32> to vector<8x8xbf16>
    %633 = arith.truncf %610 : vector<8x8xf32> to vector<8x8xbf16>
    %cst_216 = arith.constant dense<0.000000e+00> : vector<8x8xf32>
    %634 = tpu.matmul %632, %633, %cst_216 {dimension_numbers = #tpu.dot_dimension_numbers<[1], [0], [0], [1], [0, 0, 1, 1], [], []>} : vector<8x8xbf16>, vector<8x8xbf16>, vector<8x8xf32> -> vector<8x8xf32>
    %635 = vector.extract_strided_slice %580 {offsets = [0, 16], sizes = [8, 8], strides = [1, 1]} : vector<8x96xf32> to vector<8x8xf32>
    %636 = vector.extract_strided_slice %580 {offsets = [0, 48], sizes = [8, 8], strides = [1, 1]} : vector<8x96xf32> to vector<8x8xf32>
    %637 = vector.extract_strided_slice %580 {offsets = [0, 80], sizes = [8, 8], strides = [1, 1]} : vector<8x96xf32> to vector<8x8xf32>
    %638 = arith.truncf %635 : vector<8x8xf32> to vector<8x8xbf16>
    %639 = arith.truncf %636 : vector<8x8xf32> to vector<8x8xbf16>
    %cst_217 = arith.constant dense<0.000000e+00> : vector<8x8xf32>
    %640 = tpu.matmul %638, %639, %cst_217 {dimension_numbers = #tpu.dot_dimension_numbers<[1], [1], [0], [0], [0, 0, 1, 0], [], []>} : vector<8x8xbf16>, vector<8x8xbf16>, vector<8x8xf32> -> vector<8x8xf32>
    %641 = vector.broadcast %3 : vector<1x8xf32> to vector<8x8xf32>
    %642 = arith.addf %640, %641 : vector<8x8xf32>
    %cst_218 = arith.constant dense<0xFF800000> : vector<8xf32>
    %643 = vector.multi_reduction <maximumf>, %642, %cst_218 [1] : vector<8x8xf32> to vector<8xf32>
    %644 = vector.shape_cast %643 : vector<8xf32> to vector<8x1xf32>
    %645 = vector.broadcast %644 : vector<8x1xf32> to vector<8x8xf32>
    %646 = arith.subf %642, %645 : vector<8x8xf32>
    %647 = math.exp %646 : vector<8x8xf32>
    %cst_219 = arith.constant dense<0.000000e+00> : vector<8xf32>
    %648 = vector.multi_reduction <add>, %647, %cst_219 [1] : vector<8x8xf32> to vector<8xf32>
    %649 = vector.shape_cast %648 : vector<8xf32> to vector<8x1xf32>
    %650 = arith.mulf %647, %6 : vector<8x8xf32>
    %cst_220 = arith.constant dense<0.000000e+00> : vector<8xf32>
    %651 = vector.multi_reduction <add>, %650, %cst_220 [1] : vector<8x8xf32> to vector<8xf32>
    %652 = vector.shape_cast %651 : vector<8xf32> to vector<8x1xf32>
    %cst_221 = arith.constant 9.99999974E-6 : f32
    %653 = vector.broadcast %cst_221 : f32 to vector<8x1xf32>
    %654 = arith.mulf %653, %649 : vector<8x1xf32>
    %655 = arith.addf %652, %654 : vector<8x1xf32>
    %656 = tpu.reciprocal %655 {approx = true} : vector<8x1xf32> -> vector<8x1xf32>
    %657 = vector.broadcast %656 : vector<8x1xf32> to vector<8x8xf32>
    %658 = arith.mulf %650, %657 : vector<8x8xf32>
    %659 = arith.truncf %658 : vector<8x8xf32> to vector<8x8xbf16>
    %660 = arith.truncf %637 : vector<8x8xf32> to vector<8x8xbf16>
    %cst_222 = arith.constant dense<0.000000e+00> : vector<8x8xf32>
    %661 = tpu.matmul %659, %660, %cst_222 {dimension_numbers = #tpu.dot_dimension_numbers<[1], [0], [0], [1], [0, 0, 1, 1], [], []>} : vector<8x8xbf16>, vector<8x8xbf16>, vector<8x8xf32> -> vector<8x8xf32>
    %662 = vector.extract_strided_slice %580 {offsets = [0, 24], sizes = [8, 8], strides = [1, 1]} : vector<8x96xf32> to vector<8x8xf32>
    %663 = vector.extract_strided_slice %580 {offsets = [0, 56], sizes = [8, 8], strides = [1, 1]} : vector<8x96xf32> to vector<8x8xf32>
    %664 = vector.extract_strided_slice %580 {offsets = [0, 88], sizes = [8, 8], strides = [1, 1]} : vector<8x96xf32> to vector<8x8xf32>
    %665 = arith.truncf %662 : vector<8x8xf32> to vector<8x8xbf16>
    %666 = arith.truncf %663 : vector<8x8xf32> to vector<8x8xbf16>
    %cst_223 = arith.constant dense<0.000000e+00> : vector<8x8xf32>
    %667 = tpu.matmul %665, %666, %cst_223 {dimension_numbers = #tpu.dot_dimension_numbers<[1], [1], [0], [0], [0, 0, 1, 0], [], []>} : vector<8x8xbf16>, vector<8x8xbf16>, vector<8x8xf32> -> vector<8x8xf32>
    %668 = vector.broadcast %3 : vector<1x8xf32> to vector<8x8xf32>
    %669 = arith.addf %667, %668 : vector<8x8xf32>
    %cst_224 = arith.constant dense<0xFF800000> : vector<8xf32>
    %670 = vector.multi_reduction <maximumf>, %669, %cst_224 [1] : vector<8x8xf32> to vector<8xf32>
    %671 = vector.shape_cast %670 : vector<8xf32> to vector<8x1xf32>
    %672 = vector.broadcast %671 : vector<8x1xf32> to vector<8x8xf32>
    %673 = arith.subf %669, %672 : vector<8x8xf32>
    %674 = math.exp %673 : vector<8x8xf32>
    %cst_225 = arith.constant dense<0.000000e+00> : vector<8xf32>
    %675 = vector.multi_reduction <add>, %674, %cst_225 [1] : vector<8x8xf32> to vector<8xf32>
    %676 = vector.shape_cast %675 : vector<8xf32> to vector<8x1xf32>
    %677 = arith.mulf %674, %6 : vector<8x8xf32>
    %cst_226 = arith.constant dense<0.000000e+00> : vector<8xf32>
    %678 = vector.multi_reduction <add>, %677, %cst_226 [1] : vector<8x8xf32> to vector<8xf32>
    %679 = vector.shape_cast %678 : vector<8xf32> to vector<8x1xf32>
    %cst_227 = arith.constant 9.99999974E-6 : f32
    %680 = vector.broadcast %cst_227 : f32 to vector<8x1xf32>
    %681 = arith.mulf %680, %676 : vector<8x1xf32>
    %682 = arith.addf %679, %681 : vector<8x1xf32>
    %683 = tpu.reciprocal %682 {approx = true} : vector<8x1xf32> -> vector<8x1xf32>
    %684 = vector.broadcast %683 : vector<8x1xf32> to vector<8x8xf32>
    %685 = arith.mulf %677, %684 : vector<8x8xf32>
    %686 = arith.truncf %685 : vector<8x8xf32> to vector<8x8xbf16>
    %687 = arith.truncf %664 : vector<8x8xf32> to vector<8x8xbf16>
    %cst_228 = arith.constant dense<0.000000e+00> : vector<8x8xf32>
    %688 = tpu.matmul %686, %687, %cst_228 {dimension_numbers = #tpu.dot_dimension_numbers<[1], [0], [0], [1], [0, 0, 1, 1], [], []>} : vector<8x8xbf16>, vector<8x8xbf16>, vector<8x8xf32> -> vector<8x8xf32>
    %689 = tpu.concatenate %607, %634, %661, %688 in 1 : vector<8x8xf32>, vector<8x8xf32>, vector<8x8xf32>, vector<8x8xf32> -> vector<8x32xf32>
    %c2_229 = arith.constant 2 : index
    %c0_230 = arith.constant 0 : index
    %c0_231 = arith.constant 0 : index
    %690 = vector.load %arg16[%c2_229, %c0_230, %c0_231] : memref<3x32x32xbf16, #tpu.memory_space<vmem>>, vector<1x32x32xbf16>
    %691 = vector.shape_cast %690 : vector<1x32x32xbf16> to vector<32x32xbf16>
    %c2_232 = arith.constant 2 : index
    %c0_233 = arith.constant 0 : index
    %c0_234 = arith.constant 0 : index
    %692 = vector.load %arg10[%c2_232, %c0_233, %c0_234] : memref<3x1x32xf32, #tpu.memory_space<vmem>>, vector<1x1x32xf32>
    %693 = vector.shape_cast %692 : vector<1x1x32xf32> to vector<1x32xf32>
    %694 = arith.truncf %689 : vector<8x32xf32> to vector<8x32xbf16>
    %cst_235 = arith.constant dense<0.000000e+00> : vector<8x32xf32>
    %695 = tpu.matmul %694, %691, %cst_235 {dimension_numbers = #tpu.dot_dimension_numbers<[1], [0], [0], [1], [0, 0, 1, 1], [], []>} : vector<8x32xbf16>, vector<32x32xbf16>, vector<8x32xf32> -> vector<8x32xf32>
    %696 = vector.broadcast %693 : vector<1x32xf32> to vector<8x32xf32>
    %697 = arith.addf %695, %696 : vector<8x32xf32>
    %cst_236 = arith.constant 2.000000e+01 : f32
    %698 = vector.broadcast %cst_236 : f32 to vector<8x32xf32>
    %699 = arith.minimumf %697, %698 : vector<8x32xf32>
    %700 = math.exp %699 : vector<8x32xf32>
    %cst_237 = arith.constant 2.000000e+00 : f32
    %701 = vector.broadcast %cst_237 : f32 to vector<8x32xf32>
    %702 = arith.addf %700, %701 : vector<8x32xf32>
    %703 = arith.mulf %700, %702 : vector<8x32xf32>
    %704 = arith.mulf %697, %703 : vector<8x32xf32>
    %cst_238 = arith.constant 2.000000e+00 : f32
    %705 = vector.broadcast %cst_238 : f32 to vector<8x32xf32>
    %706 = arith.addf %703, %705 : vector<8x32xf32>
    %707 = tpu.reciprocal %706 {approx = true} : vector<8x32xf32> -> vector<8x32xf32>
    %708 = arith.mulf %704, %707 : vector<8x32xf32>
    %cst_239 = arith.constant 2.000000e+01 : f32
    %709 = vector.broadcast %cst_239 : f32 to vector<8x32xf32>
    %710 = arith.cmpf ogt, %697, %709 : vector<8x32xf32>
    %711 = arith.select %710, %697, %708 : vector<8x32xi1>, vector<8x32xf32>
    %712 = arith.addf %572, %711 : vector<8x32xf32>
    %cst_240 = arith.constant dense<0.000000e+00> : vector<8xf32>
    %713 = vector.multi_reduction <add>, %712, %cst_240 [1] : vector<8x32xf32> to vector<8xf32>
    %714 = vector.shape_cast %713 : vector<8xf32> to vector<8x1xf32>
    %cst_241 = arith.constant 3.200000e+01 : f32
    %715 = vector.broadcast %cst_241 : f32 to vector<8x1xf32>
    %716 = arith.divf %714, %715 : vector<8x1xf32>
    %717 = vector.broadcast %716 : vector<8x1xf32> to vector<8x32xf32>
    %718 = arith.subf %712, %717 : vector<8x32xf32>
    %719 = arith.mulf %718, %718 : vector<8x32xf32>
    %cst_242 = arith.constant dense<0.000000e+00> : vector<8xf32>
    %720 = vector.multi_reduction <add>, %719, %cst_242 [1] : vector<8x32xf32> to vector<8xf32>
    %721 = vector.shape_cast %720 : vector<8xf32> to vector<8x1xf32>
    %cst_243 = arith.constant 3.100000e+01 : f32
    %722 = vector.broadcast %cst_243 : f32 to vector<8x1xf32>
    %723 = arith.divf %721, %722 : vector<8x1xf32>
    %724 = math.sqrt %723 : vector<8x1xf32>
    %cst_244 = arith.constant 9.99999997E-7 : f32
    %725 = vector.broadcast %cst_244 : f32 to vector<8x1xf32>
    %726 = arith.addf %724, %725 : vector<8x1xf32>
    %727 = vector.broadcast %726 : vector<8x1xf32> to vector<8x32xf32>
    %728 = arith.divf %718, %727 : vector<8x32xf32>
    %729 = vector.broadcast %101 : vector<1x32xf32> to vector<8x32xf32>
    %730 = arith.mulf %729, %728 : vector<8x32xf32>
    %731 = vector.broadcast %102 : vector<1x32xf32> to vector<8x32xf32>
    %732 = arith.addf %730, %731 : vector<8x32xf32>
    %c4 = arith.constant 4 : index
    %c0_245 = arith.constant 0 : index
    %c0_246 = arith.constant 0 : index
    %733 = vector.load %arg13[%c4, %c0_245, %c0_246] : memref<6x32x32xbf16, #tpu.memory_space<vmem>>, vector<1x32x32xbf16>
    %734 = vector.shape_cast %733 : vector<1x32x32xbf16> to vector<32x32xbf16>
    %c4_247 = arith.constant 4 : index
    %c0_248 = arith.constant 0 : index
    %c0_249 = arith.constant 0 : index
    %735 = vector.load %arg12[%c4_247, %c0_248, %c0_249] : memref<6x1x32xf32, #tpu.memory_space<vmem>>, vector<1x1x32xf32>
    %736 = vector.shape_cast %735 : vector<1x1x32xf32> to vector<1x32xf32>
    %737 = arith.truncf %732 : vector<8x32xf32> to vector<8x32xbf16>
    %cst_250 = arith.constant dense<0.000000e+00> : vector<8x32xf32>
    %738 = tpu.matmul %737, %734, %cst_250 {dimension_numbers = #tpu.dot_dimension_numbers<[1], [0], [0], [1], [0, 0, 1, 1], [], []>} : vector<8x32xbf16>, vector<32x32xbf16>, vector<8x32xf32> -> vector<8x32xf32>
    %739 = vector.broadcast %736 : vector<1x32xf32> to vector<8x32xf32>
    %740 = arith.addf %738, %739 : vector<8x32xf32>
    %cst_251 = arith.constant 2.000000e+01 : f32
    %741 = vector.broadcast %cst_251 : f32 to vector<8x32xf32>
    %742 = arith.minimumf %740, %741 : vector<8x32xf32>
    %743 = math.exp %742 : vector<8x32xf32>
    %cst_252 = arith.constant 2.000000e+00 : f32
    %744 = vector.broadcast %cst_252 : f32 to vector<8x32xf32>
    %745 = arith.addf %743, %744 : vector<8x32xf32>
    %746 = arith.mulf %743, %745 : vector<8x32xf32>
    %747 = arith.mulf %740, %746 : vector<8x32xf32>
    %cst_253 = arith.constant 2.000000e+00 : f32
    %748 = vector.broadcast %cst_253 : f32 to vector<8x32xf32>
    %749 = arith.addf %746, %748 : vector<8x32xf32>
    %750 = tpu.reciprocal %749 {approx = true} : vector<8x32xf32> -> vector<8x32xf32>
    %751 = arith.mulf %747, %750 : vector<8x32xf32>
    %cst_254 = arith.constant 2.000000e+01 : f32
    %752 = vector.broadcast %cst_254 : f32 to vector<8x32xf32>
    %753 = arith.cmpf ogt, %740, %752 : vector<8x32xf32>
    %754 = arith.select %753, %740, %751 : vector<8x32xi1>, vector<8x32xf32>
    %c5 = arith.constant 5 : index
    %c0_255 = arith.constant 0 : index
    %c0_256 = arith.constant 0 : index
    %755 = vector.load %arg13[%c5, %c0_255, %c0_256] : memref<6x32x32xbf16, #tpu.memory_space<vmem>>, vector<1x32x32xbf16>
    %756 = vector.shape_cast %755 : vector<1x32x32xbf16> to vector<32x32xbf16>
    %c5_257 = arith.constant 5 : index
    %c0_258 = arith.constant 0 : index
    %c0_259 = arith.constant 0 : index
    %757 = vector.load %arg12[%c5_257, %c0_258, %c0_259] : memref<6x1x32xf32, #tpu.memory_space<vmem>>, vector<1x1x32xf32>
    %758 = vector.shape_cast %757 : vector<1x1x32xf32> to vector<1x32xf32>
    %759 = arith.truncf %754 : vector<8x32xf32> to vector<8x32xbf16>
    %cst_260 = arith.constant dense<0.000000e+00> : vector<8x32xf32>
    %760 = tpu.matmul %759, %756, %cst_260 {dimension_numbers = #tpu.dot_dimension_numbers<[1], [0], [0], [1], [0, 0, 1, 1], [], []>} : vector<8x32xbf16>, vector<32x32xbf16>, vector<8x32xf32> -> vector<8x32xf32>
    %761 = vector.broadcast %758 : vector<1x32xf32> to vector<8x32xf32>
    %762 = arith.addf %760, %761 : vector<8x32xf32>
    %cst_261 = arith.constant 2.000000e+01 : f32
    %763 = vector.broadcast %cst_261 : f32 to vector<8x32xf32>
    %764 = arith.minimumf %762, %763 : vector<8x32xf32>
    %765 = math.exp %764 : vector<8x32xf32>
    %cst_262 = arith.constant 2.000000e+00 : f32
    %766 = vector.broadcast %cst_262 : f32 to vector<8x32xf32>
    %767 = arith.addf %765, %766 : vector<8x32xf32>
    %768 = arith.mulf %765, %767 : vector<8x32xf32>
    %769 = arith.mulf %762, %768 : vector<8x32xf32>
    %cst_263 = arith.constant 2.000000e+00 : f32
    %770 = vector.broadcast %cst_263 : f32 to vector<8x32xf32>
    %771 = arith.addf %768, %770 : vector<8x32xf32>
    %772 = tpu.reciprocal %771 {approx = true} : vector<8x32xf32> -> vector<8x32xf32>
    %773 = arith.mulf %769, %772 : vector<8x32xf32>
    %cst_264 = arith.constant 2.000000e+01 : f32
    %774 = vector.broadcast %cst_264 : f32 to vector<8x32xf32>
    %775 = arith.cmpf ogt, %762, %774 : vector<8x32xf32>
    %776 = arith.select %775, %762, %773 : vector<8x32xi1>, vector<8x32xf32>
    %777 = arith.addf %732, %776 : vector<8x32xf32>
    %cst_265 = arith.constant dense<0.000000e+00> : vector<8xf32>
    %778 = vector.multi_reduction <add>, %777, %cst_265 [1] : vector<8x32xf32> to vector<8xf32>
    %779 = vector.shape_cast %778 : vector<8xf32> to vector<8x1xf32>
    %cst_266 = arith.constant 3.200000e+01 : f32
    %780 = vector.broadcast %cst_266 : f32 to vector<8x1xf32>
    %781 = arith.divf %779, %780 : vector<8x1xf32>
    %782 = vector.broadcast %781 : vector<8x1xf32> to vector<8x32xf32>
    %783 = arith.subf %777, %782 : vector<8x32xf32>
    %784 = arith.mulf %783, %783 : vector<8x32xf32>
    %cst_267 = arith.constant dense<0.000000e+00> : vector<8xf32>
    %785 = vector.multi_reduction <add>, %784, %cst_267 [1] : vector<8x32xf32> to vector<8xf32>
    %786 = vector.shape_cast %785 : vector<8xf32> to vector<8x1xf32>
    %cst_268 = arith.constant 3.100000e+01 : f32
    %787 = vector.broadcast %cst_268 : f32 to vector<8x1xf32>
    %788 = arith.divf %786, %787 : vector<8x1xf32>
    %789 = math.sqrt %788 : vector<8x1xf32>
    %cst_269 = arith.constant 9.99999997E-7 : f32
    %790 = vector.broadcast %cst_269 : f32 to vector<8x1xf32>
    %791 = arith.addf %789, %790 : vector<8x1xf32>
    %792 = vector.broadcast %791 : vector<8x1xf32> to vector<8x32xf32>
    %793 = arith.divf %783, %792 : vector<8x32xf32>
    %c0_270 = arith.constant 0 : index
    %c0_271 = arith.constant 0 : index
    %794 = vector.load %arg20[%c0_270, %c0_271] : memref<32x32xbf16, #tpu.memory_space<vmem>>, vector<32x32xbf16>
    %c0_272 = arith.constant 0 : index
    %c0_273 = arith.constant 0 : index
    %795 = vector.load %arg18[%c0_272, %c0_273] : memref<1x32xf32, #tpu.memory_space<vmem>>, vector<1x32xf32>
    %796 = arith.truncf %793 : vector<8x32xf32> to vector<8x32xbf16>
    %cst_274 = arith.constant dense<0.000000e+00> : vector<8x32xf32>
    %797 = tpu.matmul %796, %794, %cst_274 {dimension_numbers = #tpu.dot_dimension_numbers<[1], [0], [0], [1], [0, 0, 1, 1], [], []>} : vector<8x32xbf16>, vector<32x32xbf16>, vector<8x32xf32> -> vector<8x32xf32>
    %798 = vector.broadcast %795 : vector<1x32xf32> to vector<8x32xf32>
    %799 = arith.addf %797, %798 : vector<8x32xf32>
    %cst_275 = arith.constant 2.000000e+01 : f32
    %800 = vector.broadcast %cst_275 : f32 to vector<8x32xf32>
    %801 = arith.minimumf %799, %800 : vector<8x32xf32>
    %802 = math.exp %801 : vector<8x32xf32>
    %cst_276 = arith.constant 2.000000e+00 : f32
    %803 = vector.broadcast %cst_276 : f32 to vector<8x32xf32>
    %804 = arith.addf %802, %803 : vector<8x32xf32>
    %805 = arith.mulf %802, %804 : vector<8x32xf32>
    %806 = arith.mulf %799, %805 : vector<8x32xf32>
    %cst_277 = arith.constant 2.000000e+00 : f32
    %807 = vector.broadcast %cst_277 : f32 to vector<8x32xf32>
    %808 = arith.addf %805, %807 : vector<8x32xf32>
    %809 = tpu.reciprocal %808 {approx = true} : vector<8x32xf32> -> vector<8x32xf32>
    %810 = arith.mulf %806, %809 : vector<8x32xf32>
    %cst_278 = arith.constant 2.000000e+01 : f32
    %811 = vector.broadcast %cst_278 : f32 to vector<8x32xf32>
    %812 = arith.cmpf ogt, %799, %811 : vector<8x32xf32>
    %813 = arith.select %812, %799, %810 : vector<8x32xi1>, vector<8x32xf32>
    %cst_279 = arith.constant dense<0.000000e+00> : vector<8xf32>
    %814 = vector.multi_reduction <add>, %813, %cst_279 [1] : vector<8x32xf32> to vector<8xf32>
    %815 = vector.shape_cast %814 : vector<8xf32> to vector<8x1xf32>
    %cst_280 = arith.constant 3.200000e+01 : f32
    %816 = vector.broadcast %cst_280 : f32 to vector<8x1xf32>
    %817 = arith.divf %815, %816 : vector<8x1xf32>
    %818 = vector.broadcast %817 : vector<8x1xf32> to vector<8x32xf32>
    %819 = arith.subf %813, %818 : vector<8x32xf32>
    %820 = arith.mulf %819, %819 : vector<8x32xf32>
    %cst_281 = arith.constant dense<0.000000e+00> : vector<8xf32>
    %821 = vector.multi_reduction <add>, %820, %cst_281 [1] : vector<8x32xf32> to vector<8xf32>
    %822 = vector.shape_cast %821 : vector<8xf32> to vector<8x1xf32>
    %cst_282 = arith.constant 3.100000e+01 : f32
    %823 = vector.broadcast %cst_282 : f32 to vector<8x1xf32>
    %824 = arith.divf %822, %823 : vector<8x1xf32>
    %825 = math.sqrt %824 : vector<8x1xf32>
    %cst_283 = arith.constant 9.99999997E-7 : f32
    %826 = vector.broadcast %cst_283 : f32 to vector<8x1xf32>
    %827 = arith.addf %825, %826 : vector<8x1xf32>
    %828 = vector.broadcast %827 : vector<8x1xf32> to vector<8x32xf32>
    %829 = arith.divf %819, %828 : vector<8x32xf32>
    %c0_284 = arith.constant 0 : index
    %c0_285 = arith.constant 0 : index
    %830 = vector.load %arg21[%c0_284, %c0_285] : memref<32x128xbf16, #tpu.memory_space<vmem>>, vector<32x128xbf16>
    %c0_286 = arith.constant 0 : index
    %c0_287 = arith.constant 0 : index
    %831 = vector.load %arg19[%c0_286, %c0_287] : memref<1x128xf32, #tpu.memory_space<vmem>>, vector<1x128xf32>
    %832 = arith.truncf %829 : vector<8x32xf32> to vector<8x32xbf16>
    %cst_288 = arith.constant dense<0.000000e+00> : vector<8x128xf32>
    %833 = tpu.matmul %832, %830, %cst_288 {dimension_numbers = #tpu.dot_dimension_numbers<[1], [0], [0], [1], [0, 0, 1, 1], [], []>} : vector<8x32xbf16>, vector<32x128xbf16>, vector<8x128xf32> -> vector<8x128xf32>
    %834 = vector.broadcast %831 : vector<1x128xf32> to vector<8x128xf32>
    %835 = arith.addf %833, %834 : vector<8x128xf32>
    %c0_289 = arith.constant 0 : index
    %c0_290 = arith.constant 0 : index
    %c0_291 = arith.constant 0 : index
    %836 = vector.load %arg22[%c0_289, %c0_290, %c0_291] : memref<1x8x128xf32, #tpu.memory_space<vmem>>, vector<1x8x128xf32>
    %837 = vector.shape_cast %836 : vector<1x8x128xf32> to vector<8x128xf32>
    %838 = vector.shape_cast %835 : vector<8x128xf32> to vector<1x8x128xf32>
    tpu.vector_store %arg22[%c0_289, %c0_290, %c0_291], %838 {strides = array<i32>} : memref<1x8x128xf32, #tpu.memory_space<vmem>>, vector<1x8x128xf32>,
    return
  }
  func.func @transform_0(%arg0: i32) -> (i32, i32, i32) {
    %c0_i32 = arith.constant 0 : i32
    %c0_i32_0 = arith.constant 0 : i32
    %c0_i32_1 = arith.constant 0 : i32
    return %arg0, %c0_i32, %c0_i32_0 : i32, i32, i32
  }
  func.func @transform_1(%arg0: i32) -> (i32, i32, i32) {
    %c0_i32 = arith.constant 0 : i32
    %c0_i32_0 = arith.constant 0 : i32
    %c0_i32_1 = arith.constant 0 : i32
    return %arg0, %c0_i32, %c0_i32_0 : i32, i32, i32
  }
  func.func @transform_2(%arg0: i32) -> (i32, i32, i32) {
    %c0_i32 = arith.constant 0 : i32
    %c0_i32_0 = arith.constant 0 : i32
    %c0_i32_1 = arith.constant 0 : i32
    return %arg0, %c0_i32, %c0_i32_0 : i32, i32, i32
  }
  func.func @transform_3(%arg0: i32) -> (i32, i32) {
    %c0_i32 = arith.constant 0 : i32
    %c0_i32_0 = arith.constant 0 : i32
    %c0_i32_1 = arith.constant 0 : i32
    return %c0_i32, %c0_i32_0 : i32, i32
  }
  func.func @transform_4(%arg0: i32) -> (i32, i32) {
    %c0_i32 = arith.constant 0 : i32
    %c0_i32_0 = arith.constant 0 : i32
    %c0_i32_1 = arith.constant 0 : i32
    return %c0_i32, %c0_i32_0 : i32, i32
  }
  func.func @transform_5(%arg0: i32) -> (i32, i32) {
    %c0_i32 = arith.constant 0 : i32
    %c0_i32_0 = arith.constant 0 : i32
    %c0_i32_1 = arith.constant 0 : i32
    return %c0_i32, %c0_i32_0 : i32, i32
  }
  func.func @transform_6(%arg0: i32) -> (i32, i32) {
    %c0_i32 = arith.constant 0 : i32
    %c0_i32_0 = arith.constant 0 : i32
    %c0_i32_1 = arith.constant 0 : i32
    return %c0_i32, %c0_i32_0 : i32, i32
  }
  func.func @transform_7(%arg0: i32) -> (i32, i32) {
    %c0_i32 = arith.constant 0 : i32
    %c0_i32_0 = arith.constant 0 : i32
    %c0_i32_1 = arith.constant 0 : i32
    return %c0_i32, %c0_i32_0 : i32, i32
  }
  func.func @transform_8(%arg0: i32) -> (i32, i32) {
    %c0_i32 = arith.constant 0 : i32
    %c0_i32_0 = arith.constant 0 : i32
    %c0_i32_1 = arith.constant 0 : i32
    return %c0_i32, %c0_i32_0 : i32, i32
  }
  func.func @transform_9(%arg0: i32) -> (i32, i32, i32) {
    %c0_i32 = arith.constant 0 : i32
    %c0_i32_0 = arith.constant 0 : i32
    %c0_i32_1 = arith.constant 0 : i32
    %c0_i32_2 = arith.constant 0 : i32
    return %c0_i32, %c0_i32_0, %c0_i32_1 : i32, i32, i32
  }
  func.func @transform_10(%arg0: i32) -> (i32, i32, i32) {
    %c0_i32 = arith.constant 0 : i32
    %c0_i32_0 = arith.constant 0 : i32
    %c0_i32_1 = arith.constant 0 : i32
    %c0_i32_2 = arith.constant 0 : i32
    return %c0_i32, %c0_i32_0, %c0_i32_1 : i32, i32, i32
  }
  func.func @transform_11(%arg0: i32) -> (i32, i32, i32) {
    %c0_i32 = arith.constant 0 : i32
    %c0_i32_0 = arith.constant 0 : i32
    %c0_i32_1 = arith.constant 0 : i32
    %c0_i32_2 = arith.constant 0 : i32
    return %c0_i32, %c0_i32_0, %c0_i32_1 : i32, i32, i32
  }
  func.func @transform_12(%arg0: i32) -> (i32, i32, i32) {
    %c0_i32 = arith.constant 0 : i32
    %c0_i32_0 = arith.constant 0 : i32
    %c0_i32_1 = arith.constant 0 : i32
    %c0_i32_2 = arith.constant 0 : i32
    return %c0_i32, %c0_i32_0, %c0_i32_1 : i32, i32, i32
  }
  func.func @transform_13(%arg0: i32) -> (i32, i32) {
    %c0_i32 = arith.constant 0 : i32
    %c0_i32_0 = arith.constant 0 : i32
    %c0_i32_1 = arith.constant 0 : i32
    return %c0_i32, %c0_i32_0 : i32, i32
  }
  func.func @transform_14(%arg0: i32) -> (i32, i32) {
    %c0_i32 = arith.constant 0 : i32
    %c0_i32_0 = arith.constant 0 : i32
    %c0_i32_1 = arith.constant 0 : i32
    return %c0_i32, %c0_i32_0 : i32, i32
  }
  func.func @transform_15(%arg0: i32) -> (i32, i32, i32) {
    %c0_i32 = arith.constant 0 : i32
    %c0_i32_0 = arith.constant 0 : i32
    %c0_i32_1 = arith.constant 0 : i32
    %c0_i32_2 = arith.constant 0 : i32
    return %c0_i32, %c0_i32_0, %c0_i32_1 : i32, i32, i32
  }
  func.func @transform_16(%arg0: i32) -> (i32, i32, i32) {
    %c0_i32 = arith.constant 0 : i32
    %c0_i32_0 = arith.constant 0 : i32
    %c0_i32_1 = arith.constant 0 : i32
    %c0_i32_2 = arith.constant 0 : i32
    return %c0_i32, %c0_i32_0, %c0_i32_1 : i32, i32, i32
  }
  func.func @transform_17(%arg0: i32) -> (i32, i32) {
    %c0_i32 = arith.constant 0 : i32
    %c0_i32_0 = arith.constant 0 : i32
    %c0_i32_1 = arith.constant 0 : i32
    return %c0_i32, %c0_i32_0 : i32, i32
  }
  func.func @transform_18(%arg0: i32) -> (i32, i32) {
    %c0_i32 = arith.constant 0 : i32
    %c0_i32_0 = arith.constant 0 : i32
    %c0_i32_1 = arith.constant 0 : i32
    return %c0_i32, %c0_i32_0 : i32, i32
  }
  func.func @transform_19(%arg0: i32) -> (i32, i32) {
    %c0_i32 = arith.constant 0 : i32
    %c0_i32_0 = arith.constant 0 : i32
    %c0_i32_1 = arith.constant 0 : i32
    return %c0_i32, %c0_i32_0 : i32, i32
  }
  func.func @transform_20(%arg0: i32) -> (i32, i32) {
    %c0_i32 = arith.constant 0 : i32
    %c0_i32_0 = arith.constant 0 : i32
    %c0_i32_1 = arith.constant 0 : i32
    return %c0_i32, %c0_i32_0 : i32, i32
  }
  func.func @transform_21(%arg0: i32) -> (i32, i32, i32) {
    %c0_i32 = arith.constant 0 : i32
    %c0_i32_0 = arith.constant 0 : i32
    %c0_i32_1 = arith.constant 0 : i32
    return %arg0, %c0_i32, %c0_i32_0 : i32, i32, i32
  }
}

</mosaic_0001>

<llo_original>
// kernel: tpu_custom_call.1
$region0: #{tpu_custom_call.1}
  #allocation0 [shape = 'u32[]', space=smem, size = 0x4, offset = 0x4, fixed_abs, tag = 'smem constant byte address 0x4 - core index']
  #allocation1 [shape = 'u32[72,128]{1,0:T(1,128)}', space=vmem, size = 0x9000, scoped, tag = 'internal scratch']
  %s0 = inlined_call_operand.hbm [shape: f32[2,8,16], index: 0, kind: input, shape index: {}]
  %s1 = inlined_call_operand.hbm [shape: f32[2,1,8], index: 1, kind: input, shape index: {}]
  %s2 = inlined_call_operand.hbm [shape: bf16[2,8,8], index: 2, kind: input, shape index: {}]
  %s3 = inlined_call_operand.vmem [shape: f32[1,32], index: 3, kind: input, shape index: {}]
  %s4 = inlined_call_operand.vmem [shape: f32[1,32], index: 4, kind: input, shape index: {}]
  %s5 = inlined_call_operand.hbm [shape: f32[1,32], index: 5, kind: input, shape index: {}]
  %s6 = inlined_call_operand.hbm [shape: bf16[16,32], index: 6, kind: input, shape index: {}]
  %s7 = inlined_call_operand.hbm [shape: f32[1,32], index: 7, kind: input, shape index: {}]
  %s8 = inlined_call_operand.hbm [shape: bf16[32,32], index: 8, kind: input, shape index: {}]
  %s9 = inlined_call_operand.hbm [shape: f32[3,1,32], index: 9, kind: input, shape index: {}]
  %s10 = inlined_call_operand.hbm [shape: f32[3,1,96], index: 10, kind: input, shape index: {}]
  %s11 = inlined_call_operand.hbm [shape: f32[6,1,32], index: 11, kind: input, shape index: {}]
  %s12 = inlined_call_operand.hbm [shape: bf16[6,32,32], index: 12, kind: input, shape index: {}]
  %s13 = inlined_call_operand.hbm [shape: f32[1,32], index: 13, kind: input, shape index: {}]
  %s14 = inlined_call_operand.hbm [shape: f32[1,32], index: 14, kind: input, shape index: {}]
  %s15 = inlined_call_operand.hbm [shape: bf16[3,32,32], index: 15, kind: input, shape index: {}]
  %s16 = inlined_call_operand.hbm [shape: bf16[3,32,96], index: 16, kind: input, shape index: {}]
  %s17 = inlined_call_operand.hbm [shape: f32[1,32], index: 17, kind: input, shape index: {}]
  %s18 = inlined_call_operand.hbm [shape: f32[1,128], index: 18, kind: input, shape index: {}]
  %s19 = inlined_call_operand.vmem [shape: bf16[32,32], index: 19, kind: input, shape index: {}]
  %s20 = inlined_call_operand.hbm [shape: bf16[32,128], index: 20, kind: input, shape index: {}]
  %s21 = inlined_call_operand.hbm [shape: f32[2,8,128], index: 21, kind: output, shape index: {}]
  %s22 = sld [smem:[#allocation0]]
  $region189: #{tpu_custom_call.1} parent=0
    _
  %s24 = ssub.s32 1, %s22
  %s25 = scalar_select 0, %s24, %s22
  $region1: #{tpu_custom_call.1} parent=0
    #allocation2 [shape = 'u8[8192]{0}', space=vmem, size = 0x2000, scoped, tag = 'input window, operand 0']
    #allocation3 [shape = 's32[2]{0}', space=sflag, size = 0x8, scoped, tag = 'scoped memory for tpu_custom_call.1']
    #allocation4 [shape = 's32[2]{0}', space=sflag, size = 0x8, scoped, tag = 'scoped memory for tpu_custom_call.1']
    #allocation5 [shape = 'u8[1024]{0}', space=vmem, size = 0x400, scoped, tag = 'input window, operand 1']
    #allocation6 [shape = 's32[2]{0}', space=sflag, size = 0x8, scoped, tag = 'scoped memory for tpu_custom_call.1']
    #allocation7 [shape = 'u8[4096]{0}', space=vmem, size = 0x1000, scoped, tag = 'input window, operand 2']
    #allocation8 [shape = 'u8[512]{0}', space=vmem, size = 0x400, scoped, tag = 'input window, operand 5, single buffered']
    #allocation9 [shape = 's32[1]{0}', space=sflag, size = 0x4, scoped, tag = 'scoped memory for tpu_custom_call.1']
    #allocation10 [shape = 'u8[4096]{0}', space=vmem, size = 0x1000, scoped, tag = 'input window, operand 6, single buffered']
    #allocation11 [shape = 'u8[512]{0}', space=vmem, size = 0x400, scoped, tag = 'input window, operand 7, single buffered']
    #allocation12 [shape = 's32[1]{0}', space=sflag, size = 0x4, scoped, tag = 'scoped memory for tpu_custom_call.1']
    #allocation13 [shape = 'u8[8192]{0}', space=vmem, size = 0x2000, scoped, tag = 'input window, operand 8, single buffered']
    #allocation14 [shape = 'u8[1536]{0}', space=vmem, size = 0x800, scoped, tag = 'input window, operand 9, single buffered']
    #allocation15 [shape = 's32[1]{0}', space=sflag, size = 0x4, scoped, tag = 'scoped memory for tpu_custom_call.1']
    #allocation16 [shape = 'u8[1536]{0}', space=vmem, size = 0x800, scoped, tag = 'input window, operand 10, single buffered']
    #allocation17 [shape = 'u8[3072]{0}', space=vmem, size = 0xc00, scoped, tag = 'input window, operand 11, single buffered']
    #allocation18 [shape = 's32[1]{0}', space=sflag, size = 0x4, scoped, tag = 'scoped memory for tpu_custom_call.1']
    #allocation19 [shape = 'u8[49152]{0}', space=vmem, size = 0xc000, scoped, tag = 'input window, operand 12, single buffered']
    #allocation20 [shape = 'u8[512]{0}', space=vmem, size = 0x400, scoped, tag = 'input window, operand 13, single buffered']
    #allocation21 [shape = 's32[1]{0}', space=sflag, size = 0x4, scoped, tag = 'scoped memory for tpu_custom_call.1']
    #allocation22 [shape = 'u8[512]{0}', space=vmem, size = 0x400, scoped, tag = 'input window, operand 14, single buffered']
    #allocation23 [shape = 'u8[24576]{0}', space=vmem, size = 0x6000, scoped, tag = 'input window, operand 15, single buffered']
    #allocation24 [shape = 's32[1]{0}', space=sflag, size = 0x4, scoped, tag = 'scoped memory for tpu_custom_call.1']
    #allocation25 [shape = 'u8[24576]{0}', space=vmem, size = 0x6000, scoped, tag = 'input window, operand 16, single buffered']
    #allocation26 [shape = 'u8[512]{0}', space=vmem, size = 0x400, scoped, tag = 'input window, operand 17, single buffered']
    #allocation27 [shape = 's32[1]{0}', space=sflag, size = 0x4, scoped, tag = 'scoped memory for tpu_custom_call.1']
    #allocation28 [shape = 'u8[512]{0}', space=vmem, size = 0x400, scoped, tag = 'input window, operand 18, single buffered']
    #allocation29 [shape = 'u8[8192]{0}', space=vmem, size = 0x2000, scoped, tag = 'input window, operand 20, single buffered']
    #allocation30 [shape = 's32[1]{0}', space=sflag, size = 0x4, scoped, tag = 'scoped memory for tpu_custom_call.1']
    #allocation31 [shape = 'u8[8192]{0}', space=vmem, size = 0x2000, scoped, tag = 'output window, operand 0']
    %26 = vsyncpa [#allocation3], 0
    %s27 = scalar_lea.sflag [#allocation3], 1
    %28 = vsyncpa %s27, 0
    %29 = vsyncpa [#allocation6], 0
    %s30 = scalar_lea.sflag [#allocation6], 1
    %31 = vsyncpa %s30, 0
    %32 = vsyncpa [#allocation9], 0
    %33 = vsyncpa [#allocation12], 0
    %34 = vsyncpa [#allocation15], 0
    %35 = vsyncpa [#allocation18], 0
    %36 = vsyncpa [#allocation21], 0
    %37 = vsyncpa [#allocation24], 0
    %38 = vsyncpa [#allocation27], 0
    %39 = vsyncpa [#allocation30], 0
    %40 = vsyncpa [#allocation4], 0
    %s41 = scalar_lea.sflag [#allocation4], 1
    %42 = vsyncpa %s41, 0
    loop: start=0, step=1, limit=4
    $region2: #{tpu_custom_call.1} parent=1 // loop_pre_header
      _
    $region3: #{tpu_custom_call.1} parent=1 // loop_header
      %s44 = sphi 0, %s48
      %p45 = scmp.ge.s32.totalorder %s44, 4
      %s54 = sphi 0, %s56
      %s57 = sphi 0, %s54
      %s58 = sphi 0, %s57
      %s74 = sphi 0, %s58
      %s80 = sphi 0, %s82
      %s83 = sphi 0, %s80
      %s84 = sphi 0, %s83
      %s100 = sphi 0, %s84
      %s106 = sphi 0, %s108
      %s109 = sphi 0, %s106
      %s110 = sphi 0, %s109
      %s126 = sphi 0, %s110
      %s130 = sphi 0, %s130
      %s132 = sphi 0, %s130
      %s133 = sphi 0, %s132
      %s147 = sphi 0, %s133
      %s151 = sphi 0, %s151
      %s153 = sphi 0, %s151
      %s154 = sphi 0, %s153
      %s168 = sphi 0, %s154
      %s172 = sphi 0, %s172
      %s174 = sphi 0, %s172
      %s175 = sphi 0, %s174
      %s189 = sphi 0, %s175
      %s193 = sphi 0, %s193
      %s195 = sphi 0, %s193
      %s196 = sphi 0, %s195
      %s210 = sphi 0, %s196
      %s214 = sphi 0, %s214
      %s216 = sphi 0, %s214
      %s217 = sphi 0, %s216
      %s231 = sphi 0, %s217
      %s235 = sphi 0, %s235
      %s237 = sphi 0, %s235
      %s238 = sphi 0, %s237
      %s252 = sphi 0, %s238
      %s256 = sphi 0, %s256
      %s258 = sphi 0, %s256
      %s259 = sphi 0, %s258
      %s273 = sphi 0, %s259
      %s277 = sphi 0, %s277
      %s279 = sphi 0, %s277
      %s280 = sphi 0, %s279
      %s294 = sphi 0, %s280
      %s298 = sphi 0, %s298
      %s300 = sphi 0, %s298
      %s301 = sphi 0, %s300
      %s315 = sphi 0, %s301
      %s319 = sphi 0, %s319
      %s321 = sphi 0, %s319
      %s322 = sphi 0, %s321
      %s336 = sphi 0, %s322
      %s340 = sphi 0, %s340
      %s342 = sphi 0, %s340
      %s343 = sphi 0, %s342
      %s357 = sphi 0, %s343
      %s361 = sphi 0, %s361
      %s363 = sphi 0, %s361
      %s364 = sphi 0, %s363
      %s378 = sphi 0, %s364
      %s382 = sphi 0, %s382
      %s384 = sphi 0, %s382
      %s385 = sphi 0, %s384
      %s399 = sphi 0, %s385
      %s403 = sphi 0, %s403
      %s405 = sphi 0, %s403
      %s406 = sphi 0, %s405
      %s420 = sphi 0, %s406
      %s424 = sphi 0, %s424
      %s426 = sphi 0, %s424
      %s427 = sphi 0, %s426
      %s441 = sphi 0, %s427
      %s445 = sphi 0, %s445
      %s447 = sphi 0, %s445
      %s448 = sphi 0, %s447
      %s462 = sphi 0, %s448
      %s466 = sphi 0, %s466
      %s468 = sphi 0, %s466
      %s469 = sphi 0, %s468
      %s483 = sphi 0, %s469
      %s487 = sphi 0, %s487
      %s489 = sphi 0, %s487
      %s490 = sphi 0, %s489
      %s504 = sphi 0, %s490
      %s510 = sphi 0, %s512
      %s513 = sphi 0, %s510
      %s514 = sphi 0, %s513
      %s530 = sphi 0, %s514
    $region4: #{tpu_custom_call.1} parent=1 // loop_header_branch
      %47 = sbr.rel (%p45) target = $region8
    $region5: #{tpu_custom_call.1} parent=1 // loop_body
      %s49 = ssub.s32 %s44, 1
      %s50 = ssub.s32 %s44, 2
      %s51 = sadd.s32 %s44, 1
      %s52 = ssub.s32 %s44, %s51
      %p53 = scmp.eq.s32.totalorder %s52, 0
      %s55 = sadd.s32 %s54, 1
      %s56 = scalar_select %p53, %s54, %s55
      %p59 = pneg %p53
      %p60 = scmp.eq.s32.totalorder %s44, 1
      %p61 = por %p59, %p60
      %p62 = scmp.ne.s32.totalorder %s54, %s57
      %p63 = scmp.eq.s32.totalorder %s44, 0
      %p64 = por %p62, %p63
      %p65 = scmp.ne.s32.totalorder %s54, %s57
      %p66 = scmp.eq.s32.totalorder %s49, 1
      %p67 = por %p65, %p66
      %p68 = scmp.ne.s32.totalorder %s57, %s58
      %p69 = scmp.eq.s32.totalorder %s49, 0
      %p70 = por %p68, %p69
      %p71 = scmp.ne.s32.totalorder %s57, %s58
      %p72 = scmp.eq.s32.totalorder %s50, 1
      %p73 = por %p71, %p72
      %p75 = scmp.ne.s32.totalorder %s58, %s74
      %p76 = scmp.eq.s32.totalorder %s50, 0
      %p77 = por %p75, %p76
      %s78 = ssub.s32 %s44, %s51
      %p79 = scmp.eq.s32.totalorder %s78, 0
      %s81 = sadd.s32 %s80, 1
      %s82 = scalar_select %p79, %s80, %s81
      %p85 = pneg %p79
      %p86 = scmp.eq.s32.totalorder %s44, 1
      %p87 = por %p85, %p86
      %p88 = scmp.ne.s32.totalorder %s80, %s83
      %p89 = scmp.eq.s32.totalorder %s44, 0
      %p90 = por %p88, %p89
      %p91 = scmp.ne.s32.totalorder %s80, %s83
      %p92 = scmp.eq.s32.totalorder %s49, 1
      %p93 = por %p91, %p92
      %p94 = scmp.ne.s32.totalorder %s83, %s84
      %p95 = scmp.eq.s32.totalorder %s49, 0
      %p96 = por %p94, %p95
      %p97 = scmp.ne.s32.totalorder %s83, %s84
      %p98 = scmp.eq.s32.totalorder %s50, 1
      %p99 = por %p97, %p98
      %p101 = scmp.ne.s32.totalorder %s84, %s100
      %p102 = scmp.eq.s32.totalorder %s50, 0
      %p103 = por %p101, %p102
      %s104 = ssub.s32 %s44, %s51
      %p105 = scmp.eq.s32.totalorder %s104, 0
      %s107 = sadd.s32 %s106, 1
      %s108 = scalar_select %p105, %s106, %s107
      %p111 = pneg %p105
      %p112 = scmp.eq.s32.totalorder %s44, 1
      %p113 = por %p111, %p112
      %p114 = scmp.ne.s32.totalorder %s106, %s109
      %p115 = scmp.eq.s32.totalorder %s44, 0
      %p116 = por %p114, %p115
      %p117 = scmp.ne.s32.totalorder %s106, %s109
      %p118 = scmp.eq.s32.totalorder %s49, 1
      %p119 = por %p117, %p118
      %p120 = scmp.ne.s32.totalorder %s109, %s110
      %p121 = scmp.eq.s32.totalorder %s49, 0
      %p122 = por %p120, %p121
      %p123 = scmp.ne.s32.totalorder %s109, %s110
      %p124 = scmp.eq.s32.totalorder %s50, 1
      %p125 = por %p123, %p124
      %p127 = scmp.ne.s32.totalorder %s110, %s126
      %p128 = scmp.eq.s32.totalorder %s50, 0
      %p129 = por %p127, %p128
      %s131 = sadd.s32 %s130, 1
      %p134 = scmp.eq.s32.totalorder %s44, 1
      %p135 = scmp.ne.s32.totalorder %s130, %s132
      %p136 = scmp.eq.s32.totalorder %s44, 0
      %p137 = por %p135, %p136
      %p138 = scmp.ne.s32.totalorder %s130, %s132
      %p139 = scmp.eq.s32.totalorder %s49, 1
      %p140 = por %p138, %p139
      %p141 = scmp.ne.s32.totalorder %s132, %s133
      %p142 = scmp.eq.s32.totalorder %s49, 0
      %p143 = por %p141, %p142
      %p144 = scmp.ne.s32.totalorder %s132, %s133
      %p145 = scmp.eq.s32.totalorder %s50, 1
      %p146 = por %p144, %p145
      %p148 = scmp.ne.s32.totalorder %s133, %s147
      %p149 = scmp.eq.s32.totalorder %s50, 0
      %p150 = por %p148, %p149
      %s152 = sadd.s32 %s151, 1
      %p155 = scmp.eq.s32.totalorder %s44, 1
      %p156 = scmp.ne.s32.totalorder %s151, %s153
      %p157 = scmp.eq.s32.totalorder %s44, 0
      %p158 = por %p156, %p157
      %p159 = scmp.ne.s32.totalorder %s151, %s153
      %p160 = scmp.eq.s32.totalorder %s49, 1
      %p161 = por %p159, %p160
      %p162 = scmp.ne.s32.totalorder %s153, %s154
      %p163 = scmp.eq.s32.totalorder %s49, 0
      %p164 = por %p162, %p163
      %p165 = scmp.ne.s32.totalorder %s153, %s154
      %p166 = scmp.eq.s32.totalorder %s50, 1
      %p167 = por %p165, %p166
      %p169 = scmp.ne.s32.totalorder %s154, %s168
      %p170 = scmp.eq.s32.totalorder %s50, 0
      %p171 = por %p169, %p170
      %s173 = sadd.s32 %s172, 1
      %p176 = scmp.eq.s32.totalorder %s44, 1
      %p177 = scmp.ne.s32.totalorder %s172, %s174
      %p178 = scmp.eq.s32.totalorder %s44, 0
      %p179 = por %p177, %p178
      %p180 = scmp.ne.s32.totalorder %s172, %s174
      %p181 = scmp.eq.s32.totalorder %s49, 1
      %p182 = por %p180, %p181
      %p183 = scmp.ne.s32.totalorder %s174, %s175
      %p184 = scmp.eq.s32.totalorder %s49, 0
      %p185 = por %p183, %p184
      %p186 = scmp.ne.s32.totalorder %s174, %s175
      %p187 = scmp.eq.s32.totalorder %s50, 1
      %p188 = por %p186, %p187
      %p190 = scmp.ne.s32.totalorder %s175, %s189
      %p191 = scmp.eq.s32.totalorder %s50, 0
      %p192 = por %p190, %p191
      %s194 = sadd.s32 %s193, 1
      %p197 = scmp.eq.s32.totalorder %s44, 1
      %p198 = scmp.ne.s32.totalorder %s193, %s195
      %p199 = scmp.eq.s32.totalorder %s44, 0
      %p200 = por %p198, %p199
      %p201 = scmp.ne.s32.totalorder %s193, %s195
      %p202 = scmp.eq.s32.totalorder %s49, 1
      %p203 = por %p201, %p202
      %p204 = scmp.ne.s32.totalorder %s195, %s196
      %p205 = scmp.eq.s32.totalorder %s49, 0
      %p206 = por %p204, %p205
      %p207 = scmp.ne.s32.totalorder %s195, %s196
      %p208 = scmp.eq.s32.totalorder %s50, 1
      %p209 = por %p207, %p208
      %p211 = scmp.ne.s32.totalorder %s196, %s210
      %p212 = scmp.eq.s32.totalorder %s50, 0
      %p213 = por %p211, %p212
      %s215 = sadd.s32 %s214, 1
      %p218 = scmp.eq.s32.totalorder %s44, 1
      %p219 = scmp.ne.s32.totalorder %s214, %s216
      %p220 = scmp.eq.s32.totalorder %s44, 0
      %p221 = por %p219, %p220
      %p222 = scmp.ne.s32.totalorder %s214, %s216
      %p223 = scmp.eq.s32.totalorder %s49, 1
      %p224 = por %p222, %p223
      %p225 = scmp.ne.s32.totalorder %s216, %s217
      %p226 = scmp.eq.s32.totalorder %s49, 0
      %p227 = por %p225, %p226
      %p228 = scmp.ne.s32.totalorder %s216, %s217
      %p229 = scmp.eq.s32.totalorder %s50, 1
      %p230 = por %p228, %p229
      %p232 = scmp.ne.s32.totalorder %s217, %s231
      %p233 = scmp.eq.s32.totalorder %s50, 0
      %p234 = por %p232, %p233
      %s236 = sadd.s32 %s235, 1
      %p239 = scmp.eq.s32.totalorder %s44, 1
      %p240 = scmp.ne.s32.totalorder %s235, %s237
      %p241 = scmp.eq.s32.totalorder %s44, 0
      %p242 = por %p240, %p241
      %p243 = scmp.ne.s32.totalorder %s235, %s237
      %p244 = scmp.eq.s32.totalorder %s49, 1
      %p245 = por %p243, %p244
      %p246 = scmp.ne.s32.totalorder %s237, %s238
      %p247 = scmp.eq.s32.totalorder %s49, 0
      %p248 = por %p246, %p247
      %p249 = scmp.ne.s32.totalorder %s237, %s238
      %p250 = scmp.eq.s32.totalorder %s50, 1
      %p251 = por %p249, %p250
      %p253 = scmp.ne.s32.totalorder %s238, %s252
      %p254 = scmp.eq.s32.totalorder %s50, 0
      %p255 = por %p253, %p254
      %s257 = sadd.s32 %s256, 1
      %p260 = scmp.eq.s32.totalorder %s44, 1
      %p261 = scmp.ne.s32.totalorder %s256, %s258
      %p262 = scmp.eq.s32.totalorder %s44, 0
      %p263 = por %p261, %p262
      %p264 = scmp.ne.s32.totalorder %s256, %s258
      %p265 = scmp.eq.s32.totalorder %s49, 1
      %p266 = por %p264, %p265
      %p267 = scmp.ne.s32.totalorder %s258, %s259
      %p268 = scmp.eq.s32.totalorder %s49, 0
      %p269 = por %p267, %p268
      %p270 = scmp.ne.s32.totalorder %s258, %s259
      %p271 = scmp.eq.s32.totalorder %s50, 1
      %p272 = por %p270, %p271
      %p274 = scmp.ne.s32.totalorder %s259, %s273
      %p275 = scmp.eq.s32.totalorder %s50, 0
      %p276 = por %p274, %p275
      %s278 = sadd.s32 %s277, 1
      %p281 = scmp.eq.s32.totalorder %s44, 1
      %p282 = scmp.ne.s32.totalorder %s277, %s279
      %p283 = scmp.eq.s32.totalorder %s44, 0
      %p284 = por %p282, %p283
      %p285 = scmp.ne.s32.totalorder %s277, %s279
      %p286 = scmp.eq.s32.totalorder %s49, 1
      %p287 = por %p285, %p286
      %p288 = scmp.ne.s32.totalorder %s279, %s280
      %p289 = scmp.eq.s32.totalorder %s49, 0
      %p290 = por %p288, %p289
      %p291 = scmp.ne.s32.totalorder %s279, %s280
      %p292 = scmp.eq.s32.totalorder %s50, 1
      %p293 = por %p291, %p292
      %p295 = scmp.ne.s32.totalorder %s280, %s294
      %p296 = scmp.eq.s32.totalorder %s50, 0
      %p297 = por %p295, %p296
      %s299 = sadd.s32 %s298, 1
      %p302 = scmp.eq.s32.totalorder %s44, 1
      %p303 = scmp.ne.s32.totalorder %s298, %s300
      %p304 = scmp.eq.s32.totalorder %s44, 0
      %p305 = por %p303, %p304
      %p306 = scmp.ne.s32.totalorder %s298, %s300
      %p307 = scmp.eq.s32.totalorder %s49, 1
      %p308 = por %p306, %p307
      %p309 = scmp.ne.s32.totalorder %s300, %s301
      %p310 = scmp.eq.s32.totalorder %s49, 0
      %p311 = por %p309, %p310
      %p312 = scmp.ne.s32.totalorder %s300, %s301
      %p313 = scmp.eq.s32.totalorder %s50, 1
      %p314 = por %p312, %p313
      %p316 = scmp.ne.s32.totalorder %s301, %s315
      %p317 = scmp.eq.s32.totalorder %s50, 0
      %p318 = por %p316, %p317
      %s320 = sadd.s32 %s319, 1
      %p323 = scmp.eq.s32.totalorder %s44, 1
      %p324 = scmp.ne.s32.totalorder %s319, %s321
      %p325 = scmp.eq.s32.totalorder %s44, 0
      %p326 = por %p324, %p325
      %p327 = scmp.ne.s32.totalorder %s319, %s321
      %p328 = scmp.eq.s32.totalorder %s49, 1
      %p329 = por %p327, %p328
      %p330 = scmp.ne.s32.totalorder %s321, %s322
      %p331 = scmp.eq.s32.totalorder %s49, 0
      %p332 = por %p330, %p331
      %p333 = scmp.ne.s32.totalorder %s321, %s322
      %p334 = scmp.eq.s32.totalorder %s50, 1
      %p335 = por %p333, %p334
      %p337 = scmp.ne.s32.totalorder %s322, %s336
      %p338 = scmp.eq.s32.totalorder %s50, 0
      %p339 = por %p337, %p338
      %s341 = sadd.s32 %s340, 1
      %p344 = scmp.eq.s32.totalorder %s44, 1
      %p345 = scmp.ne.s32.totalorder %s340, %s342
      %p346 = scmp.eq.s32.totalorder %s44, 0
      %p347 = por %p345, %p346
      %p348 = scmp.ne.s32.totalorder %s340, %s342
      %p349 = scmp.eq.s32.totalorder %s49, 1
      %p350 = por %p348, %p349
      %p351 = scmp.ne.s32.totalorder %s342, %s343
      %p352 = scmp.eq.s32.totalorder %s49, 0
      %p353 = por %p351, %p352
      %p354 = scmp.ne.s32.totalorder %s342, %s343
      %p355 = scmp.eq.s32.totalorder %s50, 1
      %p356 = por %p354, %p355
      %p358 = scmp.ne.s32.totalorder %s343, %s357
      %p359 = scmp.eq.s32.totalorder %s50, 0
      %p360 = por %p358, %p359
      %s362 = sadd.s32 %s361, 1
      %p365 = scmp.eq.s32.totalorder %s44, 1
      %p366 = scmp.ne.s32.totalorder %s361, %s363
      %p367 = scmp.eq.s32.totalorder %s44, 0
      %p368 = por %p366, %p367
      %p369 = scmp.ne.s32.totalorder %s361, %s363
      %p370 = scmp.eq.s32.totalorder %s49, 1
      %p371 = por %p369, %p370
      %p372 = scmp.ne.s32.totalorder %s363, %s364
      %p373 = scmp.eq.s32.totalorder %s49, 0
      %p374 = por %p372, %p373
      %p375 = scmp.ne.s32.totalorder %s363, %s364
      %p376 = scmp.eq.s32.totalorder %s50, 1
      %p377 = por %p375, %p376
      %p379 = scmp.ne.s32.totalorder %s364, %s378
      %p380 = scmp.eq.s32.totalorder %s50, 0
      %p381 = por %p379, %p380
      %s383 = sadd.s32 %s382, 1
      %p386 = scmp.eq.s32.totalorder %s44, 1
      %p387 = scmp.ne.s32.totalorder %s382, %s384
      %p388 = scmp.eq.s32.totalorder %s44, 0
      %p389 = por %p387, %p388
      %p390 = scmp.ne.s32.totalorder %s382, %s384
      %p391 = scmp.eq.s32.totalorder %s49, 1
      %p392 = por %p390, %p391
      %p393 = scmp.ne.s32.totalorder %s384, %s385
      %p394 = scmp.eq.s32.totalorder %s49, 0
      %p395 = por %p393, %p394
      %p396 = scmp.ne.s32.totalorder %s384, %s385
      %p397 = scmp.eq.s32.totalorder %s50, 1
      %p398 = por %p396, %p397
      %p400 = scmp.ne.s32.totalorder %s385, %s399
      %p401 = scmp.eq.s32.totalorder %s50, 0
      %p402 = por %p400, %p401
      %s404 = sadd.s32 %s403, 1
      %p407 = scmp.eq.s32.totalorder %s44, 1
      %p408 = scmp.ne.s32.totalorder %s403, %s405
      %p409 = scmp.eq.s32.totalorder %s44, 0
      %p410 = por %p408, %p409
      %p411 = scmp.ne.s32.totalorder %s403, %s405
      %p412 = scmp.eq.s32.totalorder %s49, 1
      %p413 = por %p411, %p412
      %p414 = scmp.ne.s32.totalorder %s405, %s406
      %p415 = scmp.eq.s32.totalorder %s49, 0
      %p416 = por %p414, %p415
      %p417 = scmp.ne.s32.totalorder %s405, %s406
      %p418 = scmp.eq.s32.totalorder %s50, 1
      %p419 = por %p417, %p418
      %p421 = scmp.ne.s32.totalorder %s406, %s420
      %p422 = scmp.eq.s32.totalorder %s50, 0
      %p423 = por %p421, %p422
      %s425 = sadd.s32 %s424, 1
      %p428 = scmp.eq.s32.totalorder %s44, 1
      %p429 = scmp.ne.s32.totalorder %s424, %s426
      %p430 = scmp.eq.s32.totalorder %s44, 0
      %p431 = por %p429, %p430
      %p432 = scmp.ne.s32.totalorder %s424, %s426
      %p433 = scmp.eq.s32.totalorder %s49, 1
      %p434 = por %p432, %p433
      %p435 = scmp.ne.s32.totalorder %s426, %s427
      %p436 = scmp.eq.s32.totalorder %s49, 0
      %p437 = por %p435, %p436
      %p438 = scmp.ne.s32.totalorder %s426, %s427
      %p439 = scmp.eq.s32.totalorder %s50, 1
      %p440 = por %p438, %p439
      %p442 = scmp.ne.s32.totalorder %s427, %s441
      %p443 = scmp.eq.s32.totalorder %s50, 0
      %p444 = por %p442, %p443
      %s446 = sadd.s32 %s445, 1
      %p449 = scmp.eq.s32.totalorder %s44, 1
      %p450 = scmp.ne.s32.totalorder %s445, %s447
      %p451 = scmp.eq.s32.totalorder %s44, 0
      %p452 = por %p450, %p451
      %p453 = scmp.ne.s32.totalorder %s445, %s447
      %p454 = scmp.eq.s32.totalorder %s49, 1
      %p455 = por %p453, %p454
      %p456 = scmp.ne.s32.totalorder %s447, %s448
      %p457 = scmp.eq.s32.totalorder %s49, 0
      %p458 = por %p456, %p457
      %p459 = scmp.ne.s32.totalorder %s447, %s448
      %p460 = scmp.eq.s32.totalorder %s50, 1
      %p461 = por %p459, %p460
      %p463 = scmp.ne.s32.totalorder %s448, %s462
      %p464 = scmp.eq.s32.totalorder %s50, 0
      %p465 = por %p463, %p464
      %s467 = sadd.s32 %s466, 1
      %p470 = scmp.eq.s32.totalorder %s44, 1
      %p471 = scmp.ne.s32.totalorder %s466, %s468
      %p472 = scmp.eq.s32.totalorder %s44, 0
      %p473 = por %p471, %p472
      %p474 = scmp.ne.s32.totalorder %s466, %s468
      %p475 = scmp.eq.s32.totalorder %s49, 1
      %p476 = por %p474, %p475
      %p477 = scmp.ne.s32.totalorder %s468, %s469
      %p478 = scmp.eq.s32.totalorder %s49, 0
      %p479 = por %p477, %p478
      %p480 = scmp.ne.s32.totalorder %s468, %s469
      %p481 = scmp.eq.s32.totalorder %s50, 1
      %p482 = por %p480, %p481
      %p484 = scmp.ne.s32.totalorder %s469, %s483
      %p485 = scmp.eq.s32.totalorder %s50, 0
      %p486 = por %p484, %p485
      %s488 = sadd.s32 %s487, 1
      %p491 = scmp.eq.s32.totalorder %s44, 1
      %p492 = scmp.ne.s32.totalorder %s487, %s489
      %p493 = scmp.eq.s32.totalorder %s44, 0
      %p494 = por %p492, %p493
      %p495 = scmp.ne.s32.totalorder %s487, %s489
      %p496 = scmp.eq.s32.totalorder %s49, 1
      %p497 = por %p495, %p496
      %p498 = scmp.ne.s32.totalorder %s489, %s490
      %p499 = scmp.eq.s32.totalorder %s49, 0
      %p500 = por %p498, %p499
      %p501 = scmp.ne.s32.totalorder %s489, %s490
      %p502 = scmp.eq.s32.totalorder %s50, 1
      %p503 = por %p501, %p502
      %p505 = scmp.ne.s32.totalorder %s490, %s504
      %p506 = scmp.eq.s32.totalorder %s50, 0
      %p507 = por %p505, %p506
      %s508 = ssub.s32 %s44, %s51
      %p509 = scmp.eq.s32.totalorder %s508, 0
      %s511 = sadd.s32 %s510, 1
      %s512 = scalar_select %p509, %s510, %s511
      %p515 = pneg %p509
      %p516 = scmp.eq.s32.totalorder %s44, 1
      %p517 = por %p515, %p516
      %p518 = scmp.ne.s32.totalorder %s510, %s513
      %p519 = scmp.eq.s32.totalorder %s44, 0
      %p520 = por %p518, %p519
      %p521 = scmp.ne.s32.totalorder %s510, %s513
      %p522 = scmp.eq.s32.totalorder %s49, 1
      %p523 = por %p521, %p522
      %p524 = scmp.ne.s32.totalorder %s513, %s514
      %p525 = scmp.eq.s32.totalorder %s49, 0
      %p526 = por %p524, %p525
      %p527 = scmp.ne.s32.totalorder %s513, %s514
      %p528 = scmp.eq.s32.totalorder %s50, 1
      %p529 = por %p527, %p528
      %p531 = scmp.ne.s32.totalorder %s514, %s530
      %p532 = scmp.eq.s32.totalorder %s50, 0
      %p533 = por %p531, %p532
      %p534 = scmp.le.s32.totalorder 1, %s44
      %p535 = scmp.lt.s32.totalorder %s44, 3
      %p536 = pnand %p534, %p535
      %p537 = pneg %p536
      // Predicated region
      $region9: #{tpu_custom_call.1} parent=5 // pred_check
        _
      $region10: #{tpu_custom_call.1} parent=5 // pred_check_branch
        %539 = sbr.rel (%p536) target = $region12
      $region11: #{tpu_custom_call.1} parent=5 // pred_region
        %s540 = ssub.s32 %s44, 1
        // Predicated region
        $region13: #{tpu_custom_call.1} parent=11 // pred_check
          %p541 = pneg %p143
        $region14: #{tpu_custom_call.1} parent=11 // pred_check_branch
          %543 = sbr.rel (%p541) target = $region16
        $region15: #{tpu_custom_call.1} parent=11 // pred_region
          _
        $region16: #{tpu_custom_call.1} parent=11 // pred_fallthru
          _
        // Predicated region
        $region17: #{tpu_custom_call.1} parent=11 // pred_check
          %p544 = pneg %p164
        $region18: #{tpu_custom_call.1} parent=11 // pred_check_branch
          %546 = sbr.rel (%p544) target = $region20
        $region19: #{tpu_custom_call.1} parent=11 // pred_region
          _
        $region20: #{tpu_custom_call.1} parent=11 // pred_fallthru
          _
        // Predicated region
        $region21: #{tpu_custom_call.1} parent=11 // pred_check
          %p547 = pneg %p185
        $region22: #{tpu_custom_call.1} parent=11 // pred_check_branch
          %549 = sbr.rel (%p547) target = $region24
        $region23: #{tpu_custom_call.1} parent=11 // pred_region
          %551 = vsyncadd [#allocation9], 0
          %s553 = sshll.u32 %s5, 4
          %s554 = int_to_ptr.hbm [resolvable:$true] %s553
          %s555 = sshll.u32 [#allocation8], 4
          %s556 = int_to_ptr.vmem [resolvable:$true] %s555
          %558 = dma.hbm_to_vmem [thread:$0]  %s554, 16, %s556, [#allocation9]
        $region24: #{tpu_custom_call.1} parent=11 // pred_fallthru
          _
        // Predicated region
        $region25: #{tpu_custom_call.1} parent=11 // pred_check
          %p559 = pneg %p206
        $region26: #{tpu_custom_call.1} parent=11 // pred_check_branch
          %561 = sbr.rel (%p559) target = $region28
        $region27: #{tpu_custom_call.1} parent=11 // pred_region
          %563 = vsyncadd [#allocation9], 0
          %s564 = sshll.u32 %s6, 4
          %s565 = int_to_ptr.hbm [resolvable:$true] %s564
          %s566 = sshll.u32 [#allocation10], 4
          %s567 = int_to_ptr.vmem [resolvable:$true] %s566
          %572 = dma.hbm_to_vmem [thread:$0]  %s565, 128, %s567, [#allocation9], 64, 64, 4
        $region28: #{tpu_custom_call.1} parent=11 // pred_fallthru
          _
        // Predicated region
        $region29: #{tpu_custom_call.1} parent=11 // pred_check
          %p573 = pneg %p227
        $region30: #{tpu_custom_call.1} parent=11 // pred_check_branch
          %575 = sbr.rel (%p573) target = $region32
        $region31: #{tpu_custom_call.1} parent=11 // pred_region
          %577 = vsyncadd [#allocation12], 0
          %s579 = sshll.u32 %s7, 4
          %s580 = int_to_ptr.hbm [resolvable:$true] %s579
          %s581 = sshll.u32 [#allocation11], 4
          %s582 = int_to_ptr.vmem [resolvable:$true] %s581
          %584 = dma.hbm_to_vmem [thread:$0]  %s580, 16, %s582, [#allocation12]
        $region32: #{tpu_custom_call.1} parent=11 // pred_fallthru
          _
        // Predicated region
        $region33: #{tpu_custom_call.1} parent=11 // pred_check
          %p585 = pneg %p248
        $region34: #{tpu_custom_call.1} parent=11 // pred_check_branch
          %587 = sbr.rel (%p585) target = $region36
        $region35: #{tpu_custom_call.1} parent=11 // pred_region
          %589 = vsyncadd [#allocation12], 0
          %s590 = sshll.u32 %s8, 4
          %s591 = int_to_ptr.hbm [resolvable:$true] %s590
          %s592 = sshll.u32 [#allocation13], 4
          %s593 = int_to_ptr.vmem [resolvable:$true] %s592
          %598 = dma.hbm_to_vmem [thread:$0]  %s591, 256, %s593, [#allocation12], 64, 64, 4
        $region36: #{tpu_custom_call.1} parent=11 // pred_fallthru
          _
        // Predicated region
        $region37: #{tpu_custom_call.1} parent=11 // pred_check
          %p599 = pneg %p269
        $region38: #{tpu_custom_call.1} parent=11 // pred_check_branch
          %601 = sbr.rel (%p599) target = $region40
        $region39: #{tpu_custom_call.1} parent=11 // pred_region
          %603 = vsyncadd [#allocation15], 0
          %s604 = sshll.u32 %s9, 4
          %s605 = int_to_ptr.hbm [resolvable:$true] %s604
          %s606 = sshll.u32 [#allocation14], 4
          %s607 = int_to_ptr.vmem [resolvable:$true] %s606
          %612 = dma.hbm_to_vmem [thread:$0]  %s605, 48, %s607, [#allocation15], 16, 16, 1
        $region40: #{tpu_custom_call.1} parent=11 // pred_fallthru
          _
        // Predicated region
        $region41: #{tpu_custom_call.1} parent=11 // pred_check
          %p613 = pneg %p290
        $region42: #{tpu_custom_call.1} parent=11 // pred_check_branch
          %615 = sbr.rel (%p613) target = $region44
        $region43: #{tpu_custom_call.1} parent=11 // pred_region
          %617 = vsyncadd [#allocation15], 0
          %s618 = sshll.u32 %s10, 4
          %s619 = int_to_ptr.hbm [resolvable:$true] %s618
          %s620 = sshll.u32 [#allocation16], 4
          %s621 = int_to_ptr.vmem [resolvable:$true] %s620
          %626 = dma.hbm_to_vmem [thread:$0]  %s619, 48, %s621, [#allocation15], 16, 16, 1
        $region44: #{tpu_custom_call.1} parent=11 // pred_fallthru
          _
        // Predicated region
        $region45: #{tpu_custom_call.1} parent=11 // pred_check
          %p627 = pneg %p311
        $region46: #{tpu_custom_call.1} parent=11 // pred_check_branch
          %629 = sbr.rel (%p627) target = $region48
        $region47: #{tpu_custom_call.1} parent=11 // pred_region
          %631 = vsyncadd [#allocation18], 0
          %s632 = sshll.u32 %s11, 4
          %s633 = int_to_ptr.hbm [resolvable:$true] %s632
          %s634 = sshll.u32 [#allocation17], 4
          %s635 = int_to_ptr.vmem [resolvable:$true] %s634
          %640 = dma.hbm_to_vmem [thread:$0]  %s633, 96, %s635, [#allocation18], 16, 16, 1
        $region48: #{tpu_custom_call.1} parent=11 // pred_fallthru
          _
        // Predicated region
        $region49: #{tpu_custom_call.1} parent=11 // pred_check
          %p641 = pneg %p332
        $region50: #{tpu_custom_call.1} parent=11 // pred_check_branch
          %643 = sbr.rel (%p641) target = $region52
        $region51: #{tpu_custom_call.1} parent=11 // pred_region
          %645 = vsyncadd [#allocation18], 0
          %s646 = sshll.u32 %s12, 4
          %s647 = int_to_ptr.hbm [resolvable:$true] %s646
          %s648 = sshll.u32 [#allocation19], 4
          %s649 = int_to_ptr.vmem [resolvable:$true] %s648
          %654 = dma.hbm_to_vmem [thread:$0]  %s647, 1536, %s649, [#allocation18], 64, 64, 4
        $region52: #{tpu_custom_call.1} parent=11 // pred_fallthru
          _
        // Predicated region
        $region53: #{tpu_custom_call.1} parent=11 // pred_check
          %p655 = pneg %p353
        $region54: #{tpu_custom_call.1} parent=11 // pred_check_branch
          %657 = sbr.rel (%p655) target = $region56
        $region55: #{tpu_custom_call.1} parent=11 // pred_region
          %659 = vsyncadd [#allocation21], 0
          %s661 = sshll.u32 %s13, 4
          %s662 = int_to_ptr.hbm [resolvable:$true] %s661
          %s663 = sshll.u32 [#allocation20], 4
          %s664 = int_to_ptr.vmem [resolvable:$true] %s663
          %666 = dma.hbm_to_vmem [thread:$0]  %s662, 16, %s664, [#allocation21]
        $region56: #{tpu_custom_call.1} parent=11 // pred_fallthru
          _
        // Predicated region
        $region57: #{tpu_custom_call.1} parent=11 // pred_check
          %p667 = pneg %p374
        $region58: #{tpu_custom_call.1} parent=11 // pred_check_branch
          %669 = sbr.rel (%p667) target = $region60
        $region59: #{tpu_custom_call.1} parent=11 // pred_region
          %671 = vsyncadd [#allocation21], 0
          %s673 = sshll.u32 %s14, 4
          %s674 = int_to_ptr.hbm [resolvable:$true] %s673
          %s675 = sshll.u32 [#allocation22], 4
          %s676 = int_to_ptr.vmem [resolvable:$true] %s675
          %678 = dma.hbm_to_vmem [thread:$0]  %s674, 16, %s676, [#allocation21]
        $region60: #{tpu_custom_call.1} parent=11 // pred_fallthru
          _
        // Predicated region
        $region61: #{tpu_custom_call.1} parent=11 // pred_check
          %p679 = pneg %p395
        $region62: #{tpu_custom_call.1} parent=11 // pred_check_branch
          %681 = sbr.rel (%p679) target = $region64
        $region63: #{tpu_custom_call.1} parent=11 // pred_region
          %683 = vsyncadd [#allocation24], 0
          %s684 = sshll.u32 %s15, 4
          %s685 = int_to_ptr.hbm [resolvable:$true] %s684
          %s686 = sshll.u32 [#allocation23], 4
          %s687 = int_to_ptr.vmem [resolvable:$true] %s686
          %692 = dma.hbm_to_vmem [thread:$0]  %s685, 768, %s687, [#allocation24], 64, 64, 4
        $region64: #{tpu_custom_call.1} parent=11 // pred_fallthru
          _
        // Predicated region
        $region65: #{tpu_custom_call.1} parent=11 // pred_check
          %p693 = pneg %p416
        $region66: #{tpu_custom_call.1} parent=11 // pred_check_branch
          %695 = sbr.rel (%p693) target = $region68
        $region67: #{tpu_custom_call.1} parent=11 // pred_region
          %697 = vsyncadd [#allocation24], 0
          %s698 = sshll.u32 %s16, 4
          %s699 = int_to_ptr.hbm [resolvable:$true] %s698
          %s700 = sshll.u32 [#allocation25], 4
          %s701 = int_to_ptr.vmem [resolvable:$true] %s700
          %706 = dma.hbm_to_vmem [thread:$0]  %s699, 768, %s701, [#allocation24], 64, 64, 4
        $region68: #{tpu_custom_call.1} parent=11 // pred_fallthru
          _
        // Predicated region
        $region69: #{tpu_custom_call.1} parent=11 // pred_check
          %p707 = pneg %p437
        $region70: #{tpu_custom_call.1} parent=11 // pred_check_branch
          %709 = sbr.rel (%p707) target = $region72
        $region71: #{tpu_custom_call.1} parent=11 // pred_region
          %711 = vsyncadd [#allocation27], 0
          %s713 = sshll.u32 %s17, 4
          %s714 = int_to_ptr.hbm [resolvable:$true] %s713
          %s715 = sshll.u32 [#allocation26], 4
          %s716 = int_to_ptr.vmem [resolvable:$true] %s715
          %718 = dma.hbm_to_vmem [thread:$0]  %s714, 16, %s716, [#allocation27]
        $region72: #{tpu_custom_call.1} parent=11 // pred_fallthru
          _
        // Predicated region
        $region73: #{tpu_custom_call.1} parent=11 // pred_check
          %p719 = pneg %p458
        $region74: #{tpu_custom_call.1} parent=11 // pred_check_branch
          %721 = sbr.rel (%p719) target = $region76
        $region75: #{tpu_custom_call.1} parent=11 // pred_region
          %723 = vsyncadd [#allocation27], 0
          %s725 = sshll.u32 %s18, 4
          %s726 = int_to_ptr.hbm [resolvable:$true] %s725
          %s727 = sshll.u32 [#allocation28], 4
          %s728 = int_to_ptr.vmem [resolvable:$true] %s727
          %730 = dma.hbm_to_vmem [thread:$0]  %s726, 16, %s728, [#allocation27]
        $region76: #{tpu_custom_call.1} parent=11 // pred_fallthru
          _
        // Predicated region
        $region77: #{tpu_custom_call.1} parent=11 // pred_check
          %p731 = pneg %p479
        $region78: #{tpu_custom_call.1} parent=11 // pred_check_branch
          %733 = sbr.rel (%p731) target = $region80
        $region79: #{tpu_custom_call.1} parent=11 // pred_region
          _
        $region80: #{tpu_custom_call.1} parent=11 // pred_fallthru
          _
        // Predicated region
        $region81: #{tpu_custom_call.1} parent=11 // pred_check
          %p734 = pneg %p500
        $region82: #{tpu_custom_call.1} parent=11 // pred_check_branch
          %736 = sbr.rel (%p734) target = $region84
        $region83: #{tpu_custom_call.1} parent=11 // pred_region
          %738 = vsyncadd [#allocation30], 0
          %s739 = sshll.u32 %s20, 4
          %s740 = int_to_ptr.hbm [resolvable:$true] %s739
          %s741 = sshll.u32 [#allocation29], 4
          %s742 = int_to_ptr.vmem [resolvable:$true] %s741
          %747 = dma.hbm_to_vmem [thread:$0]  %s740, 256, %s742, [#allocation30], 64, 64, 4
        $region84: #{tpu_custom_call.1} parent=11 // pred_fallthru
          _
      $region12: #{tpu_custom_call.1} parent=5 // pred_fallthru
        _
      %p748 = scmp.lt.s32.totalorder %s44, 2
      // Predicated region
      $region85: #{tpu_custom_call.1} parent=5 // pred_check
        %p749 = pneg %p748
      $region86: #{tpu_custom_call.1} parent=5 // pred_check_branch
        %751 = sbr.rel (%p749) target = $region88
      $region87: #{tpu_custom_call.1} parent=5 // pred_region
        // Predicated region
        $region89: #{tpu_custom_call.1} parent=87 // pred_check
          %p752 = pneg %p64
        $region90: #{tpu_custom_call.1} parent=87 // pred_check_branch
          %754 = sbr.rel (%p752) target = $region92
        $region91: #{tpu_custom_call.1} parent=87 // pred_region
          %s755 = sand.u32 %s54, 1
          %s756 = scalar_lea.sflag [#allocation3], %s755
          %s757 = sand.u32 %s54, 1
          %s758 = smul.addr %s757, 8
          %s759 = scalar_lea.vmem [#allocation2], %s758
          %761 = vsyncadd %s756, 0
          %s762 = smul.addr %s44, 8
          %s763 = scalar_lea.hbm %s0, %s762
          %s765 = sshll.u32 %s763, 4
          %s766 = int_to_ptr.hbm [resolvable:$true] %s765
          %s767 = sshll.u32 %s759, 4
          %s768 = int_to_ptr.vmem [resolvable:$true] %s767
          %770 = dma.hbm_to_vmem [thread:$0]  %s766, 128, %s768, %s756
        $region92: #{tpu_custom_call.1} parent=87 // pred_fallthru
          _
        // Predicated region
        $region93: #{tpu_custom_call.1} parent=87 // pred_check
          %p771 = pneg %p90
        $region94: #{tpu_custom_call.1} parent=87 // pred_check_branch
          %773 = sbr.rel (%p771) target = $region96
        $region95: #{tpu_custom_call.1} parent=87 // pred_region
          %s774 = sand.u32 %s44, 1
          %s775 = scalar_lea.sflag [#allocation6], %s774
          %s776 = sand.u32 %s80, 1
          %s777 = scalar_lea.vmem [#allocation5], %s776
          %779 = vsyncadd %s775, 0
          %s780 = scalar_lea.hbm %s1, %s44
          %s782 = sshll.u32 %s780, 4
          %s783 = int_to_ptr.hbm [resolvable:$true] %s782
          %s784 = sshll.u32 %s777, 4
          %s785 = int_to_ptr.vmem [resolvable:$true] %s784
          %787 = dma.hbm_to_vmem [thread:$0]  %s783, 16, %s785, %s775
        $region96: #{tpu_custom_call.1} parent=87 // pred_fallthru
          _
        // Predicated region
        $region97: #{tpu_custom_call.1} parent=87 // pred_check
          %p788 = pneg %p116
        $region98: #{tpu_custom_call.1} parent=87 // pred_check_branch
          %790 = sbr.rel (%p788) target = $region100
        $region99: #{tpu_custom_call.1} parent=87 // pred_region
          %s791 = sand.u32 %s44, 1
          %s792 = scalar_lea.sflag [#allocation6], %s791
          %s793 = sand.u32 %s106, 1
          %s794 = smul.addr %s793, 4
          %s795 = scalar_lea.vmem [#allocation7], %s794
          %797 = vsyncadd %s792, 0
          %s798 = smul.addr %s44, 4
          %s799 = scalar_lea.hbm %s2, %s798
          %s801 = sshll.u32 %s799, 4
          %s802 = int_to_ptr.hbm [resolvable:$true] %s801
          %s803 = sshll.u32 %s795, 4
          %s804 = int_to_ptr.vmem [resolvable:$true] %s803
          %806 = dma.hbm_to_vmem [thread:$0]  %s802, 64, %s804, %s792
        $region100: #{tpu_custom_call.1} parent=87 // pred_fallthru
          _
      $region88: #{tpu_custom_call.1} parent=5 // pred_fallthru
        _
      %p807 = scmp.le.s32.totalorder 1, %s44
      %p808 = scmp.lt.s32.totalorder %s44, 3
      %p809 = pnand %p807, %p808
      %p810 = pneg %p809
      // Predicated region
      $region101: #{tpu_custom_call.1} parent=5 // pred_check
        _
      $region102: #{tpu_custom_call.1} parent=5 // pred_check_branch
        %812 = sbr.rel (%p809) target = $region104
      $region103: #{tpu_custom_call.1} parent=5 // pred_region
        %s813 = ssub.s32 %s44, 1
        %s814 = sand.u32 %s57, 1
        %s815 = scalar_lea.sflag [#allocation3], %s814
        %s816 = sand.u32 %s57, 1
        %s817 = smul.addr %s816, 8
        %s818 = scalar_lea.vmem [#allocation2], %s817
        // Predicated region
        $region105: #{tpu_custom_call.1} parent=103 // pred_check
          %p819 = pneg %p70
        $region106: #{tpu_custom_call.1} parent=103 // pred_check_branch
          %821 = sbr.rel (%p819) target = $region108
        $region107: #{tpu_custom_call.1} parent=103 // pred_region
          %823 = dma.done %s815, 128
        $region108: #{tpu_custom_call.1} parent=103 // pred_fallthru
          _
        %s824 = sand.u32 %s49, 1
        %s825 = scalar_lea.sflag [#allocation6], %s824
        %s826 = sand.u32 %s83, 1
        %s827 = scalar_lea.vmem [#allocation5], %s826
        // Predicated region
        $region109: #{tpu_custom_call.1} parent=103 // pred_check
          %p828 = pneg %p96
        $region110: #{tpu_custom_call.1} parent=103 // pred_check_branch
          %830 = sbr.rel (%p828) target = $region112
        $region111: #{tpu_custom_call.1} parent=103 // pred_region
          %832 = dma.done %s825, 16
        $region112: #{tpu_custom_call.1} parent=103 // pred_fallthru
          _
        %s833 = sand.u32 %s49, 1
        %s834 = scalar_lea.sflag [#allocation6], %s833
        %s835 = sand.u32 %s109, 1
        %s836 = smul.addr %s835, 4
        %s837 = scalar_lea.vmem [#allocation7], %s836
        // Predicated region
        $region113: #{tpu_custom_call.1} parent=103 // pred_check
          %p838 = pneg %p122
        $region114: #{tpu_custom_call.1} parent=103 // pred_check_branch
          %840 = sbr.rel (%p838) target = $region116
        $region115: #{tpu_custom_call.1} parent=103 // pred_region
          %842 = dma.done %s834, 64
        $region116: #{tpu_custom_call.1} parent=103 // pred_fallthru
          _
        // Predicated region
        $region117: #{tpu_custom_call.1} parent=103 // pred_check
          %p843 = pneg %p185
        $region118: #{tpu_custom_call.1} parent=103 // pred_check_branch
          %845 = sbr.rel (%p843) target = $region120
        $region119: #{tpu_custom_call.1} parent=103 // pred_region
          %847 = dma.done [#allocation9], 16
        $region120: #{tpu_custom_call.1} parent=103 // pred_fallthru
          _
        // Predicated region
        $region121: #{tpu_custom_call.1} parent=103 // pred_check
          %p848 = pneg %p206
        $region122: #{tpu_custom_call.1} parent=103 // pred_check_branch
          %850 = sbr.rel (%p848) target = $region124
        $region123: #{tpu_custom_call.1} parent=103 // pred_region
          %852 = dma.done [#allocation9], 128
        $region124: #{tpu_custom_call.1} parent=103 // pred_fallthru
          _
        // Predicated region
        $region125: #{tpu_custom_call.1} parent=103 // pred_check
          %p853 = pneg %p227
        $region126: #{tpu_custom_call.1} parent=103 // pred_check_branch
          %855 = sbr.rel (%p853) target = $region128
        $region127: #{tpu_custom_call.1} parent=103 // pred_region
          %857 = dma.done [#allocation12], 16
        $region128: #{tpu_custom_call.1} parent=103 // pred_fallthru
          _
        // Predicated region
        $region129: #{tpu_custom_call.1} parent=103 // pred_check
          %p858 = pneg %p248
        $region130: #{tpu_custom_call.1} parent=103 // pred_check_branch
          %860 = sbr.rel (%p858) target = $region132
        $region131: #{tpu_custom_call.1} parent=103 // pred_region
          %862 = dma.done [#allocation12], 256
        $region132: #{tpu_custom_call.1} parent=103 // pred_fallthru
          _
        // Predicated region
        $region133: #{tpu_custom_call.1} parent=103 // pred_check
          %p863 = pneg %p269
        $region134: #{tpu_custom_call.1} parent=103 // pred_check_branch
          %865 = sbr.rel (%p863) target = $region136
        $region135: #{tpu_custom_call.1} parent=103 // pred_region
          %867 = dma.done [#allocation15], 48
        $region136: #{tpu_custom_call.1} parent=103 // pred_fallthru
          _
        // Predicated region
        $region137: #{tpu_custom_call.1} parent=103 // pred_check
          %p868 = pneg %p290
        $region138: #{tpu_custom_call.1} parent=103 // pred_check_branch
          %870 = sbr.rel (%p868) target = $region140
        $region139: #{tpu_custom_call.1} parent=103 // pred_region
          %872 = dma.done [#allocation15], 48
        $region140: #{tpu_custom_call.1} parent=103 // pred_fallthru
          _
        // Predicated region
        $region141: #{tpu_custom_call.1} parent=103 // pred_check
          %p873 = pneg %p311
        $region142: #{tpu_custom_call.1} parent=103 // pred_check_branch
          %875 = sbr.rel (%p873) target = $region144
        $region143: #{tpu_custom_call.1} parent=103 // pred_region
          %877 = dma.done [#allocation18], 96
        $region144: #{tpu_custom_call.1} parent=103 // pred_fallthru
          _
        // Predicated region
        $region145: #{tpu_custom_call.1} parent=103 // pred_check
          %p878 = pneg %p332
        $region146: #{tpu_custom_call.1} parent=103 // pred_check_branch
          %880 = sbr.rel (%p878) target = $region148
        $region147: #{tpu_custom_call.1} parent=103 // pred_region
          %882 = dma.done [#allocation18], 1536
        $region148: #{tpu_custom_call.1} parent=103 // pred_fallthru
          _
        // Predicated region
        $region149: #{tpu_custom_call.1} parent=103 // pred_check
          %p883 = pneg %p353
        $region150: #{tpu_custom_call.1} parent=103 // pred_check_branch
          %885 = sbr.rel (%p883) target = $region152
        $region151: #{tpu_custom_call.1} parent=103 // pred_region
          %887 = dma.done [#allocation21], 16
        $region152: #{tpu_custom_call.1} parent=103 // pred_fallthru
          _
        // Predicated region
        $region153: #{tpu_custom_call.1} parent=103 // pred_check
          %p888 = pneg %p374
        $region154: #{tpu_custom_call.1} parent=103 // pred_check_branch
          %890 = sbr.rel (%p888) target = $region156
        $region155: #{tpu_custom_call.1} parent=103 // pred_region
          %892 = dma.done [#allocation21], 16
        $region156: #{tpu_custom_call.1} parent=103 // pred_fallthru
          _
        // Predicated region
        $region157: #{tpu_custom_call.1} parent=103 // pred_check
          %p893 = pneg %p395
        $region158: #{tpu_custom_call.1} parent=103 // pred_check_branch
          %895 = sbr.rel (%p893) target = $region160
        $region159: #{tpu_custom_call.1} parent=103 // pred_region
          %897 = dma.done [#allocation24], 768
        $region160: #{tpu_custom_call.1} parent=103 // pred_fallthru
          _
        // Predicated region
        $region161: #{tpu_custom_call.1} parent=103 // pred_check
          %p898 = pneg %p416
        $region162: #{tpu_custom_call.1} parent=103 // pred_check_branch
          %900 = sbr.rel (%p898) target = $region164
        $region163: #{tpu_custom_call.1} parent=103 // pred_region
          %902 = dma.done [#allocation24], 768
        $region164: #{tpu_custom_call.1} parent=103 // pred_fallthru
          _
        // Predicated region
        $region165: #{tpu_custom_call.1} parent=103 // pred_check
          %p903 = pneg %p437
        $region166: #{tpu_custom_call.1} parent=103 // pred_check_branch
          %905 = sbr.rel (%p903) target = $region168
        $region167: #{tpu_custom_call.1} parent=103 // pred_region
          %907 = dma.done [#allocation27], 16
        $region168: #{tpu_custom_call.1} parent=103 // pred_fallthru
          _
        // Predicated region
        $region169: #{tpu_custom_call.1} parent=103 // pred_check
          %p908 = pneg %p458
        $region170: #{tpu_custom_call.1} parent=103 // pred_check_branch
          %910 = sbr.rel (%p908) target = $region172
        $region171: #{tpu_custom_call.1} parent=103 // pred_region
          %912 = dma.done [#allocation27], 16
        $region172: #{tpu_custom_call.1} parent=103 // pred_fallthru
          _
        // Predicated region
        $region173: #{tpu_custom_call.1} parent=103 // pred_check
          %p913 = pneg %p500
        $region174: #{tpu_custom_call.1} parent=103 // pred_check_branch
          %915 = sbr.rel (%p913) target = $region176
        $region175: #{tpu_custom_call.1} parent=103 // pred_region
          %917 = dma.done [#allocation30], 256
        $region176: #{tpu_custom_call.1} parent=103 // pred_fallthru
          _
        %s918 = sand.u32 %s57, 1
        %s919 = scalar_lea.sflag [#allocation3], %s918
        %s920 = sand.u32 %s57, 1
        %s921 = smul.addr %s920, 8
        %s922 = scalar_lea.vmem [#allocation2], %s921
        %p923 = pneg %p70
        %p924 = pneg %p67
        %s925 = sand.u32 %s49, 1
        %s926 = scalar_lea.sflag [#allocation6], %s925
        %s927 = sand.u32 %s83, 1
        %s928 = scalar_lea.vmem [#allocation5], %s927
        %p929 = pneg %p96
        %p930 = pneg %p93
        %s931 = sand.u32 %s49, 1
        %s932 = scalar_lea.sflag [#allocation6], %s931
        %s933 = sand.u32 %s109, 1
        %s934 = smul.addr %s933, 4
        %s935 = scalar_lea.vmem [#allocation7], %s934
        %p936 = pneg %p122
        %p937 = pneg %p119
        %p938 = pneg %p143
        %p939 = pneg %p140
        %p940 = pneg %p164
        %p941 = pneg %p161
        %p942 = pneg %p185
        %p943 = pneg %p182
        %p944 = pneg %p206
        %p945 = pneg %p203
        %p946 = pneg %p227
        %p947 = pneg %p224
        %p948 = pneg %p248
        %p949 = pneg %p245
        %p950 = pneg %p269
        %p951 = pneg %p266
        %p952 = pneg %p290
        %p953 = pneg %p287
        %p954 = pneg %p311
        %p955 = pneg %p308
        %p956 = pneg %p332
        %p957 = pneg %p329
        %p958 = pneg %p353
        %p959 = pneg %p350
        %p960 = pneg %p374
        %p961 = pneg %p371
        %p962 = pneg %p395
        %p963 = pneg %p392
        %p964 = pneg %p416
        %p965 = pneg %p413
        %p966 = pneg %p437
        %p967 = pneg %p434
        %p968 = pneg %p458
        %p969 = pneg %p455
        %p970 = pneg %p479
        %p971 = pneg %p476
        %p972 = pneg %p500
        %p973 = pneg %p497
        %p974 = pneg %p526
        %p975 = pneg %p523
        %s976 = sand.u32 %s513, 1
        %s977 = scalar_lea.sflag [#allocation4], %s976
        %s978 = sand.u32 %s513, 1
        %s979 = smul.addr %s978, 8
        %s980 = scalar_lea.vmem [#allocation31], %s979
        %v982 = vld [vmem:[%s818] sm:$0xff]
        %v983 = vld [vmem:[%s827] sm:$0x1]
        %v984 = vld [vmem:[%s837] sm:$0xf]
        %v985 = vunpack.c.l.bf16 %v984
        %vm986 = vcmask 130048
        %v987 = vsel %vm986, %v982, 0.0
        %988 = vadd.xlane.f32.xlu0 %v987
        %v989 = vpop.xlane.xlu0 %988
        %v990 = vrcp.pop 16.0
        %v991 = vmul.f32 16.0, %v990
        %v992 = vsub.f32 1.0, %v991
        %v993 = vmul.f32 %v990, %v992
        %v994 = vadd.f32 %v990, %v993
        %vm995 = vweird.f32 %v990
        %v996 = vsel %vm995, %v990, %v994
        %v997 = vmul.f32 %v989, %v996
        %v998 = vsub.f32 %v982, %v997
        %v999 = vmul.f32 %v998, %v998
        %v1000 = vsel %vm986, %v999, 0.0
        %1001 = vadd.xlane.f32.xlu0 %v1000
        %v1002 = vpop.xlane.xlu0 %1001
        %v1003 = vrcp.pop 15.0
        %v1004 = vmul.f32 15.0, %v1003
        %v1005 = vsub.f32 1.0, %v1004
        %v1006 = vmul.f32 %v1003, %v1005
        %v1007 = vadd.f32 %v1003, %v1006
        %vm1008 = vweird.f32 %v1003
        %v1009 = vsel %vm1008, %v1003, %v1007
        %v1010 = vmul.f32 %v1002, %v1009
        %v1011 = vrsqrt.pop %v1010
        %v1012 = vmul.f32 %v1011, %v1010
        %v1013 = vmul.f32 %v1012, %v1011
        %v1014 = vmul.f32 0.5, %v1013
        %v1015 = vsub.f32 1.5, %v1014
        %v1016 = vmul.f32 %v1011, %v1015
        %v1017 = vmul.f32 %v1010, %v1016
        %vm1018 = vcmp.eq.f32.partialorder %v1010, inf
        %v1019 = vsel %vm1018, %v1010, %v1017
        %vm1020 = vcmp.eq.f32.partialorder %v1010, 0.0
        %v1021 = vand.u32 %v1010, 2147483648
        %v1022 = vsel %vm1020, %v1021, %v1019
        %v1023 = vadd.f32 %v1022, 1e-06
        %v1024 = vrcp.pop %v1023
        %v1025 = vmul.f32 %v1023, %v1024
        %v1026 = vsub.f32 1.0, %v1025
        %v1027 = vmul.f32 %v1024, %v1026
        %v1028 = vadd.f32 %v1024, %v1027
        %vm1029 = vweird.f32 %v1023
        %vm1030 = vweird.f32 %v1024
        %vm1031 = vmor %vm1029, %vm1030
        %v1032 = vsel %vm1031, %v1024, %v1028
        %v1033 = vand.u32 2147483647, %v1023
        %vm1034 = vcmp.eq.f32.partialorder %v1033, 8.507059e+37
        %v1035 = vand.u32 %v1023, 2147483648
        %v1036 = vor.u32 1.1754944e-38, %v1035
        %v1037 = vsel %vm1034, %v1036, %v1032
        %v1038 = vmul.f32 %v998, %v1037
        %v1039 = vld [vmem:[#allocation10] sm:$0xf]
        %v1040 = vld [vmem:[#allocation10 + $0x4] sm:$0xf]
        %v1041 = vld [vmem:[#allocation8] sm:$0x1]
        %v1042 = vpack.c.bf16 %v1038, %v1038
        %v1044 = vperm.slane %v1041, 0
        %v1048 = vunpack.c.l.b16 %v1039
        %v1049 = vunpack.c.l.b16 %v1040
        %v1050 = vpack.c.b16 %v1049, %v1048
        %v1053 = vsel %vm986, %v1042, 0
        %1055 = vmatpush.bf16.msra.mxu0 0
        %1056 = vmatpush.bf16.msra.mxu0 0
        %1057 = vmatpush.bf16.msra.mxu0 0
        %1058 = vmatpush.bf16.msra.mxu0 0
        %1059 = vmatpush.bf16.msra.mxu0 0
        %1060 = vmatpush.bf16.msra.mxu0 0
        %1061 = vmatpush.bf16.msra.mxu0 0
        %1062 = vmatpush.bf16.msra.mxu0 %v1050
        %1063 = vmatmul.bf16.gmra.mxu0 %v1053
        %v1064 = vpop.f32.mrf.mxu0
        %v1065 = vadd.f32 %v1044, %v1064
        %v1066 = vpop.f32.mrf.mxu0
        %1067 = vdwg.mxu0
        %v1068 = vmin.f32 %v1065, 20.0
        %v1069 = vmul.f32 %v1068, 1.442695
        %v1070 = vpow.pop %v1069
        %v1071 = vadd.f32 %v1070, 2.0
        %v1072 = vmul.f32 %v1070, %v1071
        %v1073 = vmul.f32 %v1065, %v1072
        %v1074 = vadd.f32 %v1072, 2.0
        %v1075 = vrcp.pop %v1074
        %v1076 = vmul.f32 %v1073, %v1075
        %vm1077 = vcmp.gt.f32.partialorder %v1065, 20.0
        %v1078 = vsel %vm1077, %v1065, %v1076
        %vm1079 = vcmask 261120
        %v1080 = vsel %vm1079, %v1078, 0.0
        %1081 = vadd.xlane.f32.xlu0 %v1080
        %v1082 = vpop.xlane.xlu0 %1081
        %v1083 = vrcp.pop 32.0
        %v1084 = vmul.f32 32.0, %v1083
        %v1085 = vsub.f32 1.0, %v1084
        %v1086 = vmul.f32 %v1083, %v1085
        %v1087 = vadd.f32 %v1083, %v1086
        %vm1088 = vweird.f32 %v1083
        %v1089 = vsel %vm1088, %v1083, %v1087
        %v1090 = vmul.f32 %v1082, %v1089
        %v1091 = vsub.f32 %v1078, %v1090
        %v1092 = vmul.f32 %v1091, %v1091
        %v1093 = vsel %vm1079, %v1092, 0.0
        %1094 = vadd.xlane.f32.xlu0 %v1093
        %v1095 = vpop.xlane.xlu0 %1094
        %v1096 = vrcp.pop 31.0
        %v1097 = vmul.f32 31.0, %v1096
        %v1098 = vsub.f32 1.0, %v1097
        %v1099 = vmul.f32 %v1096, %v1098
        %v1100 = vadd.f32 %v1096, %v1099
        %vm1101 = vweird.f32 %v1096
        %v1102 = vsel %vm1101, %v1096, %v1100
        %v1103 = vmul.f32 %v1095, %v1102
        %v1104 = vrsqrt.pop %v1103
        %v1105 = vmul.f32 %v1104, %v1103
        %v1106 = vmul.f32 %v1105, %v1104
        %v1107 = vmul.f32 0.5, %v1106
        %v1108 = vsub.f32 1.5, %v1107
        %v1109 = vmul.f32 %v1104, %v1108
        %v1110 = vmul.f32 %v1103, %v1109
        %vm1111 = vcmp.eq.f32.partialorder %v1103, inf
        %v1112 = vsel %vm1111, %v1103, %v1110
        %vm1113 = vcmp.eq.f32.partialorder %v1103, 0.0
        %v1114 = vand.u32 %v1103, 2147483648
        %v1115 = vsel %vm1113, %v1114, %v1112
        %v1116 = vadd.f32 %v1115, 1e-06
        %v1117 = vrcp.pop %v1116
        %v1118 = vmul.f32 %v1116, %v1117
        %v1119 = vsub.f32 1.0, %v1118
        %v1120 = vmul.f32 %v1117, %v1119
        %v1121 = vadd.f32 %v1117, %v1120
        %vm1122 = vweird.f32 %v1116
        %vm1123 = vweird.f32 %v1117
        %vm1124 = vmor %vm1122, %vm1123
        %v1125 = vsel %vm1124, %v1117, %v1121
        %v1126 = vand.u32 2147483647, %v1116
        %vm1127 = vcmp.eq.f32.partialorder %v1126, 8.507059e+37
        %v1128 = vand.u32 %v1116, 2147483648
        %v1129 = vor.u32 1.1754944e-38, %v1128
        %v1130 = vsel %vm1127, %v1129, %v1125
        %v1131 = vmul.f32 %v1091, %v1130
        %v1132 = vld [vmem:[#allocation13] sm:$0xf]
        %v1133 = vld [vmem:[#allocation13 + $0x4] sm:$0xf]
        %v1134 = vld [vmem:[#allocation13 + $0x8] sm:$0xf]
        %v1135 = vld [vmem:[#allocation13 + $0xc] sm:$0xf]
        %v1136 = vld [vmem:[#allocation11] sm:$0x1]
        %v1137 = vpack.c.bf16 %v1131, %v1131
        %v1139 = vperm.slane %v1136, 0
        %v1145 = vunpack.c.l.b16 %v1132
        %v1146 = vunpack.c.l.b16 %v1133
        %v1147 = vunpack.c.l.b16 %v1134
        %v1148 = vunpack.c.l.b16 %v1135
        %v1149 = vpack.c.b16 %v1146, %v1145
        %v1150 = vpack.c.b16 %v1148, %v1147
        %v1154 = vsel %vm1079, %v1137, 0
        %1156 = vmatpush.bf16.msra.mxu0 0
        %1157 = vmatpush.bf16.msra.mxu0 0
        %1158 = vmatpush.bf16.msra.mxu0 0
        %1159 = vmatpush.bf16.msra.mxu0 0
        %1160 = vmatpush.bf16.msra.mxu0 0
        %1161 = vmatpush.bf16.msra.mxu0 0
        %1162 = vmatpush.bf16.msra.mxu0 %v1150
        %1163 = vmatpush.bf16.msra.mxu0 %v1149
        %1164 = vmatmul.bf16.gmra.mxu0 %v1154
        %v1165 = vpop.f32.mrf.mxu0
        %v1166 = vadd.f32 %v1139, %v1165
        %v1167 = vpop.f32.mrf.mxu0
        %1168 = vdwg.mxu0
        %v1169 = vmin.f32 %v1166, 20.0
        %v1170 = vmul.f32 %v1169, 1.442695
        %v1171 = vpow.pop %v1170
        %v1172 = vadd.f32 %v1171, 2.0
        %v1173 = vmul.f32 %v1171, %v1172
        %v1174 = vmul.f32 %v1166, %v1173
        %v1175 = vadd.f32 %v1173, 2.0
        %v1176 = vrcp.pop %v1175
        %v1177 = vmul.f32 %v1174, %v1176
        %vm1178 = vcmp.gt.f32.partialorder %v1166, 20.0
        %v1179 = vsel %vm1178, %v1166, %v1177
        %v1180 = vld [vmem:[%s4] sm:$0x1]
        %v1181 = vld [vmem:[%s3] sm:$0x1]
        %v1182 = vsel %vm1079, %v1179, 0.0
        %1183 = vadd.xlane.f32.xlu0 %v1182
        %v1184 = vpop.xlane.xlu0 %1183
        %v1185 = vmul.f32 %v1184, %v1089
        %v1186 = vsub.f32 %v1179, %v1185
        %v1187 = vmul.f32 %v1186, %v1186
        %v1188 = vsel %vm1079, %v1187, 0.0
        %1189 = vadd.xlane.f32.xlu0 %v1188
        %v1190 = vpop.xlane.xlu0 %1189
        %v1191 = vmul.f32 %v1190, %v1102
        %v1192 = vrsqrt.pop %v1191
        %v1193 = vmul.f32 %v1192, %v1191
        %v1194 = vmul.f32 %v1193, %v1192
        %v1195 = vmul.f32 0.5, %v1194
        %v1196 = vsub.f32 1.5, %v1195
        %v1197 = vmul.f32 %v1192, %v1196
        %v1198 = vmul.f32 %v1191, %v1197
        %vm1199 = vcmp.eq.f32.partialorder %v1191, inf
        %v1200 = vsel %vm1199, %v1191, %v1198
        %vm1201 = vcmp.eq.f32.partialorder %v1191, 0.0
        %v1202 = vand.u32 %v1191, 2147483648
        %v1203 = vsel %vm1201, %v1202, %v1200
        %v1204 = vadd.f32 %v1203, 1e-06
        %v1205 = vrcp.pop %v1204
        %v1206 = vmul.f32 %v1204, %v1205
        %v1207 = vsub.f32 1.0, %v1206
        %v1208 = vmul.f32 %v1205, %v1207
        %v1209 = vadd.f32 %v1205, %v1208
        %vm1210 = vweird.f32 %v1204
        %vm1211 = vweird.f32 %v1205
        %vm1212 = vmor %vm1210, %vm1211
        %v1213 = vsel %vm1212, %v1205, %v1209
        %v1214 = vand.u32 2147483647, %v1204
        %vm1215 = vcmp.eq.f32.partialorder %v1214, 8.507059e+37
        %v1216 = vand.u32 %v1204, 2147483648
        %v1217 = vor.u32 1.1754944e-38, %v1216
        %v1218 = vsel %vm1215, %v1217, %v1213
        %v1219 = vmul.f32 %v1186, %v1218
        %v1221 = vperm.slane %v1180, 0
        %v1223 = vmul.f32 %v1221, %v1219
        %v1225 = vperm.slane %v1181, 0
        %v1227 = vadd.f32 %v1223, %v1225
        %v1228 = vld [vmem:[#allocation22] sm:$0x1]
        %v1229 = vld [vmem:[#allocation20] sm:$0x1]
        %v1230 = vsel %vm1079, %v1227, 0.0
        %1231 = vadd.xlane.f32.xlu0 %v1230
        %v1232 = vpop.xlane.xlu0 %1231
        %v1233 = vmul.f32 %v1232, %v1089
        %v1234 = vsub.f32 %v1227, %v1233
        %v1235 = vmul.f32 %v1234, %v1234
        %v1236 = vsel %vm1079, %v1235, 0.0
        %1237 = vadd.xlane.f32.xlu0 %v1236
        %v1238 = vpop.xlane.xlu0 %1237
        %v1239 = vmul.f32 %v1238, %v1102
        %v1240 = vrsqrt.pop %v1239
        %v1241 = vmul.f32 %v1240, %v1239
        %v1242 = vmul.f32 %v1241, %v1240
        %v1243 = vmul.f32 0.5, %v1242
        %v1244 = vsub.f32 1.5, %v1243
        %v1245 = vmul.f32 %v1240, %v1244
        %v1246 = vmul.f32 %v1239, %v1245
        %vm1247 = vcmp.eq.f32.partialorder %v1239, inf
        %v1248 = vsel %vm1247, %v1239, %v1246
        %vm1249 = vcmp.eq.f32.partialorder %v1239, 0.0
        %v1250 = vand.u32 %v1239, 2147483648
        %v1251 = vsel %vm1249, %v1250, %v1248
        %v1252 = vadd.f32 %v1251, 1e-06
        %v1253 = vrcp.pop %v1252
        %v1254 = vmul.f32 %v1252, %v1253
        %v1255 = vsub.f32 1.0, %v1254
        %v1256 = vmul.f32 %v1253, %v1255
        %v1257 = vadd.f32 %v1253, %v1256
        %vm1258 = vweird.f32 %v1252
        %vm1259 = vweird.f32 %v1253
        %vm1260 = vmor %vm1258, %vm1259
        %v1261 = vsel %vm1260, %v1253, %v1257
        %v1262 = vand.u32 2147483647, %v1252
        %vm1263 = vcmp.eq.f32.partialorder %v1262, 8.507059e+37
        %v1264 = vand.u32 %v1252, 2147483648
        %v1265 = vor.u32 1.1754944e-38, %v1264
        %v1266 = vsel %vm1263, %v1265, %v1261
        %v1267 = vmul.f32 %v1234, %v1266
        %v1269 = vperm.slane %v1228, 0
        %v1271 = vmul.f32 %v1269, %v1267
        %v1273 = vperm.slane %v1229, 0
        %v1275 = vadd.f32 %v1271, %v1273
        %v1276 = vld [vmem:[#allocation25] sm:$0xf]
        %v1277 = vld [vmem:[#allocation25 + $0x4] sm:$0xf]
        %v1278 = vld [vmem:[#allocation25 + $0x8] sm:$0xf]
        %v1279 = vld [vmem:[#allocation25 + $0xc] sm:$0xf]
        %v1280 = vld [vmem:[#allocation16] sm:$0x1]
        %v1281 = vpack.c.bf16 %v1275, %v1275
        %v1283 = vperm.slane %v1280, 0
        %v1289 = vunpack.c.l.b16 %v1276
        %v1290 = vunpack.c.l.b16 %v1277
        %v1291 = vunpack.c.l.b16 %v1278
        %v1292 = vunpack.c.l.b16 %v1279
        %v1293 = vpack.c.b16 %v1290, %v1289
        %v1294 = vpack.c.b16 %v1292, %v1291
        %v1298 = vsel %vm1079, %v1281, 0
        %1300 = vmatpush.bf16.msra.mxu0 0
        %1301 = vmatpush.bf16.msra.mxu0 0
        %1302 = vmatpush.bf16.msra.mxu0 0
        %1303 = vmatpush.bf16.msra.mxu0 0
        %1304 = vmatpush.bf16.msra.mxu0 0
        %1305 = vmatpush.bf16.msra.mxu0 0
        %1306 = vmatpush.bf16.msra.mxu0 %v1294
        %1307 = vmatpush.bf16.msra.mxu0 %v1293
        %1308 = vmatmul.bf16.gmra.mxu0 %v1298
        %v1309 = vpop.f32.mrf.mxu0
        %v1310 = vadd.f32 %v1283, %v1309
        %v1311 = vpop.f32.mrf.mxu0
        %1312 = vdwg.mxu0
        %v1313 = vpack.c.bf16 %v1310, %v1310
        %v1315 = vperm.slane %v983, 0
        %1318 = vrot.lane.b32.xlu0 %v1313, 96
        %v1319 = vpop.permute.xlu0 %1318
        %vm1320 = vcmask 64512
        %v1322 = vsel %vm1320, %v1313, 0
        %v1325 = vsel %vm1320, %v1319, 0
        %1327 = vmatpush.bf16.xpose.msra.mxu0 0
        %1328 = vmatpush.bf16.xpose.msra.mxu0 0
        %1329 = vmatpush.bf16.xpose.msra.mxu0 0
        %1330 = vmatpush.bf16.xpose.msra.mxu0 0
        %1331 = vmatpush.bf16.xpose.msra.mxu0 0
        %1332 = vmatpush.bf16.xpose.msra.mxu0 0
        %1333 = vmatpush.bf16.xpose.msra.mxu0 0
        %1334 = vmatpush.bf16.xpose.msra.mxu0 %v1325
        %1335 = vmatmul.bf16.gmra.mxu0 %v1322
        %v1336 = vpop.f32.mrf.mxu0
        %v1337 = vadd.f32 %v1315, %v1336
        %v1338 = vpop.f32.mrf.mxu0
        %1339 = vdwg.mxu0
        %v1340 = vsel %vm1320, %v1337, -inf
        %1341 = vmax.xlane.f32.xlu0 %v1340
        %v1342 = vpop.xlane.xlu0 %1341
        %v1343 = vsub.f32 %v1337, %v1342
        %v1344 = vmul.f32 %v1343, 1.442695
        %v1345 = vpow.pop %v1344
        %v1346 = vsel %vm1320, %v1345, 0.0
        %1347 = vadd.xlane.f32.xlu0 %v1346
        %v1348 = vpop.xlane.xlu0 %1347
        %v1349 = vmul.f32 %v1345, %v985
        %v1350 = vsel %vm1320, %v1349, 0.0
        %1351 = vadd.xlane.f32.xlu0 %v1350
        %v1352 = vpop.xlane.xlu0 %1351
        %v1353 = vmul.f32 %v1348, 1e-05
        %v1354 = vadd.f32 %v1352, %v1353
        %v1355 = vrcp.pop %v1354
        %v1356 = vmul.f32 %v1349, %v1355
        %v1357 = vpack.c.bf16 %v1356, %v1356
        %1358 = vrot.lane.b32.xlu0 %v1313, 64
        %v1359 = vpop.permute.xlu0 %1358
        %v1361 = vsel %vm1320, %v1357, 0
        %vm1363 = vcmask 1043456
        %v1365 = vsel %vm1363, %v1359, 0
        %1367 = vmatpush.bf16.msra.mxu0 0
        %1368 = vmatpush.bf16.msra.mxu0 0
        %1369 = vmatpush.bf16.msra.mxu0 0
        %1370 = vmatpush.bf16.msra.mxu0 0
        %1371 = vmatpush.bf16.msra.mxu0 0
        %1372 = vmatpush.bf16.msra.mxu0 0
        %1373 = vmatpush.bf16.msra.mxu0 0
        %1374 = vmatpush.bf16.msra.mxu0 %v1365
        %1375 = vmatmul.bf16.gmra.mxu0 %v1361
        %v1376 = vpop.f32.mrf.mxu0
        %v1377 = vadd.f32 0.0, %v1376
        %v1378 = vpop.f32.mrf.mxu0
        %1379 = vdwg.mxu0
        %1380 = vrot.lane.b32.xlu0 %v1313, 120
        %v1381 = vpop.permute.xlu0 %1380
        %1382 = vrot.lane.b32.xlu0 %v1313, 88
        %v1383 = vpop.permute.xlu0 %1382
        %v1385 = vsel %vm1320, %v1381, 0
        %v1388 = vsel %vm1320, %v1383, 0
        %1390 = vmatpush.bf16.xpose.msra.mxu0 0
        %1391 = vmatpush.bf16.xpose.msra.mxu0 0
        %1392 = vmatpush.bf16.xpose.msra.mxu0 0
        %1393 = vmatpush.bf16.xpose.msra.mxu0 0
        %1394 = vmatpush.bf16.xpose.msra.mxu0 0
        %1395 = vmatpush.bf16.xpose.msra.mxu0 0
        %1396 = vmatpush.bf16.xpose.msra.mxu0 0
        %1397 = vmatpush.bf16.xpose.msra.mxu0 %v1388
        %1398 = vmatmul.bf16.gmra.mxu0 %v1385
        %v1399 = vpop.f32.mrf.mxu0
        %v1400 = vadd.f32 %v1315, %v1399
        %v1401 = vpop.f32.mrf.mxu0
        %1402 = vdwg.mxu0
        %v1403 = vsel %vm1320, %v1400, -inf
        %1404 = vmax.xlane.f32.xlu0 %v1403
        %v1405 = vpop.xlane.xlu0 %1404
        %v1406 = vsub.f32 %v1400, %v1405
        %v1407 = vmul.f32 %v1406, 1.442695
        %v1408 = vpow.pop %v1407
        %v1409 = vsel %vm1320, %v1408, 0.0
        %1410 = vadd.xlane.f32.xlu0 %v1409
        %v1411 = vpop.xlane.xlu0 %1410
        %v1412 = vmul.f32 %v1408, %v985
        %v1413 = vsel %vm1320, %v1412, 0.0
        %1414 = vadd.xlane.f32.xlu0 %v1413
        %v1415 = vpop.xlane.xlu0 %1414
        %v1416 = vmul.f32 %v1411, 1e-05
        %v1417 = vadd.f32 %v1415, %v1416
        %v1418 = vrcp.pop %v1417
        %v1419 = vmul.f32 %v1412, %v1418
        %v1420 = vpack.c.bf16 %v1419, %v1419
        %1421 = vrot.lane.b32.xlu0 %v1313, 56
        %v1422 = vpop.permute.xlu0 %1421
        %v1424 = vsel %vm1320, %v1420, 0
        %v1427 = vsel %vm1363, %v1422, 0
        %1429 = vmatpush.bf16.msra.mxu0 0
        %1430 = vmatpush.bf16.msra.mxu0 0
        %1431 = vmatpush.bf16.msra.mxu0 0
        %1432 = vmatpush.bf16.msra.mxu0 0
        %1433 = vmatpush.bf16.msra.mxu0 0
        %1434 = vmatpush.bf16.msra.mxu0 0
        %1435 = vmatpush.bf16.msra.mxu0 0
        %1436 = vmatpush.bf16.msra.mxu0 %v1427
        %1437 = vmatmul.bf16.gmra.mxu0 %v1424
        %v1438 = vpop.f32.mrf.mxu0
        %v1439 = vadd.f32 0.0, %v1438
        %v1440 = vpop.f32.mrf.mxu0
        %1441 = vdwg.mxu0
        %1442 = vrot.lane.b32.xlu0 %v1313, 112
        %v1443 = vpop.permute.xlu0 %1442
        %1444 = vrot.lane.b32.xlu0 %v1313, 80
        %v1445 = vpop.permute.xlu0 %1444
        %v1447 = vsel %vm1320, %v1443, 0
        %v1450 = vsel %vm1320, %v1445, 0
        %1452 = vmatpush.bf16.xpose.msra.mxu0 0
        %1453 = vmatpush.bf16.xpose.msra.mxu0 0
        %1454 = vmatpush.bf16.xpose.msra.mxu0 0
        %1455 = vmatpush.bf16.xpose.msra.mxu0 0
        %1456 = vmatpush.bf16.xpose.msra.mxu0 0
        %1457 = vmatpush.bf16.xpose.msra.mxu0 0
        %1458 = vmatpush.bf16.xpose.msra.mxu0 0
        %1459 = vmatpush.bf16.xpose.msra.mxu0 %v1450
        %1460 = vmatmul.bf16.gmra.mxu0 %v1447
        %v1461 = vpop.f32.mrf.mxu0
        %v1462 = vadd.f32 %v1315, %v1461
        %v1463 = vpop.f32.mrf.mxu0
        %1464 = vdwg.mxu0
        %v1465 = vsel %vm1320, %v1462, -inf
        %1466 = vmax.xlane.f32.xlu0 %v1465
        %v1467 = vpop.xlane.xlu0 %1466
        %v1468 = vsub.f32 %v1462, %v1467
        %v1469 = vmul.f32 %v1468, 1.442695
        %v1470 = vpow.pop %v1469
        %v1471 = vsel %vm1320, %v1470, 0.0
        %1472 = vadd.xlane.f32.xlu0 %v1471
        %v1473 = vpop.xlane.xlu0 %1472
        %v1474 = vmul.f32 %v1470, %v985
        %v1475 = vsel %vm1320, %v1474, 0.0
        %1476 = vadd.xlane.f32.xlu0 %v1475
        %v1477 = vpop.xlane.xlu0 %1476
        %v1478 = vmul.f32 %v1473, 1e-05
        %v1479 = vadd.f32 %v1477, %v1478
        %v1480 = vrcp.pop %v1479
        %v1481 = vmul.f32 %v1474, %v1480
        %v1482 = vpack.c.bf16 %v1481, %v1481
        %1483 = vrot.lane.b32.xlu0 %v1313, 48
        %v1484 = vpop.permute.xlu0 %1483
        %v1486 = vsel %vm1320, %v1482, 0
        %v1489 = vsel %vm1363, %v1484, 0
        %1491 = vmatpush.bf16.msra.mxu0 0
        %1492 = vmatpush.bf16.msra.mxu0 0
        %1493 = vmatpush.bf16.msra.mxu0 0
        %1494 = vmatpush.bf16.msra.mxu0 0
        %1495 = vmatpush.bf16.msra.mxu0 0
        %1496 = vmatpush.bf16.msra.mxu0 0
        %1497 = vmatpush.bf16.msra.mxu0 0
        %1498 = vmatpush.bf16.msra.mxu0 %v1489
        %1499 = vmatmul.bf16.gmra.mxu0 %v1486
        %v1500 = vpop.f32.mrf.mxu0
        %v1501 = vadd.f32 0.0, %v1500
        %v1502 = vpop.f32.mrf.mxu0
        %1503 = vdwg.mxu0
        %1504 = vrot.lane.b32.xlu0 %v1313, 104
        %v1505 = vpop.permute.xlu0 %1504
        %1506 = vrot.lane.b32.xlu0 %v1313, 72
        %v1507 = vpop.permute.xlu0 %1506
        %v1509 = vsel %vm1320, %v1505, 0
        %v1512 = vsel %vm1320, %v1507, 0
        %1514 = vmatpush.bf16.xpose.msra.mxu0 0
        %1515 = vmatpush.bf16.xpose.msra.mxu0 0
        %1516 = vmatpush.bf16.xpose.msra.mxu0 0
        %1517 = vmatpush.bf16.xpose.msra.mxu0 0
        %1518 = vmatpush.bf16.xpose.msra.mxu0 0
        %1519 = vmatpush.bf16.xpose.msra.mxu0 0
        %1520 = vmatpush.bf16.xpose.msra.mxu0 0
        %1521 = vmatpush.bf16.xpose.msra.mxu0 %v1512
        %1522 = vmatmul.bf16.gmra.mxu0 %v1509
        %v1523 = vpop.f32.mrf.mxu0
        %v1524 = vadd.f32 %v1315, %v1523
        %v1525 = vpop.f32.mrf.mxu0
        %1526 = vdwg.mxu0
        %v1527 = vsel %vm1320, %v1524, -inf
        %1528 = vmax.xlane.f32.xlu0 %v1527
        %v1529 = vpop.xlane.xlu0 %1528
        %v1530 = vsub.f32 %v1524, %v1529
        %v1531 = vmul.f32 %v1530, 1.442695
        %v1532 = vpow.pop %v1531
        %v1533 = vsel %vm1320, %v1532, 0.0
        %1534 = vadd.xlane.f32.xlu0 %v1533
        %v1535 = vpop.xlane.xlu0 %1534
        %v1536 = vmul.f32 %v1532, %v985
        %v1537 = vsel %vm1320, %v1536, 0.0
        %1538 = vadd.xlane.f32.xlu0 %v1537
        %v1539 = vpop.xlane.xlu0 %1538
        %v1540 = vmul.f32 %v1535, 1e-05
        %v1541 = vadd.f32 %v1539, %v1540
        %v1542 = vrcp.pop %v1541
        %v1543 = vmul.f32 %v1536, %v1542
        %v1544 = vpack.c.bf16 %v1543, %v1543
        %1545 = vrot.lane.b32.xlu0 %v1313, 40
        %v1546 = vpop.permute.xlu0 %1545
        %v1548 = vsel %vm1320, %v1544, 0
        %v1551 = vsel %vm1363, %v1546, 0
        %1553 = vmatpush.bf16.msra.mxu0 0
        %1554 = vmatpush.bf16.msra.mxu0 0
        %1555 = vmatpush.bf16.msra.mxu0 0
        %1556 = vmatpush.bf16.msra.mxu0 0
        %1557 = vmatpush.bf16.msra.mxu0 0
        %1558 = vmatpush.bf16.msra.mxu0 0
        %1559 = vmatpush.bf16.msra.mxu0 0
        %1560 = vmatpush.bf16.msra.mxu0 %v1551
        %1561 = vmatmul.bf16.gmra.mxu0 %v1548
        %v1562 = vpop.f32.mrf.mxu0
        %v1563 = vadd.f32 0.0, %v1562
        %v1564 = vpop.f32.mrf.mxu0
        %1565 = vdwg.mxu0
        %1567 = vrot.lane.b32.xlu0 %v1439, 8
        %v1568 = vpop.permute.xlu0 %1567
        %1571 = vrot.lane.b32.xlu0 %v1501, 16
        %v1572 = vpop.permute.xlu0 %1571
        %1575 = vrot.lane.b32.xlu0 %v1563, 24
        %v1576 = vpop.permute.xlu0 %1575
        %v1578 = vsel %vm1320, %v1377, %v1568
        %v1579 = vsel %vm986, %v1578, %v1572
        %vm1580 = vcmask 195584
        %v1581 = vsel %vm1580, %v1579, %v1576
        %v1582 = vld [vmem:[#allocation23] sm:$0xf]
        %v1583 = vld [vmem:[#allocation23 + $0x4] sm:$0xf]
        %v1584 = vld [vmem:[#allocation23 + $0x8] sm:$0xf]
        %v1585 = vld [vmem:[#allocation23 + $0xc] sm:$0xf]
        %v1586 = vld [vmem:[#allocation14] sm:$0x1]
        %v1587 = vpack.c.bf16 %v1581, %v1581
        %v1589 = vperm.slane %v1586, 0
        %v1595 = vunpack.c.l.b16 %v1582
        %v1596 = vunpack.c.l.b16 %v1583
        %v1597 = vunpack.c.l.b16 %v1584
        %v1598 = vunpack.c.l.b16 %v1585
        %v1599 = vpack.c.b16 %v1596, %v1595
        %v1600 = vpack.c.b16 %v1598, %v1597
        %v1604 = vsel %vm1079, %v1587, 0
        %1606 = vmatpush.bf16.msra.mxu0 0
        %1607 = vmatpush.bf16.msra.mxu0 0
        %1608 = vmatpush.bf16.msra.mxu0 0
        %1609 = vmatpush.bf16.msra.mxu0 0
        %1610 = vmatpush.bf16.msra.mxu0 0
        %1611 = vmatpush.bf16.msra.mxu0 0
        %1612 = vmatpush.bf16.msra.mxu0 %v1600
        %1613 = vmatpush.bf16.msra.mxu0 %v1599
        %1614 = vmatmul.bf16.gmra.mxu0 %v1604
        %v1615 = vpop.f32.mrf.mxu0
        %v1616 = vadd.f32 %v1589, %v1615
        %v1617 = vpop.f32.mrf.mxu0
        %1618 = vdwg.mxu0
        %v1619 = vmin.f32 %v1616, 20.0
        %v1620 = vmul.f32 %v1619, 1.442695
        %v1621 = vpow.pop %v1620
        %v1622 = vadd.f32 %v1621, 2.0
        %v1623 = vmul.f32 %v1621, %v1622
        %v1624 = vmul.f32 %v1616, %v1623
        %v1625 = vadd.f32 %v1623, 2.0
        %v1626 = vrcp.pop %v1625
        %v1627 = vmul.f32 %v1624, %v1626
        %vm1628 = vcmp.gt.f32.partialorder %v1616, 20.0
        %v1629 = vsel %vm1628, %v1616, %v1627
        %v1630 = vadd.f32 %v1275, %v1629
        %v1631 = vsel %vm1079, %v1630, 0.0
        %1632 = vadd.xlane.f32.xlu0 %v1631
        %v1633 = vpop.xlane.xlu0 %1632
        %v1634 = vmul.f32 %v1633, %v1089
        %v1635 = vsub.f32 %v1630, %v1634
        %v1636 = vmul.f32 %v1635, %v1635
        %v1637 = vsel %vm1079, %v1636, 0.0
        %1638 = vadd.xlane.f32.xlu0 %v1637
        %v1639 = vpop.xlane.xlu0 %1638
        %v1640 = vmul.f32 %v1639, %v1102
        %v1641 = vrsqrt.pop %v1640
        %v1642 = vmul.f32 %v1641, %v1640
        %v1643 = vmul.f32 %v1642, %v1641
        %v1644 = vmul.f32 0.5, %v1643
        %v1645 = vsub.f32 1.5, %v1644
        %v1646 = vmul.f32 %v1641, %v1645
        %v1647 = vmul.f32 %v1640, %v1646
        %vm1648 = vcmp.eq.f32.partialorder %v1640, inf
        %v1649 = vsel %vm1648, %v1640, %v1647
        %vm1650 = vcmp.eq.f32.partialorder %v1640, 0.0
        %v1651 = vand.u32 %v1640, 2147483648
        %v1652 = vsel %vm1650, %v1651, %v1649
        %v1653 = vadd.f32 %v1652, 1e-06
        %v1654 = vrcp.pop %v1653
        %v1655 = vmul.f32 %v1653, %v1654
        %v1656 = vsub.f32 1.0, %v1655
        %v1657 = vmul.f32 %v1654, %v1656
        %v1658 = vadd.f32 %v1654, %v1657
        %vm1659 = vweird.f32 %v1653
        %vm1660 = vweird.f32 %v1654
        %vm1661 = vmor %vm1659, %vm1660
        %v1662 = vsel %vm1661, %v1654, %v1658
        %v1663 = vand.u32 2147483647, %v1653
        %vm1664 = vcmp.eq.f32.partialorder %v1663, 8.507059e+37
        %v1665 = vand.u32 %v1653, 2147483648
        %v1666 = vor.u32 1.1754944e-38, %v1665
        %v1667 = vsel %vm1664, %v1666, %v1662
        %v1668 = vmul.f32 %v1635, %v1667
        %v1669 = vmul.f32 %v1269, %v1668
        %v1670 = vadd.f32 %v1669, %v1273
        %v1671 = vld [vmem:[#allocation19] sm:$0xf]
        %v1672 = vld [vmem:[#allocation19 + $0x4] sm:$0xf]
        %v1673 = vld [vmem:[#allocation19 + $0x8] sm:$0xf]
        %v1674 = vld [vmem:[#allocation19 + $0xc] sm:$0xf]
        %v1675 = vld [vmem:[#allocation17] sm:$0x1]
        %v1676 = vpack.c.bf16 %v1670, %v1670
        %v1678 = vperm.slane %v1675, 0
        %v1684 = vunpack.c.l.b16 %v1671
        %v1685 = vunpack.c.l.b16 %v1672
        %v1686 = vunpack.c.l.b16 %v1673
        %v1687 = vunpack.c.l.b16 %v1674
        %v1688 = vpack.c.b16 %v1685, %v1684
        %v1689 = vpack.c.b16 %v1687, %v1686
        %v1693 = vsel %vm1079, %v1676, 0
        %1695 = vmatpush.bf16.msra.mxu0 0
        %1696 = vmatpush.bf16.msra.mxu0 0
        %1697 = vmatpush.bf16.msra.mxu0 0
        %1698 = vmatpush.bf16.msra.mxu0 0
        %1699 = vmatpush.bf16.msra.mxu0 0
        %1700 = vmatpush.bf16.msra.mxu0 0
        %1701 = vmatpush.bf16.msra.mxu0 %v1689
        %1702 = vmatpush.bf16.msra.mxu0 %v1688
        %1703 = vmatmul.bf16.gmra.mxu0 %v1693
        %v1704 = vpop.f32.mrf.mxu0
        %v1705 = vadd.f32 %v1678, %v1704
        %v1706 = vpop.f32.mrf.mxu0
        %1707 = vdwg.mxu0
        %v1708 = vmin.f32 %v1705, 20.0
        %v1709 = vmul.f32 %v1708, 1.442695
        %v1710 = vpow.pop %v1709
        %v1711 = vadd.f32 %v1710, 2.0
        %v1712 = vmul.f32 %v1710, %v1711
        %v1713 = vmul.f32 %v1705, %v1712
        %v1714 = vadd.f32 %v1712, 2.0
        %v1715 = vrcp.pop %v1714
        %v1716 = vmul.f32 %v1713, %v1715
        %vm1717 = vcmp.gt.f32.partialorder %v1705, 20.0
        %v1718 = vsel %vm1717, %v1705, %v1716
        %s1719 = scalar_lea.vmem [#allocation19], 16
        %v1720 = vld [vmem:[%s1719] sm:$0xf]
        %v1721 = vld [vmem:[%s1719 + $0x4] sm:$0xf]
        %v1722 = vld [vmem:[%s1719 + $0x8] sm:$0xf]
        %v1723 = vld [vmem:[%s1719 + $0xc] sm:$0xf]
        %s1724 = scalar_lea.vmem [#allocation17], 1
        %v1725 = vld [vmem:[%s1724] sm:$0x1]
        %v1726 = vpack.c.bf16 %v1718, %v1718
        %v1728 = vperm.slane %v1725, 0
        %v1734 = vunpack.c.l.b16 %v1720
        %v1735 = vunpack.c.l.b16 %v1721
        %v1736 = vunpack.c.l.b16 %v1722
        %v1737 = vunpack.c.l.b16 %v1723
        %v1738 = vpack.c.b16 %v1735, %v1734
        %v1739 = vpack.c.b16 %v1737, %v1736
        %v1743 = vsel %vm1079, %v1726, 0
        %1745 = vmatpush.bf16.msra.mxu0 0
        %1746 = vmatpush.bf16.msra.mxu0 0
        %1747 = vmatpush.bf16.msra.mxu0 0
        %1748 = vmatpush.bf16.msra.mxu0 0
        %1749 = vmatpush.bf16.msra.mxu0 0
        %1750 = vmatpush.bf16.msra.mxu0 0
        %1751 = vmatpush.bf16.msra.mxu0 %v1739
        %1752 = vmatpush.bf16.msra.mxu0 %v1738
        %1753 = vmatmul.bf16.gmra.mxu0 %v1743
        %v1754 = vpop.f32.mrf.mxu0
        %v1755 = vadd.f32 %v1728, %v1754
        %v1756 = vpop.f32.mrf.mxu0
        %1757 = vdwg.mxu0
        %v1758 = vmin.f32 %v1755, 20.0
        %v1759 = vmul.f32 %v1758, 1.442695
        %v1760 = vpow.pop %v1759
        %v1761 = vadd.f32 %v1760, 2.0
        %v1762 = vmul.f32 %v1760, %v1761
        %v1763 = vmul.f32 %v1755, %v1762
        %v1764 = vadd.f32 %v1762, 2.0
        %v1765 = vrcp.pop %v1764
        %v1766 = vmul.f32 %v1763, %v1765
        %vm1767 = vcmp.gt.f32.partialorder %v1755, 20.0
        %v1768 = vsel %vm1767, %v1755, %v1766
        %v1769 = vadd.f32 %v1670, %v1768
        %v1770 = vsel %vm1079, %v1769, 0.0
        %1771 = vadd.xlane.f32.xlu0 %v1770
        %v1772 = vpop.xlane.xlu0 %1771
        %v1773 = vmul.f32 %v1772, %v1089
        %v1774 = vsub.f32 %v1769, %v1773
        %v1775 = vmul.f32 %v1774, %v1774
        %v1776 = vsel %vm1079, %v1775, 0.0
        %1777 = vadd.xlane.f32.xlu0 %v1776
        %v1778 = vpop.xlane.xlu0 %1777
        %v1779 = vmul.f32 %v1778, %v1102
        %v1780 = vrsqrt.pop %v1779
        %v1781 = vmul.f32 %v1780, %v1779
        %v1782 = vmul.f32 %v1781, %v1780
        %v1783 = vmul.f32 0.5, %v1782
        %v1784 = vsub.f32 1.5, %v1783
        %v1785 = vmul.f32 %v1780, %v1784
        %v1786 = vmul.f32 %v1779, %v1785
        %vm1787 = vcmp.eq.f32.partialorder %v1779, inf
        %v1788 = vsel %vm1787, %v1779, %v1786
        %vm1789 = vcmp.eq.f32.partialorder %v1779, 0.0
        %v1790 = vand.u32 %v1779, 2147483648
        %v1791 = vsel %vm1789, %v1790, %v1788
        %v1792 = vadd.f32 %v1791, 1e-06
        %v1793 = vrcp.pop %v1792
        %v1794 = vmul.f32 %v1792, %v1793
        %v1795 = vsub.f32 1.0, %v1794
        %v1796 = vmul.f32 %v1793, %v1795
        %v1797 = vadd.f32 %v1793, %v1796
        %vm1798 = vweird.f32 %v1792
        %vm1799 = vweird.f32 %v1793
        %vm1800 = vmor %vm1798, %vm1799
        %v1801 = vsel %vm1800, %v1793, %v1797
        %v1802 = vand.u32 2147483647, %v1792
        %vm1803 = vcmp.eq.f32.partialorder %v1802, 8.507059e+37
        %v1804 = vand.u32 %v1792, 2147483648
        %v1805 = vor.u32 1.1754944e-38, %v1804
        %v1806 = vsel %vm1803, %v1805, %v1801
        %v1807 = vmul.f32 %v1774, %v1806
        %v1808 = vmul.f32 %v1269, %v1807
        %v1809 = vadd.f32 %v1808, %v1273
        %s1810 = scalar_lea.vmem [#allocation25], 16
        %v1811 = vld [vmem:[%s1810] sm:$0xf]
        %v1812 = vld [vmem:[%s1810 + $0x4] sm:$0xf]
        %v1813 = vld [vmem:[%s1810 + $0x8] sm:$0xf]
        %v1814 = vld [vmem:[%s1810 + $0xc] sm:$0xf]
        %s1815 = scalar_lea.vmem [#allocation16], 1
        %v1816 = vld [vmem:[%s1815] sm:$0x1]
        %v1817 = vpack.c.bf16 %v1809, %v1809
        %v1819 = vperm.slane %v1816, 0
        %v1825 = vunpack.c.l.b16 %v1811
        %v1826 = vunpack.c.l.b16 %v1812
        %v1827 = vunpack.c.l.b16 %v1813
        %v1828 = vunpack.c.l.b16 %v1814
        %v1829 = vpack.c.b16 %v1826, %v1825
        %v1830 = vpack.c.b16 %v1828, %v1827
        %v1834 = vsel %vm1079, %v1817, 0
        %1836 = vmatpush.bf16.msra.mxu0 0
        %1837 = vmatpush.bf16.msra.mxu0 0
        %1838 = vmatpush.bf16.msra.mxu0 0
        %1839 = vmatpush.bf16.msra.mxu0 0
        %1840 = vmatpush.bf16.msra.mxu0 0
        %1841 = vmatpush.bf16.msra.mxu0 0
        %1842 = vmatpush.bf16.msra.mxu0 %v1830
        %1843 = vmatpush.bf16.msra.mxu0 %v1829
        %1844 = vmatmul.bf16.gmra.mxu0 %v1834
        %v1845 = vpop.f32.mrf.mxu0
        %v1846 = vadd.f32 %v1819, %v1845
        %v1847 = vpop.f32.mrf.mxu0
        %1848 = vdwg.mxu0
        %v1849 = vpack.c.bf16 %v1846, %v1846
        %1851 = vrot.lane.b32.xlu0 %v1849, 96
        %v1852 = vpop.permute.xlu0 %1851
        %v1854 = vsel %vm1320, %v1849, 0
        %v1857 = vsel %vm1320, %v1852, 0
        %1859 = vmatpush.bf16.xpose.msra.mxu0 0
        %1860 = vmatpush.bf16.xpose.msra.mxu0 0
        %1861 = vmatpush.bf16.xpose.msra.mxu0 0
        %1862 = vmatpush.bf16.xpose.msra.mxu0 0
        %1863 = vmatpush.bf16.xpose.msra.mxu0 0
        %1864 = vmatpush.bf16.xpose.msra.mxu0 0
        %1865 = vmatpush.bf16.xpose.msra.mxu0 0
        %1866 = vmatpush.bf16.xpose.msra.mxu0 %v1857
        %1867 = vmatmul.bf16.gmra.mxu0 %v1854
        %v1868 = vpop.f32.mrf.mxu0
        %v1869 = vadd.f32 %v1315, %v1868
        %v1870 = vpop.f32.mrf.mxu0
        %1871 = vdwg.mxu0
        %v1872 = vsel %vm1320, %v1869, -inf
        %1873 = vmax.xlane.f32.xlu0 %v1872
        %v1874 = vpop.xlane.xlu0 %1873
        %v1875 = vsub.f32 %v1869, %v1874
        %v1876 = vmul.f32 %v1875, 1.442695
        %v1877 = vpow.pop %v1876
        %v1878 = vsel %vm1320, %v1877, 0.0
        %1879 = vadd.xlane.f32.xlu0 %v1878
        %v1880 = vpop.xlane.xlu0 %1879
        %v1881 = vmul.f32 %v1877, %v985
        %v1882 = vsel %vm1320, %v1881, 0.0
        %1883 = vadd.xlane.f32.xlu0 %v1882
        %v1884 = vpop.xlane.xlu0 %1883
        %v1885 = vmul.f32 %v1880, 1e-05
        %v1886 = vadd.f32 %v1884, %v1885
        %v1887 = vrcp.pop %v1886
        %v1888 = vmul.f32 %v1881, %v1887
        %v1889 = vpack.c.bf16 %v1888, %v1888
        %1890 = vrot.lane.b32.xlu0 %v1849, 64
        %v1891 = vpop.permute.xlu0 %1890
        %v1893 = vsel %vm1320, %v1889, 0
        %v1896 = vsel %vm1363, %v1891, 0
        %1898 = vmatpush.bf16.msra.mxu0 0
        %1899 = vmatpush.bf16.msra.mxu0 0
        %1900 = vmatpush.bf16.msra.mxu0 0
        %1901 = vmatpush.bf16.msra.mxu0 0
        %1902 = vmatpush.bf16.msra.mxu0 0
        %1903 = vmatpush.bf16.msra.mxu0 0
        %1904 = vmatpush.bf16.msra.mxu0 0
        %1905 = vmatpush.bf16.msra.mxu0 %v1896
        %1906 = vmatmul.bf16.gmra.mxu0 %v1893
        %v1907 = vpop.f32.mrf.mxu0
        %v1908 = vadd.f32 0.0, %v1907
        %v1909 = vpop.f32.mrf.mxu0
        %1910 = vdwg.mxu0
        %1911 = vrot.lane.b32.xlu0 %v1849, 120
        %v1912 = vpop.permute.xlu0 %1911
        %1913 = vrot.lane.b32.xlu0 %v1849, 88
        %v1914 = vpop.permute.xlu0 %1913
        %v1916 = vsel %vm1320, %v1912, 0
        %v1919 = vsel %vm1320, %v1914, 0
        %1921 = vmatpush.bf16.xpose.msra.mxu0 0
        %1922 = vmatpush.bf16.xpose.msra.mxu0 0
        %1923 = vmatpush.bf16.xpose.msra.mxu0 0
        %1924 = vmatpush.bf16.xpose.msra.mxu0 0
        %1925 = vmatpush.bf16.xpose.msra.mxu0 0
        %1926 = vmatpush.bf16.xpose.msra.mxu0 0
        %1927 = vmatpush.bf16.xpose.msra.mxu0 0
        %1928 = vmatpush.bf16.xpose.msra.mxu0 %v1919
        %1929 = vmatmul.bf16.gmra.mxu0 %v1916
        %v1930 = vpop.f32.mrf.mxu0
        %v1931 = vadd.f32 %v1315, %v1930
        %v1932 = vpop.f32.mrf.mxu0
        %1933 = vdwg.mxu0
        %v1934 = vsel %vm1320, %v1931, -inf
        %1935 = vmax.xlane.f32.xlu0 %v1934
        %v1936 = vpop.xlane.xlu0 %1935
        %v1937 = vsub.f32 %v1931, %v1936
        %v1938 = vmul.f32 %v1937, 1.442695
        %v1939 = vpow.pop %v1938
        %v1940 = vsel %vm1320, %v1939, 0.0
        %1941 = vadd.xlane.f32.xlu0 %v1940
        %v1942 = vpop.xlane.xlu0 %1941
        %v1943 = vmul.f32 %v1939, %v985
        %v1944 = vsel %vm1320, %v1943, 0.0
        %1945 = vadd.xlane.f32.xlu0 %v1944
        %v1946 = vpop.xlane.xlu0 %1945
        %v1947 = vmul.f32 %v1942, 1e-05
        %v1948 = vadd.f32 %v1946, %v1947
        %v1949 = vrcp.pop %v1948
        %v1950 = vmul.f32 %v1943, %v1949
        %v1951 = vpack.c.bf16 %v1950, %v1950
        %1952 = vrot.lane.b32.xlu0 %v1849, 56
        %v1953 = vpop.permute.xlu0 %1952
        %v1955 = vsel %vm1320, %v1951, 0
        %v1958 = vsel %vm1363, %v1953, 0
        %1960 = vmatpush.bf16.msra.mxu0 0
        %1961 = vmatpush.bf16.msra.mxu0 0
        %1962 = vmatpush.bf16.msra.mxu0 0
        %1963 = vmatpush.bf16.msra.mxu0 0
        %1964 = vmatpush.bf16.msra.mxu0 0
        %1965 = vmatpush.bf16.msra.mxu0 0
        %1966 = vmatpush.bf16.msra.mxu0 0
        %1967 = vmatpush.bf16.msra.mxu0 %v1958
        %1968 = vmatmul.bf16.gmra.mxu0 %v1955
        %v1969 = vpop.f32.mrf.mxu0
        %v1970 = vadd.f32 0.0, %v1969
        %v1971 = vpop.f32.mrf.mxu0
        %1972 = vdwg.mxu0
        %1973 = vrot.lane.b32.xlu0 %v1849, 112
        %v1974 = vpop.permute.xlu0 %1973
        %1975 = vrot.lane.b32.xlu0 %v1849, 80
        %v1976 = vpop.permute.xlu0 %1975
        %v1978 = vsel %vm1320, %v1974, 0
        %v1981 = vsel %vm1320, %v1976, 0
        %1983 = vmatpush.bf16.xpose.msra.mxu0 0
        %1984 = vmatpush.bf16.xpose.msra.mxu0 0
        %1985 = vmatpush.bf16.xpose.msra.mxu0 0
        %1986 = vmatpush.bf16.xpose.msra.mxu0 0
        %1987 = vmatpush.bf16.xpose.msra.mxu0 0
        %1988 = vmatpush.bf16.xpose.msra.mxu0 0
        %1989 = vmatpush.bf16.xpose.msra.mxu0 0
        %1990 = vmatpush.bf16.xpose.msra.mxu0 %v1981
        %1991 = vmatmul.bf16.gmra.mxu0 %v1978
        %v1992 = vpop.f32.mrf.mxu0
        %v1993 = vadd.f32 %v1315, %v1992
        %v1994 = vpop.f32.mrf.mxu0
        %1995 = vdwg.mxu0
        %v1996 = vsel %vm1320, %v1993, -inf
        %1997 = vmax.xlane.f32.xlu0 %v1996
        %v1998 = vpop.xlane.xlu0 %1997
        %v1999 = vsub.f32 %v1993, %v1998
        %v2000 = vmul.f32 %v1999, 1.442695
        %v2001 = vpow.pop %v2000
        %v2002 = vsel %vm1320, %v2001, 0.0
        %2003 = vadd.xlane.f32.xlu0 %v2002
        %v2004 = vpop.xlane.xlu0 %2003
        %v2005 = vmul.f32 %v2001, %v985
        %v2006 = vsel %vm1320, %v2005, 0.0
        %2007 = vadd.xlane.f32.xlu0 %v2006
        %v2008 = vpop.xlane.xlu0 %2007
        %v2009 = vmul.f32 %v2004, 1e-05
        %v2010 = vadd.f32 %v2008, %v2009
        %v2011 = vrcp.pop %v2010
        %v2012 = vmul.f32 %v2005, %v2011
        %v2013 = vpack.c.bf16 %v2012, %v2012
        %2014 = vrot.lane.b32.xlu0 %v1849, 48
        %v2015 = vpop.permute.xlu0 %2014
        %v2017 = vsel %vm1320, %v2013, 0
        %v2020 = vsel %vm1363, %v2015, 0
        %2022 = vmatpush.bf16.msra.mxu0 0
        %2023 = vmatpush.bf16.msra.mxu0 0
        %2024 = vmatpush.bf16.msra.mxu0 0
        %2025 = vmatpush.bf16.msra.mxu0 0
        %2026 = vmatpush.bf16.msra.mxu0 0
        %2027 = vmatpush.bf16.msra.mxu0 0
        %2028 = vmatpush.bf16.msra.mxu0 0
        %2029 = vmatpush.bf16.msra.mxu0 %v2020
        %2030 = vmatmul.bf16.gmra.mxu0 %v2017
        %v2031 = vpop.f32.mrf.mxu0
        %v2032 = vadd.f32 0.0, %v2031
        %v2033 = vpop.f32.mrf.mxu0
        %2034 = vdwg.mxu0
        %2035 = vrot.lane.b32.xlu0 %v1849, 104
        %v2036 = vpop.permute.xlu0 %2035
        %2037 = vrot.lane.b32.xlu0 %v1849, 72
        %v2038 = vpop.permute.xlu0 %2037
        %v2040 = vsel %vm1320, %v2036, 0
        %v2043 = vsel %vm1320, %v2038, 0
        %2045 = vmatpush.bf16.xpose.msra.mxu0 0
        %2046 = vmatpush.bf16.xpose.msra.mxu0 0
        %2047 = vmatpush.bf16.xpose.msra.mxu0 0
        %2048 = vmatpush.bf16.xpose.msra.mxu0 0
        %2049 = vmatpush.bf16.xpose.msra.mxu0 0
        %2050 = vmatpush.bf16.xpose.msra.mxu0 0
        %2051 = vmatpush.bf16.xpose.msra.mxu0 0
        %2052 = vmatpush.bf16.xpose.msra.mxu0 %v2043
        %2053 = vmatmul.bf16.gmra.mxu0 %v2040
        %v2054 = vpop.f32.mrf.mxu0
        %v2055 = vadd.f32 %v1315, %v2054
        %v2056 = vpop.f32.mrf.mxu0
        %2057 = vdwg.mxu0
        %v2058 = vsel %vm1320, %v2055, -inf
        %2059 = vmax.xlane.f32.xlu0 %v2058
        %v2060 = vpop.xlane.xlu0 %2059
        %v2061 = vsub.f32 %v2055, %v2060
        %v2062 = vmul.f32 %v2061, 1.442695
        %v2063 = vpow.pop %v2062
        %v2064 = vsel %vm1320, %v2063, 0.0
        %2065 = vadd.xlane.f32.xlu0 %v2064
        %v2066 = vpop.xlane.xlu0 %2065
        %v2067 = vmul.f32 %v2063, %v985
        %v2068 = vsel %vm1320, %v2067, 0.0
        %2069 = vadd.xlane.f32.xlu0 %v2068
        %v2070 = vpop.xlane.xlu0 %2069
        %v2071 = vmul.f32 %v2066, 1e-05
        %v2072 = vadd.f32 %v2070, %v2071
        %v2073 = vrcp.pop %v2072
        %v2074 = vmul.f32 %v2067, %v2073
        %v2075 = vpack.c.bf16 %v2074, %v2074
        %2076 = vrot.lane.b32.xlu0 %v1849, 40
        %v2077 = vpop.permute.xlu0 %2076
        %v2079 = vsel %vm1320, %v2075, 0
        %v2082 = vsel %vm1363, %v2077, 0
        %2084 = vmatpush.bf16.msra.mxu0 0
        %2085 = vmatpush.bf16.msra.mxu0 0
        %2086 = vmatpush.bf16.msra.mxu0 0
        %2087 = vmatpush.bf16.msra.mxu0 0
        %2088 = vmatpush.bf16.msra.mxu0 0
        %2089 = vmatpush.bf16.msra.mxu0 0
        %2090 = vmatpush.bf16.msra.mxu0 0
        %2091 = vmatpush.bf16.msra.mxu0 %v2082
        %2092 = vmatmul.bf16.gmra.mxu0 %v2079
        %v2093 = vpop.f32.mrf.mxu0
        %v2094 = vadd.f32 0.0, %v2093
        %v2095 = vpop.f32.mrf.mxu0
        %2096 = vdwg.mxu0
        %2098 = vrot.lane.b32.xlu0 %v1970, 8
        %v2099 = vpop.permute.xlu0 %2098
        %2102 = vrot.lane.b32.xlu0 %v2032, 16
        %v2103 = vpop.permute.xlu0 %2102
        %2106 = vrot.lane.b32.xlu0 %v2094, 24
        %v2107 = vpop.permute.xlu0 %2106
        %v2109 = vsel %vm1320, %v1908, %v2099
        %v2110 = vsel %vm986, %v2109, %v2103
        %v2111 = vsel %vm1580, %v2110, %v2107
        %s2112 = scalar_lea.vmem [#allocation23], 16
        %v2113 = vld [vmem:[%s2112] sm:$0xf]
        %v2114 = vld [vmem:[%s2112 + $0x4] sm:$0xf]
        %v2115 = vld [vmem:[%s2112 + $0x8] sm:$0xf]
        %v2116 = vld [vmem:[%s2112 + $0xc] sm:$0xf]
        %s2117 = scalar_lea.vmem [#allocation14], 1
        %v2118 = vld [vmem:[%s2117] sm:$0x1]
        %v2119 = vpack.c.bf16 %v2111, %v2111
        %v2121 = vperm.slane %v2118, 0
        %v2127 = vunpack.c.l.b16 %v2113
        %v2128 = vunpack.c.l.b16 %v2114
        %v2129 = vunpack.c.l.b16 %v2115
        %v2130 = vunpack.c.l.b16 %v2116
        %v2131 = vpack.c.b16 %v2128, %v2127
        %v2132 = vpack.c.b16 %v2130, %v2129
        %v2136 = vsel %vm1079, %v2119, 0
        %2138 = vmatpush.bf16.msra.mxu0 0
        %2139 = vmatpush.bf16.msra.mxu0 0
        %2140 = vmatpush.bf16.msra.mxu0 0
        %2141 = vmatpush.bf16.msra.mxu0 0
        %2142 = vmatpush.bf16.msra.mxu0 0
        %2143 = vmatpush.bf16.msra.mxu0 0
        %2144 = vmatpush.bf16.msra.mxu0 %v2132
        %2145 = vmatpush.bf16.msra.mxu0 %v2131
        %2146 = vmatmul.bf16.gmra.mxu0 %v2136
        %v2147 = vpop.f32.mrf.mxu0
        %v2148 = vadd.f32 %v2121, %v2147
        %v2149 = vpop.f32.mrf.mxu0
        %2150 = vdwg.mxu0
        %v2151 = vmin.f32 %v2148, 20.0
        %v2152 = vmul.f32 %v2151, 1.442695
        %v2153 = vpow.pop %v2152
        %v2154 = vadd.f32 %v2153, 2.0
        %v2155 = vmul.f32 %v2153, %v2154
        %v2156 = vmul.f32 %v2148, %v2155
        %v2157 = vadd.f32 %v2155, 2.0
        %v2158 = vrcp.pop %v2157
        %v2159 = vmul.f32 %v2156, %v2158
        %vm2160 = vcmp.gt.f32.partialorder %v2148, 20.0
        %v2161 = vsel %vm2160, %v2148, %v2159
        %v2162 = vadd.f32 %v1809, %v2161
        %v2163 = vsel %vm1079, %v2162, 0.0
        %2164 = vadd.xlane.f32.xlu0 %v2163
        %v2165 = vpop.xlane.xlu0 %2164
        %v2166 = vmul.f32 %v2165, %v1089
        %v2167 = vsub.f32 %v2162, %v2166
        %v2168 = vmul.f32 %v2167, %v2167
        %v2169 = vsel %vm1079, %v2168, 0.0
        %2170 = vadd.xlane.f32.xlu0 %v2169
        %v2171 = vpop.xlane.xlu0 %2170
        %v2172 = vmul.f32 %v2171, %v1102
        %v2173 = vrsqrt.pop %v2172
        %v2174 = vmul.f32 %v2173, %v2172
        %v2175 = vmul.f32 %v2174, %v2173
        %v2176 = vmul.f32 0.5, %v2175
        %v2177 = vsub.f32 1.5, %v2176
        %v2178 = vmul.f32 %v2173, %v2177
        %v2179 = vmul.f32 %v2172, %v2178
        %vm2180 = vcmp.eq.f32.partialorder %v2172, inf
        %v2181 = vsel %vm2180, %v2172, %v2179
        %vm2182 = vcmp.eq.f32.partialorder %v2172, 0.0
        %v2183 = vand.u32 %v2172, 2147483648
        %v2184 = vsel %vm2182, %v2183, %v2181
        %v2185 = vadd.f32 %v2184, 1e-06
        %v2186 = vrcp.pop %v2185
        %v2187 = vmul.f32 %v2185, %v2186
        %v2188 = vsub.f32 1.0, %v2187
        %v2189 = vmul.f32 %v2186, %v2188
        %v2190 = vadd.f32 %v2186, %v2189
        %vm2191 = vweird.f32 %v2185
        %vm2192 = vweird.f32 %v2186
        %vm2193 = vmor %vm2191, %vm2192
        %v2194 = vsel %vm2193, %v2186, %v2190
        %v2195 = vand.u32 2147483647, %v2185
        %vm2196 = vcmp.eq.f32.partialorder %v2195, 8.507059e+37
        %v2197 = vand.u32 %v2185, 2147483648
        %v2198 = vor.u32 1.1754944e-38, %v2197
        %v2199 = vsel %vm2196, %v2198, %v2194
        %v2200 = vmul.f32 %v2167, %v2199
        %v2201 = vmul.f32 %v1269, %v2200
        %v2202 = vadd.f32 %v2201, %v1273
        %s2203 = scalar_lea.vmem [#allocation19], 32
        %v2204 = vld [vmem:[%s2203] sm:$0xf]
        %v2205 = vld [vmem:[%s2203 + $0x4] sm:$0xf]
        %v2206 = vld [vmem:[%s2203 + $0x8] sm:$0xf]
        %v2207 = vld [vmem:[%s2203 + $0xc] sm:$0xf]
        %s2208 = scalar_lea.vmem [#allocation17], 2
        %v2209 = vld [vmem:[%s2208] sm:$0x1]
        %v2210 = vpack.c.bf16 %v2202, %v2202
        %v2212 = vperm.slane %v2209, 0
        %v2218 = vunpack.c.l.b16 %v2204
        %v2219 = vunpack.c.l.b16 %v2205
        %v2220 = vunpack.c.l.b16 %v2206
        %v2221 = vunpack.c.l.b16 %v2207
        %v2222 = vpack.c.b16 %v2219, %v2218
        %v2223 = vpack.c.b16 %v2221, %v2220
        %v2227 = vsel %vm1079, %v2210, 0
        %2229 = vmatpush.bf16.msra.mxu0 0
        %2230 = vmatpush.bf16.msra.mxu0 0
        %2231 = vmatpush.bf16.msra.mxu0 0
        %2232 = vmatpush.bf16.msra.mxu0 0
        %2233 = vmatpush.bf16.msra.mxu0 0
        %2234 = vmatpush.bf16.msra.mxu0 0
        %2235 = vmatpush.bf16.msra.mxu0 %v2223
        %2236 = vmatpush.bf16.msra.mxu0 %v2222
        %2237 = vmatmul.bf16.gmra.mxu0 %v2227
        %v2238 = vpop.f32.mrf.mxu0
        %v2239 = vadd.f32 %v2212, %v2238
        %v2240 = vpop.f32.mrf.mxu0
        %2241 = vdwg.mxu0
        %v2242 = vmin.f32 %v2239, 20.0
        %v2243 = vmul.f32 %v2242, 1.442695
        %v2244 = vpow.pop %v2243
        %v2245 = vadd.f32 %v2244, 2.0
        %v2246 = vmul.f32 %v2244, %v2245
        %v2247 = vmul.f32 %v2239, %v2246
        %v2248 = vadd.f32 %v2246, 2.0
        %v2249 = vrcp.pop %v2248
        %v2250 = vmul.f32 %v2247, %v2249
        %vm2251 = vcmp.gt.f32.partialorder %v2239, 20.0
        %v2252 = vsel %vm2251, %v2239, %v2250
        %s2253 = scalar_lea.vmem [#allocation19], 48
        %v2254 = vld [vmem:[%s2253] sm:$0xf]
        %v2255 = vld [vmem:[%s2253 + $0x4] sm:$0xf]
        %v2256 = vld [vmem:[%s2253 + $0x8] sm:$0xf]
        %v2257 = vld [vmem:[%s2253 + $0xc] sm:$0xf]
        %s2258 = scalar_lea.vmem [#allocation17], 3
        %v2259 = vld [vmem:[%s2258] sm:$0x1]
        %v2260 = vpack.c.bf16 %v2252, %v2252
        %v2262 = vperm.slane %v2259, 0
        %v2268 = vunpack.c.l.b16 %v2254
        %v2269 = vunpack.c.l.b16 %v2255
        %v2270 = vunpack.c.l.b16 %v2256
        %v2271 = vunpack.c.l.b16 %v2257
        %v2272 = vpack.c.b16 %v2269, %v2268
        %v2273 = vpack.c.b16 %v2271, %v2270
        %v2277 = vsel %vm1079, %v2260, 0
        %2279 = vmatpush.bf16.msra.mxu0 0
        %2280 = vmatpush.bf16.msra.mxu0 0
        %2281 = vmatpush.bf16.msra.mxu0 0
        %2282 = vmatpush.bf16.msra.mxu0 0
        %2283 = vmatpush.bf16.msra.mxu0 0
        %2284 = vmatpush.bf16.msra.mxu0 0
        %2285 = vmatpush.bf16.msra.mxu0 %v2273
        %2286 = vmatpush.bf16.msra.mxu0 %v2272
        %2287 = vmatmul.bf16.gmra.mxu0 %v2277
        %v2288 = vpop.f32.mrf.mxu0
        %v2289 = vadd.f32 %v2262, %v2288
        %v2290 = vpop.f32.mrf.mxu0
        %2291 = vdwg.mxu0
        %v2292 = vmin.f32 %v2289, 20.0
        %v2293 = vmul.f32 %v2292, 1.442695
        %v2294 = vpow.pop %v2293
        %v2295 = vadd.f32 %v2294, 2.0
        %v2296 = vmul.f32 %v2294, %v2295
        %v2297 = vmul.f32 %v2289, %v2296
        %v2298 = vadd.f32 %v2296, 2.0
        %v2299 = vrcp.pop %v2298
        %v2300 = vmul.f32 %v2297, %v2299
        %vm2301 = vcmp.gt.f32.partialorder %v2289, 20.0
        %v2302 = vsel %vm2301, %v2289, %v2300
        %v2303 = vadd.f32 %v2202, %v2302
        %v2304 = vsel %vm1079, %v2303, 0.0
        %2305 = vadd.xlane.f32.xlu0 %v2304
        %v2306 = vpop.xlane.xlu0 %2305
        %v2307 = vmul.f32 %v2306, %v1089
        %v2308 = vsub.f32 %v2303, %v2307
        %v2309 = vmul.f32 %v2308, %v2308
        %v2310 = vsel %vm1079, %v2309, 0.0
        %2311 = vadd.xlane.f32.xlu0 %v2310
        %v2312 = vpop.xlane.xlu0 %2311
        %v2313 = vmul.f32 %v2312, %v1102
        %v2314 = vrsqrt.pop %v2313
        %v2315 = vmul.f32 %v2314, %v2313
        %v2316 = vmul.f32 %v2315, %v2314
        %v2317 = vmul.f32 0.5, %v2316
        %v2318 = vsub.f32 1.5, %v2317
        %v2319 = vmul.f32 %v2314, %v2318
        %v2320 = vmul.f32 %v2313, %v2319
        %vm2321 = vcmp.eq.f32.partialorder %v2313, inf
        %v2322 = vsel %vm2321, %v2313, %v2320
        %vm2323 = vcmp.eq.f32.partialorder %v2313, 0.0
        %v2324 = vand.u32 %v2313, 2147483648
        %v2325 = vsel %vm2323, %v2324, %v2322
        %v2326 = vadd.f32 %v2325, 1e-06
        %v2327 = vrcp.pop %v2326
        %v2328 = vmul.f32 %v2326, %v2327
        %v2329 = vsub.f32 1.0, %v2328
        %v2330 = vmul.f32 %v2327, %v2329
        %v2331 = vadd.f32 %v2327, %v2330
        %vm2332 = vweird.f32 %v2326
        %vm2333 = vweird.f32 %v2327
        %vm2334 = vmor %vm2332, %vm2333
        %v2335 = vsel %vm2334, %v2327, %v2331
        %v2336 = vand.u32 2147483647, %v2326
        %vm2337 = vcmp.eq.f32.partialorder %v2336, 8.507059e+37
        %v2338 = vand.u32 %v2326, 2147483648
        %v2339 = vor.u32 1.1754944e-38, %v2338
        %v2340 = vsel %vm2337, %v2339, %v2335
        %v2341 = vmul.f32 %v2308, %v2340
        %v2342 = vmul.f32 %v1269, %v2341
        %v2343 = vadd.f32 %v2342, %v1273
        %s2344 = scalar_lea.vmem [#allocation25], 32
        %v2345 = vld [vmem:[%s2344] sm:$0xf]
        %v2346 = vld [vmem:[%s2344 + $0x4] sm:$0xf]
        %v2347 = vld [vmem:[%s2344 + $0x8] sm:$0xf]
        %v2348 = vld [vmem:[%s2344 + $0xc] sm:$0xf]
        %s2349 = scalar_lea.vmem [#allocation16], 2
        %v2350 = vld [vmem:[%s2349] sm:$0x1]
        %v2351 = vpack.c.bf16 %v2343, %v2343
        %v2353 = vperm.slane %v2350, 0
        %v2359 = vunpack.c.l.b16 %v2345
        %v2360 = vunpack.c.l.b16 %v2346
        %v2361 = vunpack.c.l.b16 %v2347
        %v2362 = vunpack.c.l.b16 %v2348
        %v2363 = vpack.c.b16 %v2360, %v2359
        %v2364 = vpack.c.b16 %v2362, %v2361
        %v2368 = vsel %vm1079, %v2351, 0
        %2370 = vmatpush.bf16.msra.mxu0 0
        %2371 = vmatpush.bf16.msra.mxu0 0
        %2372 = vmatpush.bf16.msra.mxu0 0
        %2373 = vmatpush.bf16.msra.mxu0 0
        %2374 = vmatpush.bf16.msra.mxu0 0
        %2375 = vmatpush.bf16.msra.mxu0 0
        %2376 = vmatpush.bf16.msra.mxu0 %v2364
        %2377 = vmatpush.bf16.msra.mxu0 %v2363
        %2378 = vmatmul.bf16.gmra.mxu0 %v2368
        %v2379 = vpop.f32.mrf.mxu0
        %v2380 = vadd.f32 %v2353, %v2379
        %v2381 = vpop.f32.mrf.mxu0
        %2382 = vdwg.mxu0
        %v2383 = vpack.c.bf16 %v2380, %v2380
        %2385 = vrot.lane.b32.xlu0 %v2383, 96
        %v2386 = vpop.permute.xlu0 %2385
        %v2388 = vsel %vm1320, %v2383, 0
        %v2391 = vsel %vm1320, %v2386, 0
        %2393 = vmatpush.bf16.xpose.msra.mxu0 0
        %2394 = vmatpush.bf16.xpose.msra.mxu0 0
        %2395 = vmatpush.bf16.xpose.msra.mxu0 0
        %2396 = vmatpush.bf16.xpose.msra.mxu0 0
        %2397 = vmatpush.bf16.xpose.msra.mxu0 0
        %2398 = vmatpush.bf16.xpose.msra.mxu0 0
        %2399 = vmatpush.bf16.xpose.msra.mxu0 0
        %2400 = vmatpush.bf16.xpose.msra.mxu0 %v2391
        %2401 = vmatmul.bf16.gmra.mxu0 %v2388
        %v2402 = vpop.f32.mrf.mxu0
        %v2403 = vadd.f32 %v1315, %v2402
        %v2404 = vpop.f32.mrf.mxu0
        %2405 = vdwg.mxu0
        %v2406 = vsel %vm1320, %v2403, -inf
        %2407 = vmax.xlane.f32.xlu0 %v2406
        %v2408 = vpop.xlane.xlu0 %2407
        %v2409 = vsub.f32 %v2403, %v2408
        %v2410 = vmul.f32 %v2409, 1.442695
        %v2411 = vpow.pop %v2410
        %v2412 = vsel %vm1320, %v2411, 0.0
        %2413 = vadd.xlane.f32.xlu0 %v2412
        %v2414 = vpop.xlane.xlu0 %2413
        %v2415 = vmul.f32 %v2411, %v985
        %v2416 = vsel %vm1320, %v2415, 0.0
        %2417 = vadd.xlane.f32.xlu0 %v2416
        %v2418 = vpop.xlane.xlu0 %2417
        %v2419 = vmul.f32 %v2414, 1e-05
        %v2420 = vadd.f32 %v2418, %v2419
        %v2421 = vrcp.pop %v2420
        %v2422 = vmul.f32 %v2415, %v2421
        %v2423 = vpack.c.bf16 %v2422, %v2422
        %2424 = vrot.lane.b32.xlu0 %v2383, 64
        %v2425 = vpop.permute.xlu0 %2424
        %v2427 = vsel %vm1320, %v2423, 0
        %v2430 = vsel %vm1363, %v2425, 0
        %2432 = vmatpush.bf16.msra.mxu0 0
        %2433 = vmatpush.bf16.msra.mxu0 0
        %2434 = vmatpush.bf16.msra.mxu0 0
        %2435 = vmatpush.bf16.msra.mxu0 0
        %2436 = vmatpush.bf16.msra.mxu0 0
        %2437 = vmatpush.bf16.msra.mxu0 0
        %2438 = vmatpush.bf16.msra.mxu0 0
        %2439 = vmatpush.bf16.msra.mxu0 %v2430
        %2440 = vmatmul.bf16.gmra.mxu0 %v2427
        %v2441 = vpop.f32.mrf.mxu0
        %v2442 = vadd.f32 0.0, %v2441
        %v2443 = vpop.f32.mrf.mxu0
        %2444 = vdwg.mxu0
        %2445 = vrot.lane.b32.xlu0 %v2383, 120
        %v2446 = vpop.permute.xlu0 %2445
        %2447 = vrot.lane.b32.xlu0 %v2383, 88
        %v2448 = vpop.permute.xlu0 %2447
        %v2450 = vsel %vm1320, %v2446, 0
        %v2453 = vsel %vm1320, %v2448, 0
        %2455 = vmatpush.bf16.xpose.msra.mxu0 0
        %2456 = vmatpush.bf16.xpose.msra.mxu0 0
        %2457 = vmatpush.bf16.xpose.msra.mxu0 0
        %2458 = vmatpush.bf16.xpose.msra.mxu0 0
        %2459 = vmatpush.bf16.xpose.msra.mxu0 0
        %2460 = vmatpush.bf16.xpose.msra.mxu0 0
        %2461 = vmatpush.bf16.xpose.msra.mxu0 0
        %2462 = vmatpush.bf16.xpose.msra.mxu0 %v2453
        %2463 = vmatmul.bf16.gmra.mxu0 %v2450
        %v2464 = vpop.f32.mrf.mxu0
        %v2465 = vadd.f32 %v1315, %v2464
        %v2466 = vpop.f32.mrf.mxu0
        %2467 = vdwg.mxu0
        %v2468 = vsel %vm1320, %v2465, -inf
        %2469 = vmax.xlane.f32.xlu0 %v2468
        %v2470 = vpop.xlane.xlu0 %2469
        %v2471 = vsub.f32 %v2465, %v2470
        %v2472 = vmul.f32 %v2471, 1.442695
        %v2473 = vpow.pop %v2472
        %v2474 = vsel %vm1320, %v2473, 0.0
        %2475 = vadd.xlane.f32.xlu0 %v2474
        %v2476 = vpop.xlane.xlu0 %2475
        %v2477 = vmul.f32 %v2473, %v985
        %v2478 = vsel %vm1320, %v2477, 0.0
        %2479 = vadd.xlane.f32.xlu0 %v2478
        %v2480 = vpop.xlane.xlu0 %2479
        %v2481 = vmul.f32 %v2476, 1e-05
        %v2482 = vadd.f32 %v2480, %v2481
        %v2483 = vrcp.pop %v2482
        %v2484 = vmul.f32 %v2477, %v2483
        %v2485 = vpack.c.bf16 %v2484, %v2484
        %2486 = vrot.lane.b32.xlu0 %v2383, 56
        %v2487 = vpop.permute.xlu0 %2486
        %v2489 = vsel %vm1320, %v2485, 0
        %v2492 = vsel %vm1363, %v2487, 0
        %2494 = vmatpush.bf16.msra.mxu0 0
        %2495 = vmatpush.bf16.msra.mxu0 0
        %2496 = vmatpush.bf16.msra.mxu0 0
        %2497 = vmatpush.bf16.msra.mxu0 0
        %2498 = vmatpush.bf16.msra.mxu0 0
        %2499 = vmatpush.bf16.msra.mxu0 0
        %2500 = vmatpush.bf16.msra.mxu0 0
        %2501 = vmatpush.bf16.msra.mxu0 %v2492
        %2502 = vmatmul.bf16.gmra.mxu0 %v2489
        %v2503 = vpop.f32.mrf.mxu0
        %v2504 = vadd.f32 0.0, %v2503
        %v2505 = vpop.f32.mrf.mxu0
        %2506 = vdwg.mxu0
        %2507 = vrot.lane.b32.xlu0 %v2383, 112
        %v2508 = vpop.permute.xlu0 %2507
        %2509 = vrot.lane.b32.xlu0 %v2383, 80
        %v2510 = vpop.permute.xlu0 %2509
        %v2512 = vsel %vm1320, %v2508, 0
        %v2515 = vsel %vm1320, %v2510, 0
        %2517 = vmatpush.bf16.xpose.msra.mxu0 0
        %2518 = vmatpush.bf16.xpose.msra.mxu0 0
        %2519 = vmatpush.bf16.xpose.msra.mxu0 0
        %2520 = vmatpush.bf16.xpose.msra.mxu0 0
        %2521 = vmatpush.bf16.xpose.msra.mxu0 0
        %2522 = vmatpush.bf16.xpose.msra.mxu0 0
        %2523 = vmatpush.bf16.xpose.msra.mxu0 0
        %2524 = vmatpush.bf16.xpose.msra.mxu0 %v2515
        %2525 = vmatmul.bf16.gmra.mxu0 %v2512
        %v2526 = vpop.f32.mrf.mxu0
        %v2527 = vadd.f32 %v1315, %v2526
        %v2528 = vpop.f32.mrf.mxu0
        %2529 = vdwg.mxu0
        %v2530 = vsel %vm1320, %v2527, -inf
        %2531 = vmax.xlane.f32.xlu0 %v2530
        %v2532 = vpop.xlane.xlu0 %2531
        %v2533 = vsub.f32 %v2527, %v2532
        %v2534 = vmul.f32 %v2533, 1.442695
        %v2535 = vpow.pop %v2534
        %v2536 = vsel %vm1320, %v2535, 0.0
        %2537 = vadd.xlane.f32.xlu0 %v2536
        %v2538 = vpop.xlane.xlu0 %2537
        %v2539 = vmul.f32 %v2535, %v985
        %v2540 = vsel %vm1320, %v2539, 0.0
        %2541 = vadd.xlane.f32.xlu0 %v2540
        %v2542 = vpop.xlane.xlu0 %2541
        %v2543 = vmul.f32 %v2538, 1e-05
        %v2544 = vadd.f32 %v2542, %v2543
        %v2545 = vrcp.pop %v2544
        %v2546 = vmul.f32 %v2539, %v2545
        %v2547 = vpack.c.bf16 %v2546, %v2546
        %2548 = vrot.lane.b32.xlu0 %v2383, 48
        %v2549 = vpop.permute.xlu0 %2548
        %v2551 = vsel %vm1320, %v2547, 0
        %v2554 = vsel %vm1363, %v2549, 0
        %2556 = vmatpush.bf16.msra.mxu0 0
        %2557 = vmatpush.bf16.msra.mxu0 0
        %2558 = vmatpush.bf16.msra.mxu0 0
        %2559 = vmatpush.bf16.msra.mxu0 0
        %2560 = vmatpush.bf16.msra.mxu0 0
        %2561 = vmatpush.bf16.msra.mxu0 0
        %2562 = vmatpush.bf16.msra.mxu0 0
        %2563 = vmatpush.bf16.msra.mxu0 %v2554
        %2564 = vmatmul.bf16.gmra.mxu0 %v2551
        %v2565 = vpop.f32.mrf.mxu0
        %v2566 = vadd.f32 0.0, %v2565
        %v2567 = vpop.f32.mrf.mxu0
        %2568 = vdwg.mxu0
        %2569 = vrot.lane.b32.xlu0 %v2383, 104
        %v2570 = vpop.permute.xlu0 %2569
        %2571 = vrot.lane.b32.xlu0 %v2383, 72
        %v2572 = vpop.permute.xlu0 %2571
        %v2574 = vsel %vm1320, %v2570, 0
        %v2577 = vsel %vm1320, %v2572, 0
        %2579 = vmatpush.bf16.xpose.msra.mxu0 0
        %2580 = vmatpush.bf16.xpose.msra.mxu0 0
        %2581 = vmatpush.bf16.xpose.msra.mxu0 0
        %2582 = vmatpush.bf16.xpose.msra.mxu0 0
        %2583 = vmatpush.bf16.xpose.msra.mxu0 0
        %2584 = vmatpush.bf16.xpose.msra.mxu0 0
        %2585 = vmatpush.bf16.xpose.msra.mxu0 0
        %2586 = vmatpush.bf16.xpose.msra.mxu0 %v2577
        %2587 = vmatmul.bf16.gmra.mxu0 %v2574
        %v2588 = vpop.f32.mrf.mxu0
        %v2589 = vadd.f32 %v1315, %v2588
        %v2590 = vpop.f32.mrf.mxu0
        %2591 = vdwg.mxu0
        %v2592 = vsel %vm1320, %v2589, -inf
        %2593 = vmax.xlane.f32.xlu0 %v2592
        %v2594 = vpop.xlane.xlu0 %2593
        %v2595 = vsub.f32 %v2589, %v2594
        %v2596 = vmul.f32 %v2595, 1.442695
        %v2597 = vpow.pop %v2596
        %v2598 = vsel %vm1320, %v2597, 0.0
        %2599 = vadd.xlane.f32.xlu0 %v2598
        %v2600 = vpop.xlane.xlu0 %2599
        %v2601 = vmul.f32 %v2597, %v985
        %v2602 = vsel %vm1320, %v2601, 0.0
        %2603 = vadd.xlane.f32.xlu0 %v2602
        %v2604 = vpop.xlane.xlu0 %2603
        %v2605 = vmul.f32 %v2600, 1e-05
        %v2606 = vadd.f32 %v2604, %v2605
        %v2607 = vrcp.pop %v2606
        %v2608 = vmul.f32 %v2601, %v2607
        %v2609 = vpack.c.bf16 %v2608, %v2608
        %2610 = vrot.lane.b32.xlu0 %v2383, 40
        %v2611 = vpop.permute.xlu0 %2610
        %v2613 = vsel %vm1320, %v2609, 0
        %v2616 = vsel %vm1363, %v2611, 0
        %2618 = vmatpush.bf16.msra.mxu0 0
        %2619 = vmatpush.bf16.msra.mxu0 0
        %2620 = vmatpush.bf16.msra.mxu0 0
        %2621 = vmatpush.bf16.msra.mxu0 0
        %2622 = vmatpush.bf16.msra.mxu0 0
        %2623 = vmatpush.bf16.msra.mxu0 0
        %2624 = vmatpush.bf16.msra.mxu0 0
        %2625 = vmatpush.bf16.msra.mxu0 %v2616
        %2626 = vmatmul.bf16.gmra.mxu0 %v2613
        %v2627 = vpop.f32.mrf.mxu0
        %v2628 = vadd.f32 0.0, %v2627
        %v2629 = vpop.f32.mrf.mxu0
        %2630 = vdwg.mxu0
        %2632 = vrot.lane.b32.xlu0 %v2504, 8
        %v2633 = vpop.permute.xlu0 %2632
        %2636 = vrot.lane.b32.xlu0 %v2566, 16
        %v2637 = vpop.permute.xlu0 %2636
        %2640 = vrot.lane.b32.xlu0 %v2628, 24
        %v2641 = vpop.permute.xlu0 %2640
        %v2643 = vsel %vm1320, %v2442, %v2633
        %v2644 = vsel %vm986, %v2643, %v2637
        %v2645 = vsel %vm1580, %v2644, %v2641
        %s2646 = scalar_lea.vmem [#allocation23], 32
        %v2647 = vld [vmem:[%s2646] sm:$0xf]
        %v2648 = vld [vmem:[%s2646 + $0x4] sm:$0xf]
        %v2649 = vld [vmem:[%s2646 + $0x8] sm:$0xf]
        %v2650 = vld [vmem:[%s2646 + $0xc] sm:$0xf]
        %s2651 = scalar_lea.vmem [#allocation14], 2
        %v2652 = vld [vmem:[%s2651] sm:$0x1]
        %v2653 = vpack.c.bf16 %v2645, %v2645
        %v2655 = vperm.slane %v2652, 0
        %v2661 = vunpack.c.l.b16 %v2647
        %v2662 = vunpack.c.l.b16 %v2648
        %v2663 = vunpack.c.l.b16 %v2649
        %v2664 = vunpack.c.l.b16 %v2650
        %v2665 = vpack.c.b16 %v2662, %v2661
        %v2666 = vpack.c.b16 %v2664, %v2663
        %v2670 = vsel %vm1079, %v2653, 0
        %2672 = vmatpush.bf16.msra.mxu0 0
        %2673 = vmatpush.bf16.msra.mxu0 0
        %2674 = vmatpush.bf16.msra.mxu0 0
        %2675 = vmatpush.bf16.msra.mxu0 0
        %2676 = vmatpush.bf16.msra.mxu0 0
        %2677 = vmatpush.bf16.msra.mxu0 0
        %2678 = vmatpush.bf16.msra.mxu0 %v2666
        %2679 = vmatpush.bf16.msra.mxu0 %v2665
        %2680 = vmatmul.bf16.gmra.mxu0 %v2670
        %v2681 = vpop.f32.mrf.mxu0
        %v2682 = vadd.f32 %v2655, %v2681
        %v2683 = vpop.f32.mrf.mxu0
        %2684 = vdwg.mxu0
        %v2685 = vmin.f32 %v2682, 20.0
        %v2686 = vmul.f32 %v2685, 1.442695
        %v2687 = vpow.pop %v2686
        %v2688 = vadd.f32 %v2687, 2.0
        %v2689 = vmul.f32 %v2687, %v2688
        %v2690 = vmul.f32 %v2682, %v2689
        %v2691 = vadd.f32 %v2689, 2.0
        %v2692 = vrcp.pop %v2691
        %v2693 = vmul.f32 %v2690, %v2692
        %vm2694 = vcmp.gt.f32.partialorder %v2682, 20.0
        %v2695 = vsel %vm2694, %v2682, %v2693
        %v2696 = vadd.f32 %v2343, %v2695
        %v2697 = vsel %vm1079, %v2696, 0.0
        %2698 = vadd.xlane.f32.xlu0 %v2697
        %v2699 = vpop.xlane.xlu0 %2698
        %v2700 = vmul.f32 %v2699, %v1089
        %v2701 = vsub.f32 %v2696, %v2700
        %v2702 = vmul.f32 %v2701, %v2701
        %v2703 = vsel %vm1079, %v2702, 0.0
        %2704 = vadd.xlane.f32.xlu0 %v2703
        %v2705 = vpop.xlane.xlu0 %2704
        %v2706 = vmul.f32 %v2705, %v1102
        %v2707 = vrsqrt.pop %v2706
        %v2708 = vmul.f32 %v2707, %v2706
        %v2709 = vmul.f32 %v2708, %v2707
        %v2710 = vmul.f32 0.5, %v2709
        %v2711 = vsub.f32 1.5, %v2710
        %v2712 = vmul.f32 %v2707, %v2711
        %v2713 = vmul.f32 %v2706, %v2712
        %vm2714 = vcmp.eq.f32.partialorder %v2706, inf
        %v2715 = vsel %vm2714, %v2706, %v2713
        %vm2716 = vcmp.eq.f32.partialorder %v2706, 0.0
        %v2717 = vand.u32 %v2706, 2147483648
        %v2718 = vsel %vm2716, %v2717, %v2715
        %v2719 = vadd.f32 %v2718, 1e-06
        %v2720 = vrcp.pop %v2719
        %v2721 = vmul.f32 %v2719, %v2720
        %v2722 = vsub.f32 1.0, %v2721
        %v2723 = vmul.f32 %v2720, %v2722
        %v2724 = vadd.f32 %v2720, %v2723
        %vm2725 = vweird.f32 %v2719
        %vm2726 = vweird.f32 %v2720
        %vm2727 = vmor %vm2725, %vm2726
        %v2728 = vsel %vm2727, %v2720, %v2724
        %v2729 = vand.u32 2147483647, %v2719
        %vm2730 = vcmp.eq.f32.partialorder %v2729, 8.507059e+37
        %v2731 = vand.u32 %v2719, 2147483648
        %v2732 = vor.u32 1.1754944e-38, %v2731
        %v2733 = vsel %vm2730, %v2732, %v2728
        %v2734 = vmul.f32 %v2701, %v2733
        %v2735 = vmul.f32 %v1269, %v2734
        %v2736 = vadd.f32 %v2735, %v1273
        %s2737 = scalar_lea.vmem [#allocation19], 64
        %v2738 = vld [vmem:[%s2737] sm:$0xf]
        %v2739 = vld [vmem:[%s2737 + $0x4] sm:$0xf]
        %v2740 = vld [vmem:[%s2737 + $0x8] sm:$0xf]
        %v2741 = vld [vmem:[%s2737 + $0xc] sm:$0xf]
        %s2742 = scalar_lea.vmem [#allocation17], 4
        %v2743 = vld [vmem:[%s2742] sm:$0x1]
        %v2744 = vpack.c.bf16 %v2736, %v2736
        %v2746 = vperm.slane %v2743, 0
        %v2752 = vunpack.c.l.b16 %v2738
        %v2753 = vunpack.c.l.b16 %v2739
        %v2754 = vunpack.c.l.b16 %v2740
        %v2755 = vunpack.c.l.b16 %v2741
        %v2756 = vpack.c.b16 %v2753, %v2752
        %v2757 = vpack.c.b16 %v2755, %v2754
        %v2761 = vsel %vm1079, %v2744, 0
        %2763 = vmatpush.bf16.msra.mxu0 0
        %2764 = vmatpush.bf16.msra.mxu0 0
        %2765 = vmatpush.bf16.msra.mxu0 0
        %2766 = vmatpush.bf16.msra.mxu0 0
        %2767 = vmatpush.bf16.msra.mxu0 0
        %2768 = vmatpush.bf16.msra.mxu0 0
        %2769 = vmatpush.bf16.msra.mxu0 %v2757
        %2770 = vmatpush.bf16.msra.mxu0 %v2756
        %2771 = vmatmul.bf16.gmra.mxu0 %v2761
        %v2772 = vpop.f32.mrf.mxu0
        %v2773 = vadd.f32 %v2746, %v2772
        %v2774 = vpop.f32.mrf.mxu0
        %2775 = vdwg.mxu0
        %v2776 = vmin.f32 %v2773, 20.0
        %v2777 = vmul.f32 %v2776, 1.442695
        %v2778 = vpow.pop %v2777
        %v2779 = vadd.f32 %v2778, 2.0
        %v2780 = vmul.f32 %v2778, %v2779
        %v2781 = vmul.f32 %v2773, %v2780
        %v2782 = vadd.f32 %v2780, 2.0
        %v2783 = vrcp.pop %v2782
        %v2784 = vmul.f32 %v2781, %v2783
        %vm2785 = vcmp.gt.f32.partialorder %v2773, 20.0
        %v2786 = vsel %vm2785, %v2773, %v2784
        %s2787 = scalar_lea.vmem [#allocation19], 80
        %v2788 = vld [vmem:[%s2787] sm:$0xf]
        %v2789 = vld [vmem:[%s2787 + $0x4] sm:$0xf]
        %v2790 = vld [vmem:[%s2787 + $0x8] sm:$0xf]
        %v2791 = vld [vmem:[%s2787 + $0xc] sm:$0xf]
        %s2792 = scalar_lea.vmem [#allocation17], 5
        %v2793 = vld [vmem:[%s2792] sm:$0x1]
        %v2794 = vpack.c.bf16 %v2786, %v2786
        %v2796 = vperm.slane %v2793, 0
        %v2802 = vunpack.c.l.b16 %v2788
        %v2803 = vunpack.c.l.b16 %v2789
        %v2804 = vunpack.c.l.b16 %v2790
        %v2805 = vunpack.c.l.b16 %v2791
        %v2806 = vpack.c.b16 %v2803, %v2802
        %v2807 = vpack.c.b16 %v2805, %v2804
        %v2811 = vsel %vm1079, %v2794, 0
        %2813 = vmatpush.bf16.msra.mxu0 0
        %2814 = vmatpush.bf16.msra.mxu0 0
        %2815 = vmatpush.bf16.msra.mxu0 0
        %2816 = vmatpush.bf16.msra.mxu0 0
        %2817 = vmatpush.bf16.msra.mxu0 0
        %2818 = vmatpush.bf16.msra.mxu0 0
        %2819 = vmatpush.bf16.msra.mxu0 %v2807
        %2820 = vmatpush.bf16.msra.mxu0 %v2806
        %2821 = vmatmul.bf16.gmra.mxu0 %v2811
        %v2822 = vpop.f32.mrf.mxu0
        %v2823 = vadd.f32 %v2796, %v2822
        %v2824 = vpop.f32.mrf.mxu0
        %2825 = vdwg.mxu0
        %v2826 = vmin.f32 %v2823, 20.0
        %v2827 = vmul.f32 %v2826, 1.442695
        %v2828 = vpow.pop %v2827
        %v2829 = vadd.f32 %v2828, 2.0
        %v2830 = vmul.f32 %v2828, %v2829
        %v2831 = vmul.f32 %v2823, %v2830
        %v2832 = vadd.f32 %v2830, 2.0
        %v2833 = vrcp.pop %v2832
        %v2834 = vmul.f32 %v2831, %v2833
        %vm2835 = vcmp.gt.f32.partialorder %v2823, 20.0
        %v2836 = vsel %vm2835, %v2823, %v2834
        %v2837 = vadd.f32 %v2736, %v2836
        %v2838 = vsel %vm1079, %v2837, 0.0
        %2839 = vadd.xlane.f32.xlu0 %v2838
        %v2840 = vpop.xlane.xlu0 %2839
        %v2841 = vmul.f32 %v2840, %v1089
        %v2842 = vsub.f32 %v2837, %v2841
        %v2843 = vmul.f32 %v2842, %v2842
        %v2844 = vsel %vm1079, %v2843, 0.0
        %2845 = vadd.xlane.f32.xlu0 %v2844
        %v2846 = vpop.xlane.xlu0 %2845
        %v2847 = vmul.f32 %v2846, %v1102
        %v2848 = vrsqrt.pop %v2847
        %v2849 = vmul.f32 %v2848, %v2847
        %v2850 = vmul.f32 %v2849, %v2848
        %v2851 = vmul.f32 0.5, %v2850
        %v2852 = vsub.f32 1.5, %v2851
        %v2853 = vmul.f32 %v2848, %v2852
        %v2854 = vmul.f32 %v2847, %v2853
        %vm2855 = vcmp.eq.f32.partialorder %v2847, inf
        %v2856 = vsel %vm2855, %v2847, %v2854
        %vm2857 = vcmp.eq.f32.partialorder %v2847, 0.0
        %v2858 = vand.u32 %v2847, 2147483648
        %v2859 = vsel %vm2857, %v2858, %v2856
        %v2860 = vadd.f32 %v2859, 1e-06
        %v2861 = vrcp.pop %v2860
        %v2862 = vmul.f32 %v2860, %v2861
        %v2863 = vsub.f32 1.0, %v2862
        %v2864 = vmul.f32 %v2861, %v2863
        %v2865 = vadd.f32 %v2861, %v2864
        %vm2866 = vweird.f32 %v2860
        %vm2867 = vweird.f32 %v2861
        %vm2868 = vmor %vm2866, %vm2867
        %v2869 = vsel %vm2868, %v2861, %v2865
        %v2870 = vand.u32 2147483647, %v2860
        %vm2871 = vcmp.eq.f32.partialorder %v2870, 8.507059e+37
        %v2872 = vand.u32 %v2860, 2147483648
        %v2873 = vor.u32 1.1754944e-38, %v2872
        %v2874 = vsel %vm2871, %v2873, %v2869
        %v2875 = vmul.f32 %v2842, %v2874
        %v2876 = vld [vmem:[%s19] sm:$0xf]
        %v2877 = vld [vmem:[%s19 + $0x4] sm:$0xf]
        %v2878 = vld [vmem:[%s19 + $0x8] sm:$0xf]
        %v2879 = vld [vmem:[%s19 + $0xc] sm:$0xf]
        %v2880 = vld [vmem:[#allocation26] sm:$0x1]
        %v2881 = vpack.c.bf16 %v2875, %v2875
        %v2883 = vperm.slane %v2880, 0
        %v2889 = vunpack.c.l.b16 %v2876
        %v2890 = vunpack.c.l.b16 %v2877
        %v2891 = vunpack.c.l.b16 %v2878
        %v2892 = vunpack.c.l.b16 %v2879
        %v2893 = vpack.c.b16 %v2890, %v2889
        %v2894 = vpack.c.b16 %v2892, %v2891
        %v2898 = vsel %vm1079, %v2881, 0
        %2900 = vmatpush.bf16.msra.mxu0 0
        %2901 = vmatpush.bf16.msra.mxu0 0
        %2902 = vmatpush.bf16.msra.mxu0 0
        %2903 = vmatpush.bf16.msra.mxu0 0
        %2904 = vmatpush.bf16.msra.mxu0 0
        %2905 = vmatpush.bf16.msra.mxu0 0
        %2906 = vmatpush.bf16.msra.mxu0 %v2894
        %2907 = vmatpush.bf16.msra.mxu0 %v2893
        %2908 = vmatmul.bf16.gmra.mxu0 %v2898
        %v2909 = vpop.f32.mrf.mxu0
        %v2910 = vadd.f32 %v2883, %v2909
        %v2911 = vpop.f32.mrf.mxu0
        %2912 = vdwg.mxu0
        %v2913 = vmin.f32 %v2910, 20.0
        %v2914 = vmul.f32 %v2913, 1.442695
        %v2915 = vpow.pop %v2914
        %v2916 = vadd.f32 %v2915, 2.0
        %v2917 = vmul.f32 %v2915, %v2916
        %v2918 = vmul.f32 %v2910, %v2917
        %v2919 = vadd.f32 %v2917, 2.0
        %v2920 = vrcp.pop %v2919
        %v2921 = vmul.f32 %v2918, %v2920
        %vm2922 = vcmp.gt.f32.partialorder %v2910, 20.0
        %v2923 = vsel %vm2922, %v2910, %v2921
        %v2924 = vsel %vm1079, %v2923, 0.0
        %2925 = vadd.xlane.f32.xlu0 %v2924
        %v2926 = vpop.xlane.xlu0 %2925
        %v2927 = vmul.f32 %v2926, %v1089
        %v2928 = vsub.f32 %v2923, %v2927
        %v2929 = vmul.f32 %v2928, %v2928
        %v2930 = vsel %vm1079, %v2929, 0.0
        %2931 = vadd.xlane.f32.xlu0 %v2930
        %v2932 = vpop.xlane.xlu0 %2931
        %v2933 = vmul.f32 %v2932, %v1102
        %v2934 = vrsqrt.pop %v2933
        %v2935 = vmul.f32 %v2934, %v2933
        %v2936 = vmul.f32 %v2935, %v2934
        %v2937 = vmul.f32 0.5, %v2936
        %v2938 = vsub.f32 1.5, %v2937
        %v2939 = vmul.f32 %v2934, %v2938
        %v2940 = vmul.f32 %v2933, %v2939
        %vm2941 = vcmp.eq.f32.partialorder %v2933, inf
        %v2942 = vsel %vm2941, %v2933, %v2940
        %vm2943 = vcmp.eq.f32.partialorder %v2933, 0.0
        %v2944 = vand.u32 %v2933, 2147483648
        %v2945 = vsel %vm2943, %v2944, %v2942
        %v2946 = vadd.f32 %v2945, 1e-06
        %v2947 = vrcp.pop %v2946
        %v2948 = vmul.f32 %v2946, %v2947
        %v2949 = vsub.f32 1.0, %v2948
        %v2950 = vmul.f32 %v2947, %v2949
        %v2951 = vadd.f32 %v2947, %v2950
        %vm2952 = vweird.f32 %v2946
        %vm2953 = vweird.f32 %v2947
        %vm2954 = vmor %vm2952, %vm2953
        %v2955 = vsel %vm2954, %v2947, %v2951
        %v2956 = vand.u32 2147483647, %v2946
        %vm2957 = vcmp.eq.f32.partialorder %v2956, 8.507059e+37
        %v2958 = vand.u32 %v2946, 2147483648
        %v2959 = vor.u32 1.1754944e-38, %v2958
        %v2960 = vsel %vm2957, %v2959, %v2955
        %v2961 = vmul.f32 %v2928, %v2960
        %v2962 = vld [vmem:[#allocation29] sm:$0xf]
        %v2963 = vld [vmem:[#allocation29 + $0x4] sm:$0xf]
        %v2964 = vld [vmem:[#allocation29 + $0x8] sm:$0xf]
        %v2965 = vld [vmem:[#allocation29 + $0xc] sm:$0xf]
        %v2966 = vld [vmem:[#allocation28] sm:$0x1]
        %v2967 = vpack.c.bf16 %v2961, %v2961
        %v2969 = vperm.slane %v2966, 0
        %v2975 = vunpack.c.l.b16 %v2962
        %v2976 = vunpack.c.l.b16 %v2963
        %v2977 = vunpack.c.l.b16 %v2964
        %v2978 = vunpack.c.l.b16 %v2965
        %v2979 = vpack.c.b16 %v2976, %v2975
        %v2980 = vpack.c.b16 %v2978, %v2977
        %v2984 = vsel %vm1079, %v2967, 0
        %2986 = vmatpush.bf16.msra.mxu0 0
        %2987 = vmatpush.bf16.msra.mxu0 0
        %2988 = vmatpush.bf16.msra.mxu0 0
        %2989 = vmatpush.bf16.msra.mxu0 0
        %2990 = vmatpush.bf16.msra.mxu0 0
        %2991 = vmatpush.bf16.msra.mxu0 0
        %2992 = vmatpush.bf16.msra.mxu0 %v2980
        %2993 = vmatpush.bf16.msra.mxu0 %v2979
        %2994 = vmatmul.bf16.gmra.mxu0 %v2984
        %v2995 = vpop.f32.mrf.mxu0
        %v2996 = vadd.f32 %v2969, %v2995
        %v2997 = vpop.f32.mrf.mxu0
        %2998 = vdwg.mxu0
        %2999 = vst [vmem:[%s980] sm:$0xff] %v2996
        %s3000 = sand.u32 %s513, 1
        %s3001 = scalar_lea.sflag [#allocation4], %s3000
        %s3002 = sand.u32 %s513, 1
        %s3003 = smul.addr %s3002, 8
        %s3004 = scalar_lea.vmem [#allocation31], %s3003
        // Predicated region
        $region177: #{tpu_custom_call.1} parent=103 // pred_check
          %p3005 = pneg %p523
        $region178: #{tpu_custom_call.1} parent=103 // pred_check_branch
          %3007 = sbr.rel (%p3005) target = $region180
        $region179: #{tpu_custom_call.1} parent=103 // pred_region
          %3009 = vsyncadd %s3001, 0
          %s3010 = smul.addr %s49, 8
          %s3011 = scalar_lea.hbm %s21, %s3010
          %s3013 = sshll.u32 %s3004, 4
          %s3014 = int_to_ptr.vmem [resolvable:$true] %s3013
          %s3015 = sshll.u32 %s3011, 4
          %s3016 = int_to_ptr.hbm [resolvable:$true] %s3015
          %3018 = dma.vmem_to_hbm [thread:$0]  %s3014, 128, %s3016, %s3001
        $region180: #{tpu_custom_call.1} parent=103 // pred_fallthru
          _
      $region104: #{tpu_custom_call.1} parent=5 // pred_fallthru
        _
      %p3019 = scmp.le.s32.totalorder 2, %s44
      // Predicated region
      $region181: #{tpu_custom_call.1} parent=5 // pred_check
        %p3020 = pneg %p3019
      $region182: #{tpu_custom_call.1} parent=5 // pred_check_branch
        %3022 = sbr.rel (%p3020) target = $region184
      $region183: #{tpu_custom_call.1} parent=5 // pred_region
        %s3023 = ssub.s32 %s44, 2
        // Predicated region
        $region185: #{tpu_custom_call.1} parent=183 // pred_check
          %p3024 = pneg %p529
        $region186: #{tpu_custom_call.1} parent=183 // pred_check_branch
          %3026 = sbr.rel (%p3024) target = $region188
        $region187: #{tpu_custom_call.1} parent=183 // pred_region
          %s3027 = sand.u32 %s514, 1
          %s3028 = scalar_lea.sflag [#allocation4], %s3027
          %s3029 = sand.u32 %s514, 1
          %s3030 = smul.addr %s3029, 8
          %s3031 = scalar_lea.vmem [#allocation31], %s3030
          %3033 = dma.done %s3028, 128
        $region188: #{tpu_custom_call.1} parent=183 // pred_fallthru
          _
      $region184: #{tpu_custom_call.1} parent=5 // pred_fallthru
        _
    $region6: #{tpu_custom_call.1} parent=1 // loop_footer
      %s48 = sadd.s32 1, %s44
    $region7: #{tpu_custom_call.1} parent=1 // loop_footer_branch
      %43 = sbr.rel target = $region3
    $region8: #{tpu_custom_call.1} parent=1 // loop_exit
      _
    %3034 = vsyncpa [#allocation3], 1
    %s3035 = scalar_lea.sflag [#allocation3], 1
    %3036 = vsyncpa %s3035, 1
    %3037 = vsyncpa [#allocation6], 1
    %s3038 = scalar_lea.sflag [#allocation6], 1
    %3039 = vsyncpa %s3038, 1
    %3040 = vsyncpa [#allocation9], 1
    %3041 = vsyncpa [#allocation12], 1
    %3042 = vsyncpa [#allocation15], 1
    %3043 = vsyncpa [#allocation18], 1
    %3044 = vsyncpa [#allocation21], 1
    %3045 = vsyncpa [#allocation24], 1
    %3046 = vsyncpa [#allocation27], 1
    %3047 = vsyncpa [#allocation30], 1
    %3048 = vsyncpa [#allocation4], 1
    %s3049 = scalar_lea.sflag [#allocation4], 1
    %3050 = vsyncpa %s3049, 1

</llo_original>
